<compile_context>
chip_gen: v6e
topology: v6e:2x2x1
jax: 0.10.0
libtpu: 0.0.40
codegen_flags: <defaults>
</compile_context>

<pallas_src>
import math
import functools

import jax
import jax.numpy as jnp
from jax.experimental import pallas as pl
from jax.experimental.pallas import tpu as pltpu


def get_same_padding(in_size, kernel_size, stride):
    in_h, in_w = (in_size, in_size) if isinstance(in_size, int) else in_size
    kh, kw = (kernel_size, kernel_size) if isinstance(kernel_size, int) else kernel_size
    sh, sw = (stride, stride) if isinstance(stride, int) else stride
    out_h, out_w = math.ceil(in_h / sh), math.ceil(in_w / sw)
    pad_h = max((out_h - 1) * sh + kh - in_h, 0)
    pad_w = max((out_w - 1) * sw + kw - in_w, 0)
    return (pad_w // 2, pad_w - pad_w // 2, pad_h // 2, pad_h - pad_h // 2)


def _sigmoid(x):
    # Exact: sigmoid(x) = 0.5 * (1 + tanh(x/2)).  One EUP op per element.
    return 0.5 * (jnp.tanh(0.5 * x) + 1.0)


def _swish(x):
    return x * _sigmoid(x)


# --------------------------- fused MBConv kernel ---------------------------
def _mbconv_kernel(x_ref, *rest, H, W, kh, kw, stride, top, left, Ho, Wo,
                   has_expand, skip):
    if has_expand:
        (wexp_ref, eb_ref, wdw_ref, db_ref,
         wse1_ref, bse1_ref, wse2_ref, bse2_ref,
         wpw_ref, pb_ref, o_ref, ep_ref) = rest
    else:
        (wdw_ref, db_ref,
         wse1_ref, bse1_ref, wse2_ref, bse2_ref,
         wpw_ref, pb_ref, o_ref) = rest

    res = None
    if has_expand:
        x = x_ref[0]                                  # (H, W, Cin), unpadded f32
        Cin = x.shape[-1]
        neck = wexp_ref.shape[1]
        # ---- 1x1 expand conv (+ folded BN scale) as ONE 2-D MXU matmul over
        #      the interior only; bf16 operands, f32 accumulate. ----
        x2d = x.reshape(H * W, Cin).astype(jnp.bfloat16)
        e2d = jnp.dot(x2d, wexp_ref[...], preferred_element_type=jnp.float32)
        e2d = _swish(e2d + eb_ref[...])
        # Reference pads with zeros AFTER the expand conv: write the interior
        # into a zeroed VMEM scratch so the halo is exactly zero (no mask mul).
        ep_ref[...] = jnp.zeros_like(ep_ref)
        ep_ref[pl.ds(top, H), pl.ds(left, W), :] = e2d.reshape(H, W, neck)
        ep = ep_ref[...]                              # (Hp, Wp, neck)
        if skip:
            res = x                                   # unpadded input residual
    else:
        ep = x_ref[0]                                 # (Hp, Wp, Cin), halo already zero
        Cin = ep.shape[-1]
        neck = Cin
        if skip:
            res = jax.lax.slice(ep, (top, left, 0), (top + Ho, left + Wo, Cin))

    Hp = ep.shape[0]

    # ---- KxK depthwise conv (+ folded BN scale) + bias + Swish ----
    # Hoist the kw column (sublane) shifts out of the dy loop: kw relayout
    # copies instead of kh*kw; dy shifts slice the cheap untiled leading dim.
    wdw = wdw_ref[...]                                # (kh, kw, neck)
    cols = [jax.lax.slice(ep, (0, dx, 0),
                          (Hp, dx + (Wo - 1) * stride + 1, neck),
                          (1, stride, 1)) for dx in range(kw)]
    acc = jnp.zeros((Ho, Wo, neck), jnp.float32)
    for dy in range(kh):
        for dx in range(kw):
            patch = jax.lax.slice(cols[dx], (dy, 0, 0),
                                  (dy + (Ho - 1) * stride + 1, Wo, neck),
                                  (stride, 1, 1))
            acc = acc + patch * wdw[dy, dx]
    y = _swish(acc + db_ref[...])                     # (Ho, Wo, neck)

    # ---- squeeze-excitation gate (tiny, f32, stays in VMEM) ----
    z = jnp.mean(y, axis=(0, 1)).reshape(1, neck)
    h = _swish(jnp.dot(z, wse1_ref[...], preferred_element_type=jnp.float32)
               + bse1_ref[...])
    g = _sigmoid(jnp.dot(h, wse2_ref[...], preferred_element_type=jnp.float32)
                 + bse2_ref[...])                     # (1, neck)
    y = y * g

    # ---- 1x1 pointwise conv (+ folded BN scale) as ONE 2-D MXU matmul ----
    Cout = wpw_ref.shape[1]
    y2d = y.reshape(Ho * Wo, neck).astype(jnp.bfloat16)
    out2d = jnp.dot(y2d, wpw_ref[...], preferred_element_type=jnp.float32)
    out2d = out2d + pb_ref[...]
    out = out2d.reshape(Ho, Wo, Cout)
    if skip:
        out = out + res
    o_ref[0] = out.astype(o_ref.dtype)


def inverted_residual_forward(x_nhwc, p, *, in_channels, out_channels,
                              kernel_size, expand_ratio, id_skip, stride,
                              image_size, drop_connect_rate):
    del drop_connect_rate  # eval-mode: drop_connect is identity
    N, H, W, Cin = x_nhwc.shape
    kh = kw = kernel_size
    left, right, top, bottom = get_same_padding(image_size, kernel_size, stride)
    Hp, Wp = H + top + bottom, W + left + right
    Ho = (Hp - kh) // stride + 1
    Wo = (Wp - kw) // stride + 1

    has_expand = expand_ratio > 1
    skip = bool(id_skip and stride == 1 and in_channels == out_channels)

    neck = p['w_dw'].shape[-1]
    Cout = p['w_pw'].shape[1]
    se_c = p['w_se1'].shape[1]

    # Fold eval-mode BN scales into the conv weights (only bias adds remain
    # in-kernel); cast the 1x1 matmul weights to bf16 for the MXU.
    w_dw = (p['w_dw'] * p['dw_scale']).astype(jnp.float32)   # (kh,kw,neck)
    w_pw = (p['w_pw'] * p['pw_scale']).astype(jnp.bfloat16)  # (neck,Cout)

    args = []
    in_specs = []
    if has_expand:
        # Unpadded input: the zero halo is created in VMEM scratch in-kernel.
        args.append(x_nhwc)
        in_specs.append(pl.BlockSpec((1, H, W, Cin), lambda n: (n, 0, 0, 0)))
        w_exp = (p['w_exp'] * p['exp_scale']).astype(jnp.bfloat16)
        args += [w_exp, p['exp_bias']]
        in_specs += [pl.BlockSpec((Cin, neck), lambda n: (0, 0)),
                     pl.BlockSpec((1, neck), lambda n: (0, 0))]
    else:
        xp = jnp.pad(x_nhwc, ((0, 0), (top, bottom), (left, right), (0, 0)))
        args.append(xp)
        in_specs.append(pl.BlockSpec((1, Hp, Wp, Cin), lambda n: (n, 0, 0, 0)))

    args += [w_dw, p['dw_bias'], p['w_se1'], p['b_se1'], p['w_se2'], p['b_se2'],
             w_pw, p['pw_bias']]
    in_specs += [
        pl.BlockSpec((kh, kw, neck), lambda n: (0, 0, 0)),
        pl.BlockSpec((1, neck), lambda n: (0, 0)),
        pl.BlockSpec((neck, se_c), lambda n: (0, 0)),
        pl.BlockSpec((1, se_c), lambda n: (0, 0)),
        pl.BlockSpec((se_c, neck), lambda n: (0, 0)),
        pl.BlockSpec((1, neck), lambda n: (0, 0)),
        pl.BlockSpec((neck, Cout), lambda n: (0, 0)),
        pl.BlockSpec((1, Cout), lambda n: (0, 0)),
    ]

    scratch_shapes = []
    if has_expand:
        scratch_shapes.append(pltpu.VMEM((Hp, Wp, neck), jnp.float32))

    kern = functools.partial(_mbconv_kernel, H=H, W=W, kh=kh, kw=kw,
                             stride=stride, top=top, left=left, Ho=Ho, Wo=Wo,
                             has_expand=has_expand, skip=skip)
    out = pl.pallas_call(
        kern,
        out_shape=jax.ShapeDtypeStruct((N, Ho, Wo, Cout), jnp.float32),
        grid=(N,),
        in_specs=in_specs,
        out_specs=pl.BlockSpec((1, Ho, Wo, Cout), lambda n: (n, 0, 0, 0)),
        scratch_shapes=scratch_shapes,
        compiler_params=pltpu.CompilerParams(
            dimension_semantics=("parallel",),
            vmem_limit_bytes=32 * 1024 * 1024),
    )(*args)
    return out


# ----------------------------- params / glue -----------------------------
def fold_bn(gamma, beta, mean, var, eps):
    scale = gamma * jax.lax.rsqrt(var + eps)
    return scale, beta - mean * scale


def init_params(key, in_channels, out_channels, kernel_size, expand_ratio,
                se_ratio, bn_eps):
    neck = int(in_channels * expand_ratio)
    se_c = int(in_channels * se_ratio)
    ks = jax.random.split(key, 10)

    def nrm(k, shape, s=0.3):
        return (s * jax.random.normal(k, shape)).astype(jnp.float32)

    def bn(k, c):
        k1, k2, k3, k4 = jax.random.split(k, 4)
        gamma = 1.0 + 0.1 * jax.random.normal(k1, (c,))
        beta = 0.1 * jax.random.normal(k2, (c,))
        mean = 0.1 * jax.random.normal(k3, (c,))
        var = jax.random.uniform(k4, (c,), minval=0.5, maxval=1.5)
        s, b = fold_bn(gamma, beta, mean, var, bn_eps)
        return (s.reshape(1, c).astype(jnp.float32),
                b.reshape(1, c).astype(jnp.float32))

    p = {}
    p['w_exp'] = nrm(ks[0], (in_channels, neck))
    p['exp_scale'], p['exp_bias'] = bn(ks[1], neck)
    p['w_dw'] = nrm(ks[2], (kernel_size, kernel_size, neck))
    p['dw_scale'], p['dw_bias'] = bn(ks[3], neck)
    p['w_se1'] = nrm(ks[4], (neck, se_c))
    p['b_se1'] = nrm(ks[5], (1, se_c), 0.1)
    p['w_se2'] = nrm(ks[6], (se_c, neck))
    p['b_se2'] = nrm(ks[7], (1, neck), 0.1)
    p['w_pw'] = nrm(ks[8], (neck, out_channels))
    p['pw_scale'], p['pw_bias'] = bn(ks[9], out_channels)
    return p


# ----------------------- pure-JAX reference (NHWC, f32) -----------------------
def reference_forward(x_nhwc, p, *, in_channels, out_channels, kernel_size,
                      expand_ratio, id_skip, stride, image_size,
                      drop_connect_rate):
    del drop_connect_rate
    hp = jax.lax.Precision.HIGHEST
    x = x_nhwc
    if expand_ratio > 1:
        x = jnp.einsum('nhwc,cd->nhwd', x, p['w_exp'], precision=hp)
        x = x * p['exp_scale'] + p['exp_bias']
        x = x * jax.nn.sigmoid(x)
    left, right, top, bottom = get_same_padding(image_size, kernel_size, stride)
    xp = jnp.pad(x, ((0, 0), (top, bottom), (left, right), (0, 0)))
    neck = x.shape[-1]
    x = jax.lax.conv_general_dilated(
        xp, p['w_dw'][:, :, None, :],
        window_strides=(stride, stride), padding='VALID',
        dimension_numbers=('NHWC', 'HWIO', 'NHWC'),
        feature_group_count=neck, precision=hp)
    x = x * p['dw_scale'] + p['dw_bias']
    x = x * jax.nn.sigmoid(x)
    z = jnp.mean(x, axis=(1, 2), keepdims=True)
    h = jnp.einsum('nhwc,cd->nhwd', z, p['w_se1'], precision=hp) + p['b_se1']
    h = h * jax.nn.sigmoid(h)
    g = jnp.einsum('nhwc,cd->nhwd', h, p['w_se2'], precision=hp) + p['b_se2']
    x = jax.nn.sigmoid(g) * x
    x = jnp.einsum('nhwc,cd->nhwd', x, p['w_pw'], precision=hp)
    x = x * p['pw_scale'] + p['pw_bias']
    if id_skip and stride == 1 and in_channels == out_channels:
        x = x + x_nhwc
    return x


def _run_and_check(cfg, N, H, W, key):
    kx, kp = jax.random.split(key)
    x_nchw = jax.random.normal(kx, (N, cfg['in_channels'], H, W), jnp.float32)
    params = init_params(kp, cfg['in_channels'], cfg['out_channels'],
                         cfg['kernel_size'], cfg['expand_ratio'],
                         cfg['se_ratio'], cfg['bn_eps'])
    x_nhwc = jnp.transpose(x_nchw, (0, 2, 3, 1))
    fwd_kwargs = dict(in_channels=cfg['in_channels'],
                      out_channels=cfg['out_channels'],
                      kernel_size=cfg['kernel_size'],
                      expand_ratio=cfg['expand_ratio'],
                      id_skip=cfg['id_skip'], stride=cfg['stride'],
                      image_size=cfg['image_size'],
                      drop_connect_rate=cfg['drop_connect_rate'])

    out_nhwc = inverted_residual_forward(x_nhwc, params, **fwd_kwargs)
    out_nchw = jnp.transpose(out_nhwc, (0, 3, 1, 2))
    jax.block_until_ready(out_nchw)

    ref_nhwc = reference_forward(x_nhwc, params, **fwd_kwargs)
    diff = jnp.abs(out_nhwc - ref_nhwc)
    # Tolerance covers bf16 MXU operand rounding in the 1x1 convs
    # (f32 accumulation); reference is full f32.
    ok = bool(jnp.all(diff <= 5e-2 + 5e-2 * jnp.abs(ref_nhwc)))
    max_err = float(jnp.max(diff))
    assert out_nchw.shape == (N, cfg['out_channels'], H, W)
    assert ok, f"max abs error {max_err}"
    return max_err


if __name__ == "__main__":
    key = jax.random.PRNGKey(0)
    k1, k2 = jax.random.split(key)
    N, H, W = 2, 16, 16

    # Expanded MBConv block (expand_ratio=4) with identity skip.
    cfg_a = dict(in_channels=8, out_channels=8, kernel_size=3, expand_ratio=4,
                 id_skip=True, stride=1, se_ratio=0.25, bn_eps=1e-3,
                 image_size=16, drop_connect_rate=0.2)
    _run_and_check(cfg_a, N, H, W, k1)

    # Non-expanded MBConv block (expand_ratio=1, as in EfficientNet's first stage).
    cfg_b = dict(in_channels=8, out_channels=8, kernel_size=3, expand_ratio=1,
                 id_skip=True, stride=1, se_ratio=0.25, bn_eps=1e-3,
                 image_size=16, drop_connect_rate=0.2)
    _run_and_check(cfg_b, N, H, W, k2)

    print("KERNEL_OK")
</pallas_src>

<mosaic_0001>
module attributes {stable_mosaic.version = 11 : i64} {
  func.func @_mbconv_kernel(%arg0: i32, %arg1: memref<1x16x16x8xf32, #tpu.memory_space<vmem>>, %arg2: memref<8x32xbf16, #tpu.memory_space<vmem>>, %arg3: memref<1x32xf32, #tpu.memory_space<vmem>>, %arg4: memref<3x3x32xf32, #tpu.memory_space<vmem>>, %arg5: memref<1x32xf32, #tpu.memory_space<vmem>>, %arg6: memref<32x2xf32, #tpu.memory_space<vmem>>, %arg7: memref<1x2xf32, #tpu.memory_space<vmem>>, %arg8: memref<2x32xf32, #tpu.memory_space<vmem>>, %arg9: memref<1x32xf32, #tpu.memory_space<vmem>>, %arg10: memref<32x8xbf16, #tpu.memory_space<vmem>>, %arg11: memref<1x8xf32, #tpu.memory_space<vmem>>, %arg12: memref<1x16x16x8xf32, #tpu.memory_space<vmem>>, %arg13: memref<18x18x32xf32, #tpu.memory_space<vmem>>) attributes {dimension_semantics = [#tpu.dimension_semantics<parallel>], iteration_bounds = array<i64: 2>, scalar_prefetch = 0 : i64, scratch_operands = 1 : i64, tpu.core_type = #tpu.core_type<tc>, window_params = [{transform_indices = @transform_0, window_bounds = array<i64: 1, 16, 16, 8>}, {pipeline_mode = #tpu.pipeline_mode<synchronous>, transform_indices = @transform_1, window_bounds = array<i64: 8, 32>}, {pipeline_mode = #tpu.pipeline_mode<synchronous>, transform_indices = @transform_2, window_bounds = array<i64: 1, 32>}, {pipeline_mode = #tpu.pipeline_mode<synchronous>, transform_indices = @transform_3, window_bounds = array<i64: 3, 3, 32>}, {pipeline_mode = #tpu.pipeline_mode<synchronous>, transform_indices = @transform_4, window_bounds = array<i64: 1, 32>}, {pipeline_mode = #tpu.pipeline_mode<synchronous>, transform_indices = @transform_5, window_bounds = array<i64: 32, 2>}, {pipeline_mode = #tpu.pipeline_mode<synchronous>, transform_indices = @transform_6, window_bounds = array<i64: 1, 2>}, {pipeline_mode = #tpu.pipeline_mode<synchronous>, transform_indices = @transform_7, window_bounds = array<i64: 2, 32>}, {pipeline_mode = #tpu.pipeline_mode<synchronous>, transform_indices = @transform_8, window_bounds = array<i64: 1, 32>}, {pipeline_mode = #tpu.pipeline_mode<synchronous>, transform_indices = @transform_9, window_bounds = array<i64: 32, 8>}, {pipeline_mode = #tpu.pipeline_mode<synchronous>, transform_indices = @transform_10, window_bounds = array<i64: 1, 8>}, {transform_indices = @transform_11, window_bounds = array<i64: 1, 16, 16, 8>}]} {
    %c0 = arith.constant 0 : index
    %c0_0 = arith.constant 0 : index
    %c0_1 = arith.constant 0 : index
    %c0_2 = arith.constant 0 : index
    %0 = vector.load %arg1[%c0, %c0_0, %c0_1, %c0_2] : memref<1x16x16x8xf32, #tpu.memory_space<vmem>>, vector<1x16x16x8xf32>
    %1 = vector.shape_cast %0 : vector<1x16x16x8xf32> to vector<16x16x8xf32>
    %2 = vector.shape_cast %1 : vector<16x16x8xf32> to vector<256x8xf32>
    %3 = arith.truncf %2 : vector<256x8xf32> to vector<256x8xbf16>
    %c0_3 = arith.constant 0 : index
    %c0_4 = arith.constant 0 : index
    %4 = vector.load %arg2[%c0_3, %c0_4] : memref<8x32xbf16, #tpu.memory_space<vmem>>, vector<8x32xbf16>
    %cst = arith.constant dense<0.000000e+00> : vector<256x32xf32>
    %5 = tpu.matmul %3, %4, %cst {dimension_numbers = #tpu.dot_dimension_numbers<[1], [0], [0], [1], [0, 0, 1, 1], [], []>} : vector<256x8xbf16>, vector<8x32xbf16>, vector<256x32xf32> -> vector<256x32xf32>
    %c0_5 = arith.constant 0 : index
    %c0_6 = arith.constant 0 : index
    %6 = vector.load %arg3[%c0_5, %c0_6] : memref<1x32xf32, #tpu.memory_space<vmem>>, vector<1x32xf32>
    %7 = vector.broadcast %6 : vector<1x32xf32> to vector<256x32xf32>
    %8 = arith.addf %5, %7 : vector<256x32xf32>
    %cst_7 = arith.constant 5.000000e-01 : f32
    %9 = vector.broadcast %cst_7 : f32 to vector<256x32xf32>
    %10 = arith.mulf %9, %8 : vector<256x32xf32>
    %11 = math.tanh %10 : vector<256x32xf32>
    %cst_8 = arith.constant 1.000000e+00 : f32
    %12 = vector.broadcast %cst_8 : f32 to vector<256x32xf32>
    %13 = arith.addf %11, %12 : vector<256x32xf32>
    %cst_9 = arith.constant 5.000000e-01 : f32
    %14 = vector.broadcast %cst_9 : f32 to vector<256x32xf32>
    %15 = arith.mulf %14, %13 : vector<256x32xf32>
    %16 = arith.mulf %8, %15 : vector<256x32xf32>
    %cst_10 = arith.constant 0.000000e+00 : f32
    %17 = vector.broadcast %cst_10 : f32 to vector<18x18x32xf32>
    %c0_11 = arith.constant 0 : index
    %c0_12 = arith.constant 0 : index
    %c0_13 = arith.constant 0 : index
    %18 = vector.load %arg13[%c0_11, %c0_12, %c0_13] : memref<18x18x32xf32, #tpu.memory_space<vmem>>, vector<18x18x32xf32>
    tpu.vector_store %arg13[%c0_11, %c0_12, %c0_13], %17 {strides = array<i32>} : memref<18x18x32xf32, #tpu.memory_space<vmem>>, vector<18x18x32xf32>,
    %19 = vector.shape_cast %16 : vector<256x32xf32> to vector<16x16x32xf32>
    %c1 = arith.constant 1 : index
    %c1_14 = arith.constant 1 : index
    %c0_15 = arith.constant 0 : index
    %20 = vector.load %arg13[%c1, %c1_14, %c0_15] : memref<18x18x32xf32, #tpu.memory_space<vmem>>, vector<16x16x32xf32>
    tpu.vector_store %arg13[%c1, %c1_14, %c0_15], %19 {strides = array<i32>} : memref<18x18x32xf32, #tpu.memory_space<vmem>>, vector<16x16x32xf32>,
    %c0_16 = arith.constant 0 : index
    %c0_17 = arith.constant 0 : index
    %c0_18 = arith.constant 0 : index
    %21 = vector.load %arg13[%c0_16, %c0_17, %c0_18] : memref<18x18x32xf32, #tpu.memory_space<vmem>>, vector<18x18x32xf32>
    %c0_19 = arith.constant 0 : index
    %c0_20 = arith.constant 0 : index
    %c0_21 = arith.constant 0 : index
    %22 = vector.load %arg4[%c0_19, %c0_20, %c0_21] : memref<3x3x32xf32, #tpu.memory_space<vmem>>, vector<3x3x32xf32>
    %23 = vector.extract_strided_slice %21 {offsets = [0, 0, 0], sizes = [18, 16, 32], strides = [1, 1, 1]} : vector<18x18x32xf32> to vector<18x16x32xf32>
    %24 = vector.extract_strided_slice %21 {offsets = [0, 1, 0], sizes = [18, 16, 32], strides = [1, 1, 1]} : vector<18x18x32xf32> to vector<18x16x32xf32>
    %25 = vector.extract_strided_slice %21 {offsets = [0, 2, 0], sizes = [18, 16, 32], strides = [1, 1, 1]} : vector<18x18x32xf32> to vector<18x16x32xf32>
    %cst_22 = arith.constant 0.000000e+00 : f32
    %26 = vector.broadcast %cst_22 : f32 to vector<16x16x32xf32>
    %27 = vector.extract_strided_slice %23 {offsets = [0, 0, 0], sizes = [16, 16, 32], strides = [1, 1, 1]} : vector<18x16x32xf32> to vector<16x16x32xf32>
    %28 = vector.extract_strided_slice %22 {offsets = [0, 0, 0], sizes = [1, 1, 32], strides = [1, 1, 1]} : vector<3x3x32xf32> to vector<1x1x32xf32>
    %29 = vector.shape_cast %28 : vector<1x1x32xf32> to vector<32xf32>
    %30 = vector.shape_cast %29 : vector<32xf32> to vector<1x1x32xf32>
    %31 = vector.broadcast %30 : vector<1x1x32xf32> to vector<16x16x32xf32>
    %32 = arith.mulf %27, %31 : vector<16x16x32xf32>
    %33 = arith.addf %26, %32 : vector<16x16x32xf32>
    %34 = vector.extract_strided_slice %24 {offsets = [0, 0, 0], sizes = [16, 16, 32], strides = [1, 1, 1]} : vector<18x16x32xf32> to vector<16x16x32xf32>
    %35 = vector.extract_strided_slice %22 {offsets = [0, 1, 0], sizes = [1, 1, 32], strides = [1, 1, 1]} : vector<3x3x32xf32> to vector<1x1x32xf32>
    %36 = vector.shape_cast %35 : vector<1x1x32xf32> to vector<32xf32>
    %37 = vector.shape_cast %36 : vector<32xf32> to vector<1x1x32xf32>
    %38 = vector.broadcast %37 : vector<1x1x32xf32> to vector<16x16x32xf32>
    %39 = arith.mulf %34, %38 : vector<16x16x32xf32>
    %40 = arith.addf %33, %39 : vector<16x16x32xf32>
    %41 = vector.extract_strided_slice %25 {offsets = [0, 0, 0], sizes = [16, 16, 32], strides = [1, 1, 1]} : vector<18x16x32xf32> to vector<16x16x32xf32>
    %42 = vector.extract_strided_slice %22 {offsets = [0, 2, 0], sizes = [1, 1, 32], strides = [1, 1, 1]} : vector<3x3x32xf32> to vector<1x1x32xf32>
    %43 = vector.shape_cast %42 : vector<1x1x32xf32> to vector<32xf32>
    %44 = vector.shape_cast %43 : vector<32xf32> to vector<1x1x32xf32>
    %45 = vector.broadcast %44 : vector<1x1x32xf32> to vector<16x16x32xf32>
    %46 = arith.mulf %41, %45 : vector<16x16x32xf32>
    %47 = arith.addf %40, %46 : vector<16x16x32xf32>
    %48 = vector.extract_strided_slice %23 {offsets = [1, 0, 0], sizes = [16, 16, 32], strides = [1, 1, 1]} : vector<18x16x32xf32> to vector<16x16x32xf32>
    %49 = vector.extract_strided_slice %22 {offsets = [1, 0, 0], sizes = [1, 1, 32], strides = [1, 1, 1]} : vector<3x3x32xf32> to vector<1x1x32xf32>
    %50 = vector.shape_cast %49 : vector<1x1x32xf32> to vector<32xf32>
    %51 = vector.shape_cast %50 : vector<32xf32> to vector<1x1x32xf32>
    %52 = vector.broadcast %51 : vector<1x1x32xf32> to vector<16x16x32xf32>
    %53 = arith.mulf %48, %52 : vector<16x16x32xf32>
    %54 = arith.addf %47, %53 : vector<16x16x32xf32>
    %55 = vector.extract_strided_slice %24 {offsets = [1, 0, 0], sizes = [16, 16, 32], strides = [1, 1, 1]} : vector<18x16x32xf32> to vector<16x16x32xf32>
    %56 = vector.extract_strided_slice %22 {offsets = [1, 1, 0], sizes = [1, 1, 32], strides = [1, 1, 1]} : vector<3x3x32xf32> to vector<1x1x32xf32>
    %57 = vector.shape_cast %56 : vector<1x1x32xf32> to vector<32xf32>
    %58 = vector.shape_cast %57 : vector<32xf32> to vector<1x1x32xf32>
    %59 = vector.broadcast %58 : vector<1x1x32xf32> to vector<16x16x32xf32>
    %60 = arith.mulf %55, %59 : vector<16x16x32xf32>
    %61 = arith.addf %54, %60 : vector<16x16x32xf32>
    %62 = vector.extract_strided_slice %25 {offsets = [1, 0, 0], sizes = [16, 16, 32], strides = [1, 1, 1]} : vector<18x16x32xf32> to vector<16x16x32xf32>
    %63 = vector.extract_strided_slice %22 {offsets = [1, 2, 0], sizes = [1, 1, 32], strides = [1, 1, 1]} : vector<3x3x32xf32> to vector<1x1x32xf32>
    %64 = vector.shape_cast %63 : vector<1x1x32xf32> to vector<32xf32>
    %65 = vector.shape_cast %64 : vector<32xf32> to vector<1x1x32xf32>
    %66 = vector.broadcast %65 : vector<1x1x32xf32> to vector<16x16x32xf32>
    %67 = arith.mulf %62, %66 : vector<16x16x32xf32>
    %68 = arith.addf %61, %67 : vector<16x16x32xf32>
    %69 = vector.extract_strided_slice %23 {offsets = [2, 0, 0], sizes = [16, 16, 32], strides = [1, 1, 1]} : vector<18x16x32xf32> to vector<16x16x32xf32>
    %70 = vector.extract_strided_slice %22 {offsets = [2, 0, 0], sizes = [1, 1, 32], strides = [1, 1, 1]} : vector<3x3x32xf32> to vector<1x1x32xf32>
    %71 = vector.shape_cast %70 : vector<1x1x32xf32> to vector<32xf32>
    %72 = vector.shape_cast %71 : vector<32xf32> to vector<1x1x32xf32>
    %73 = vector.broadcast %72 : vector<1x1x32xf32> to vector<16x16x32xf32>
    %74 = arith.mulf %69, %73 : vector<16x16x32xf32>
    %75 = arith.addf %68, %74 : vector<16x16x32xf32>
    %76 = vector.extract_strided_slice %24 {offsets = [2, 0, 0], sizes = [16, 16, 32], strides = [1, 1, 1]} : vector<18x16x32xf32> to vector<16x16x32xf32>
    %77 = vector.extract_strided_slice %22 {offsets = [2, 1, 0], sizes = [1, 1, 32], strides = [1, 1, 1]} : vector<3x3x32xf32> to vector<1x1x32xf32>
    %78 = vector.shape_cast %77 : vector<1x1x32xf32> to vector<32xf32>
    %79 = vector.shape_cast %78 : vector<32xf32> to vector<1x1x32xf32>
    %80 = vector.broadcast %79 : vector<1x1x32xf32> to vector<16x16x32xf32>
    %81 = arith.mulf %76, %80 : vector<16x16x32xf32>
    %82 = arith.addf %75, %81 : vector<16x16x32xf32>
    %83 = vector.extract_strided_slice %25 {offsets = [2, 0, 0], sizes = [16, 16, 32], strides = [1, 1, 1]} : vector<18x16x32xf32> to vector<16x16x32xf32>
    %84 = vector.extract_strided_slice %22 {offsets = [2, 2, 0], sizes = [1, 1, 32], strides = [1, 1, 1]} : vector<3x3x32xf32> to vector<1x1x32xf32>
    %85 = vector.shape_cast %84 : vector<1x1x32xf32> to vector<32xf32>
    %86 = vector.shape_cast %85 : vector<32xf32> to vector<1x1x32xf32>
    %87 = vector.broadcast %86 : vector<1x1x32xf32> to vector<16x16x32xf32>
    %88 = arith.mulf %83, %87 : vector<16x16x32xf32>
    %89 = arith.addf %82, %88 : vector<16x16x32xf32>
    %c0_23 = arith.constant 0 : index
    %c0_24 = arith.constant 0 : index
    %90 = vector.load %arg5[%c0_23, %c0_24] : memref<1x32xf32, #tpu.memory_space<vmem>>, vector<1x32xf32>
    %91 = vector.shape_cast %90 : vector<1x32xf32> to vector<1x1x32xf32>
    %92 = vector.broadcast %91 : vector<1x1x32xf32> to vector<16x16x32xf32>
    %93 = arith.addf %89, %92 : vector<16x16x32xf32>
    %cst_25 = arith.constant 5.000000e-01 : f32
    %94 = vector.broadcast %cst_25 : f32 to vector<16x16x32xf32>
    %95 = arith.mulf %94, %93 : vector<16x16x32xf32>
    %96 = math.tanh %95 : vector<16x16x32xf32>
    %cst_26 = arith.constant 1.000000e+00 : f32
    %97 = vector.broadcast %cst_26 : f32 to vector<16x16x32xf32>
    %98 = arith.addf %96, %97 : vector<16x16x32xf32>
    %cst_27 = arith.constant 5.000000e-01 : f32
    %99 = vector.broadcast %cst_27 : f32 to vector<16x16x32xf32>
    %100 = arith.mulf %99, %98 : vector<16x16x32xf32>
    %101 = arith.mulf %93, %100 : vector<16x16x32xf32>
    %cst_28 = arith.constant dense<0.000000e+00> : vector<32xf32>
    %102 = vector.multi_reduction <add>, %101, %cst_28 [0, 1] : vector<16x16x32xf32> to vector<32xf32>
    %cst_29 = arith.constant 2.560000e+02 : f32
    %103 = vector.broadcast %cst_29 : f32 to vector<32xf32>
    %104 = arith.divf %102, %103 : vector<32xf32>
    %105 = vector.shape_cast %104 : vector<32xf32> to vector<1x32xf32>
    %c0_30 = arith.constant 0 : index
    %c0_31 = arith.constant 0 : index
    %106 = vector.load %arg6[%c0_30, %c0_31] : memref<32x2xf32, #tpu.memory_space<vmem>>, vector<32x2xf32>
    %cst_32 = arith.constant dense<0.000000e+00> : vector<1x2xf32>
    %107 = tpu.matmul %105, %106, %cst_32 {dimension_numbers = #tpu.dot_dimension_numbers<[1], [0], [0], [1], [0, 0, 1, 1], [], []>} : vector<1x32xf32>, vector<32x2xf32>, vector<1x2xf32> -> vector<1x2xf32>
    %c0_33 = arith.constant 0 : index
    %c0_34 = arith.constant 0 : index
    %108 = vector.load %arg7[%c0_33, %c0_34] : memref<1x2xf32, #tpu.memory_space<vmem>>, vector<1x2xf32>
    %109 = arith.addf %107, %108 : vector<1x2xf32>
    %cst_35 = arith.constant 5.000000e-01 : f32
    %110 = vector.broadcast %cst_35 : f32 to vector<1x2xf32>
    %111 = arith.mulf %110, %109 : vector<1x2xf32>
    %112 = math.tanh %111 : vector<1x2xf32>
    %cst_36 = arith.constant 1.000000e+00 : f32
    %113 = vector.broadcast %cst_36 : f32 to vector<1x2xf32>
    %114 = arith.addf %112, %113 : vector<1x2xf32>
    %cst_37 = arith.constant 5.000000e-01 : f32
    %115 = vector.broadcast %cst_37 : f32 to vector<1x2xf32>
    %116 = arith.mulf %115, %114 : vector<1x2xf32>
    %117 = arith.mulf %109, %116 : vector<1x2xf32>
    %c0_38 = arith.constant 0 : index
    %c0_39 = arith.constant 0 : index
    %118 = vector.load %arg8[%c0_38, %c0_39] : memref<2x32xf32, #tpu.memory_space<vmem>>, vector<2x32xf32>
    %cst_40 = arith.constant dense<0.000000e+00> : vector<1x32xf32>
    %119 = tpu.matmul %117, %118, %cst_40 {dimension_numbers = #tpu.dot_dimension_numbers<[1], [0], [0], [1], [0, 0, 1, 1], [], []>} : vector<1x2xf32>, vector<2x32xf32>, vector<1x32xf32> -> vector<1x32xf32>
    %c0_41 = arith.constant 0 : index
    %c0_42 = arith.constant 0 : index
    %120 = vector.load %arg9[%c0_41, %c0_42] : memref<1x32xf32, #tpu.memory_space<vmem>>, vector<1x32xf32>
    %121 = arith.addf %119, %120 : vector<1x32xf32>
    %cst_43 = arith.constant 5.000000e-01 : f32
    %122 = vector.broadcast %cst_43 : f32 to vector<1x32xf32>
    %123 = arith.mulf %122, %121 : vector<1x32xf32>
    %124 = math.tanh %123 : vector<1x32xf32>
    %cst_44 = arith.constant 1.000000e+00 : f32
    %125 = vector.broadcast %cst_44 : f32 to vector<1x32xf32>
    %126 = arith.addf %124, %125 : vector<1x32xf32>
    %cst_45 = arith.constant 5.000000e-01 : f32
    %127 = vector.broadcast %cst_45 : f32 to vector<1x32xf32>
    %128 = arith.mulf %127, %126 : vector<1x32xf32>
    %129 = vector.shape_cast %128 : vector<1x32xf32> to vector<1x1x32xf32>
    %130 = vector.broadcast %129 : vector<1x1x32xf32> to vector<16x16x32xf32>
    %131 = arith.mulf %101, %130 : vector<16x16x32xf32>
    %132 = vector.shape_cast %131 : vector<16x16x32xf32> to vector<256x32xf32>
    %133 = arith.truncf %132 : vector<256x32xf32> to vector<256x32xbf16>
    %c0_46 = arith.constant 0 : index
    %c0_47 = arith.constant 0 : index
    %134 = vector.load %arg10[%c0_46, %c0_47] : memref<32x8xbf16, #tpu.memory_space<vmem>>, vector<32x8xbf16>
    %cst_48 = arith.constant dense<0.000000e+00> : vector<256x8xf32>
    %135 = tpu.matmul %133, %134, %cst_48 {dimension_numbers = #tpu.dot_dimension_numbers<[1], [0], [0], [1], [0, 0, 1, 1], [], []>} : vector<256x32xbf16>, vector<32x8xbf16>, vector<256x8xf32> -> vector<256x8xf32>
    %c0_49 = arith.constant 0 : index
    %c0_50 = arith.constant 0 : index
    %136 = vector.load %arg11[%c0_49, %c0_50] : memref<1x8xf32, #tpu.memory_space<vmem>>, vector<1x8xf32>
    %137 = vector.broadcast %136 : vector<1x8xf32> to vector<256x8xf32>
    %138 = arith.addf %135, %137 : vector<256x8xf32>
    %139 = vector.shape_cast %138 : vector<256x8xf32> to vector<16x16x8xf32>
    %140 = arith.addf %139, %1 : vector<16x16x8xf32>
    %c0_51 = arith.constant 0 : index
    %c0_52 = arith.constant 0 : index
    %c0_53 = arith.constant 0 : index
    %c0_54 = arith.constant 0 : index
    %141 = vector.load %arg12[%c0_51, %c0_52, %c0_53, %c0_54] : memref<1x16x16x8xf32, #tpu.memory_space<vmem>>, vector<1x16x16x8xf32>
    %142 = vector.shape_cast %141 : vector<1x16x16x8xf32> to vector<16x16x8xf32>
    %143 = vector.shape_cast %140 : vector<16x16x8xf32> to vector<1x16x16x8xf32>
    tpu.vector_store %arg12[%c0_51, %c0_52, %c0_53, %c0_54], %143 {strides = array<i32>} : memref<1x16x16x8xf32, #tpu.memory_space<vmem>>, vector<1x16x16x8xf32>,
    return
  }
  func.func @transform_0(%arg0: i32) -> (i32, i32, i32, i32) {
    %c0_i32 = arith.constant 0 : i32
    %c0_i32_0 = arith.constant 0 : i32
    %c0_i32_1 = arith.constant 0 : i32
    %c0_i32_2 = arith.constant 0 : i32
    return %arg0, %c0_i32, %c0_i32_0, %c0_i32_1 : i32, i32, i32, i32
  }
  func.func @transform_1(%arg0: i32) -> (i32, i32) {
    %c0_i32 = arith.constant 0 : i32
    %c0_i32_0 = arith.constant 0 : i32
    %c0_i32_1 = arith.constant 0 : i32
    return %c0_i32, %c0_i32_0 : i32, i32
  }
  func.func @transform_2(%arg0: i32) -> (i32, i32) {
    %c0_i32 = arith.constant 0 : i32
    %c0_i32_0 = arith.constant 0 : i32
    %c0_i32_1 = arith.constant 0 : i32
    return %c0_i32, %c0_i32_0 : i32, i32
  }
  func.func @transform_3(%arg0: i32) -> (i32, i32, i32) {
    %c0_i32 = arith.constant 0 : i32
    %c0_i32_0 = arith.constant 0 : i32
    %c0_i32_1 = arith.constant 0 : i32
    %c0_i32_2 = arith.constant 0 : i32
    return %c0_i32, %c0_i32_0, %c0_i32_1 : i32, i32, i32
  }
  func.func @transform_4(%arg0: i32) -> (i32, i32) {
    %c0_i32 = arith.constant 0 : i32
    %c0_i32_0 = arith.constant 0 : i32
    %c0_i32_1 = arith.constant 0 : i32
    return %c0_i32, %c0_i32_0 : i32, i32
  }
  func.func @transform_5(%arg0: i32) -> (i32, i32) {
    %c0_i32 = arith.constant 0 : i32
    %c0_i32_0 = arith.constant 0 : i32
    %c0_i32_1 = arith.constant 0 : i32
    return %c0_i32, %c0_i32_0 : i32, i32
  }
  func.func @transform_6(%arg0: i32) -> (i32, i32) {
    %c0_i32 = arith.constant 0 : i32
    %c0_i32_0 = arith.constant 0 : i32
    %c0_i32_1 = arith.constant 0 : i32
    return %c0_i32, %c0_i32_0 : i32, i32
  }
  func.func @transform_7(%arg0: i32) -> (i32, i32) {
    %c0_i32 = arith.constant 0 : i32
    %c0_i32_0 = arith.constant 0 : i32
    %c0_i32_1 = arith.constant 0 : i32
    return %c0_i32, %c0_i32_0 : i32, i32
  }
  func.func @transform_8(%arg0: i32) -> (i32, i32) {
    %c0_i32 = arith.constant 0 : i32
    %c0_i32_0 = arith.constant 0 : i32
    %c0_i32_1 = arith.constant 0 : i32
    return %c0_i32, %c0_i32_0 : i32, i32
  }
  func.func @transform_9(%arg0: i32) -> (i32, i32) {
    %c0_i32 = arith.constant 0 : i32
    %c0_i32_0 = arith.constant 0 : i32
    %c0_i32_1 = arith.constant 0 : i32
    return %c0_i32, %c0_i32_0 : i32, i32
  }
  func.func @transform_10(%arg0: i32) -> (i32, i32) {
    %c0_i32 = arith.constant 0 : i32
    %c0_i32_0 = arith.constant 0 : i32
    %c0_i32_1 = arith.constant 0 : i32
    return %c0_i32, %c0_i32_0 : i32, i32
  }
  func.func @transform_11(%arg0: i32) -> (i32, i32, i32, i32) {
    %c0_i32 = arith.constant 0 : i32
    %c0_i32_0 = arith.constant 0 : i32
    %c0_i32_1 = arith.constant 0 : i32
    %c0_i32_2 = arith.constant 0 : i32
    return %arg0, %c0_i32, %c0_i32_0, %c0_i32_1 : i32, i32, i32, i32
  }
}

</mosaic_0001>

<llo_original>
// kernel: tpu_custom_call.1
$region0: #{tpu_custom_call.1}
  #allocation0 [shape = 'u32[]', space=smem, size = 0x4, offset = 0x4, fixed_abs, tag = 'smem constant byte address 0x4 - core index']
  #allocation1 [shape = 'u32[144,128]{1,0:T(1,128)}', space=vmem, size = 0x12000, scoped, tag = 'internal scratch']
  #allocation2 [shape = 'f32[18,18,32]{2,1,0:T(8,128)}', space=vmem, size = 0x36000, scoped, tag = 'scratch operand']
  %s0 = inlined_call_operand.vmem [shape: f32[2,16,16,8], index: 0, kind: input, shape index: {}]
  %s1 = inlined_call_operand.vmem [shape: bf16[8,32], index: 1, kind: input, shape index: {}]
  %s2 = inlined_call_operand.vmem [shape: f32[1,32], index: 2, kind: input, shape index: {}]
  %s3 = inlined_call_operand.vmem [shape: f32[3,3,32], index: 3, kind: input, shape index: {}]
  %s4 = inlined_call_operand.vmem [shape: f32[1,32], index: 4, kind: input, shape index: {}]
  %s5 = inlined_call_operand.vmem [shape: f32[32,2], index: 5, kind: input, shape index: {}]
  %s6 = inlined_call_operand.vmem [shape: f32[1,2], index: 6, kind: input, shape index: {}]
  %s7 = inlined_call_operand.vmem [shape: f32[2,32], index: 7, kind: input, shape index: {}]
  %s8 = inlined_call_operand.vmem [shape: f32[1,32], index: 8, kind: input, shape index: {}]
  %s9 = inlined_call_operand.vmem [shape: bf16[32,8], index: 9, kind: input, shape index: {}]
  %s10 = inlined_call_operand.vmem [shape: f32[1,8], index: 10, kind: input, shape index: {}]
  %s11 = inlined_call_operand.vmem [shape: f32[2,16,16,8], index: 11, kind: output, shape index: {}]
  %s12 = sld [smem:[#allocation0]]
  $region77: #{tpu_custom_call.1} parent=0
    _
  %s14 = ssub.s32 1, %s12
  %s15 = scalar_select 0, %s14, %s12
  loop: start=0, step=1, limit=4
  $region2: #{tpu_custom_call.1} parent=0 // loop_pre_header
    _
  $region3: #{tpu_custom_call.1} parent=0 // loop_header
    %s17 = sphi 0, %s21
    %p18 = scmp.ge.s32.totalorder %s17, 4
    %s27 = sphi 0, %s29
    %s30 = sphi 0, %s27
    %s31 = sphi 0, %s30
    %s47 = sphi 0, %s31
    %s51 = sphi 0, %s51
    %s53 = sphi 0, %s51
    %s54 = sphi 0, %s53
    %s68 = sphi 0, %s54
    %s72 = sphi 0, %s72
    %s74 = sphi 0, %s72
    %s75 = sphi 0, %s74
    %s89 = sphi 0, %s75
    %s93 = sphi 0, %s93
    %s95 = sphi 0, %s93
    %s96 = sphi 0, %s95
    %s110 = sphi 0, %s96
    %s114 = sphi 0, %s114
    %s116 = sphi 0, %s114
    %s117 = sphi 0, %s116
    %s131 = sphi 0, %s117
    %s135 = sphi 0, %s135
    %s137 = sphi 0, %s135
    %s138 = sphi 0, %s137
    %s152 = sphi 0, %s138
    %s156 = sphi 0, %s156
    %s158 = sphi 0, %s156
    %s159 = sphi 0, %s158
    %s173 = sphi 0, %s159
    %s177 = sphi 0, %s177
    %s179 = sphi 0, %s177
    %s180 = sphi 0, %s179
    %s194 = sphi 0, %s180
    %s198 = sphi 0, %s198
    %s200 = sphi 0, %s198
    %s201 = sphi 0, %s200
    %s215 = sphi 0, %s201
    %s219 = sphi 0, %s219
    %s221 = sphi 0, %s219
    %s222 = sphi 0, %s221
    %s236 = sphi 0, %s222
    %s240 = sphi 0, %s240
    %s242 = sphi 0, %s240
    %s243 = sphi 0, %s242
    %s257 = sphi 0, %s243
    %s263 = sphi 0, %s265
    %s266 = sphi 0, %s263
    %s267 = sphi 0, %s266
    %s283 = sphi 0, %s267
  $region4: #{tpu_custom_call.1} parent=0 // loop_header_branch
    %20 = sbr.rel (%p18) target = $region8
  $region5: #{tpu_custom_call.1} parent=0 // loop_body
    %s22 = ssub.s32 %s17, 1
    %s23 = ssub.s32 %s17, 2
    %s24 = sadd.s32 %s17, 1
    %s25 = ssub.s32 %s17, %s24
    %p26 = scmp.eq.s32.totalorder %s25, 0
    %s28 = sadd.s32 %s27, 1
    %s29 = scalar_select %p26, %s27, %s28
    %p32 = pneg %p26
    %p33 = scmp.eq.s32.totalorder %s17, 1
    %p34 = por %p32, %p33
    %p35 = scmp.ne.s32.totalorder %s27, %s30
    %p36 = scmp.eq.s32.totalorder %s17, 0
    %p37 = por %p35, %p36
    %p38 = scmp.ne.s32.totalorder %s27, %s30
    %p39 = scmp.eq.s32.totalorder %s22, 1
    %p40 = por %p38, %p39
    %p41 = scmp.ne.s32.totalorder %s30, %s31
    %p42 = scmp.eq.s32.totalorder %s22, 0
    %p43 = por %p41, %p42
    %p44 = scmp.ne.s32.totalorder %s30, %s31
    %p45 = scmp.eq.s32.totalorder %s23, 1
    %p46 = por %p44, %p45
    %p48 = scmp.ne.s32.totalorder %s31, %s47
    %p49 = scmp.eq.s32.totalorder %s23, 0
    %p50 = por %p48, %p49
    %s52 = sadd.s32 %s51, 1
    %p55 = scmp.eq.s32.totalorder %s17, 1
    %p56 = scmp.ne.s32.totalorder %s51, %s53
    %p57 = scmp.eq.s32.totalorder %s17, 0
    %p58 = por %p56, %p57
    %p59 = scmp.ne.s32.totalorder %s51, %s53
    %p60 = scmp.eq.s32.totalorder %s22, 1
    %p61 = por %p59, %p60
    %p62 = scmp.ne.s32.totalorder %s53, %s54
    %p63 = scmp.eq.s32.totalorder %s22, 0
    %p64 = por %p62, %p63
    %p65 = scmp.ne.s32.totalorder %s53, %s54
    %p66 = scmp.eq.s32.totalorder %s23, 1
    %p67 = por %p65, %p66
    %p69 = scmp.ne.s32.totalorder %s54, %s68
    %p70 = scmp.eq.s32.totalorder %s23, 0
    %p71 = por %p69, %p70
    %s73 = sadd.s32 %s72, 1
    %p76 = scmp.eq.s32.totalorder %s17, 1
    %p77 = scmp.ne.s32.totalorder %s72, %s74
    %p78 = scmp.eq.s32.totalorder %s17, 0
    %p79 = por %p77, %p78
    %p80 = scmp.ne.s32.totalorder %s72, %s74
    %p81 = scmp.eq.s32.totalorder %s22, 1
    %p82 = por %p80, %p81
    %p83 = scmp.ne.s32.totalorder %s74, %s75
    %p84 = scmp.eq.s32.totalorder %s22, 0
    %p85 = por %p83, %p84
    %p86 = scmp.ne.s32.totalorder %s74, %s75
    %p87 = scmp.eq.s32.totalorder %s23, 1
    %p88 = por %p86, %p87
    %p90 = scmp.ne.s32.totalorder %s75, %s89
    %p91 = scmp.eq.s32.totalorder %s23, 0
    %p92 = por %p90, %p91
    %s94 = sadd.s32 %s93, 1
    %p97 = scmp.eq.s32.totalorder %s17, 1
    %p98 = scmp.ne.s32.totalorder %s93, %s95
    %p99 = scmp.eq.s32.totalorder %s17, 0
    %p100 = por %p98, %p99
    %p101 = scmp.ne.s32.totalorder %s93, %s95
    %p102 = scmp.eq.s32.totalorder %s22, 1
    %p103 = por %p101, %p102
    %p104 = scmp.ne.s32.totalorder %s95, %s96
    %p105 = scmp.eq.s32.totalorder %s22, 0
    %p106 = por %p104, %p105
    %p107 = scmp.ne.s32.totalorder %s95, %s96
    %p108 = scmp.eq.s32.totalorder %s23, 1
    %p109 = por %p107, %p108
    %p111 = scmp.ne.s32.totalorder %s96, %s110
    %p112 = scmp.eq.s32.totalorder %s23, 0
    %p113 = por %p111, %p112
    %s115 = sadd.s32 %s114, 1
    %p118 = scmp.eq.s32.totalorder %s17, 1
    %p119 = scmp.ne.s32.totalorder %s114, %s116
    %p120 = scmp.eq.s32.totalorder %s17, 0
    %p121 = por %p119, %p120
    %p122 = scmp.ne.s32.totalorder %s114, %s116
    %p123 = scmp.eq.s32.totalorder %s22, 1
    %p124 = por %p122, %p123
    %p125 = scmp.ne.s32.totalorder %s116, %s117
    %p126 = scmp.eq.s32.totalorder %s22, 0
    %p127 = por %p125, %p126
    %p128 = scmp.ne.s32.totalorder %s116, %s117
    %p129 = scmp.eq.s32.totalorder %s23, 1
    %p130 = por %p128, %p129
    %p132 = scmp.ne.s32.totalorder %s117, %s131
    %p133 = scmp.eq.s32.totalorder %s23, 0
    %p134 = por %p132, %p133
    %s136 = sadd.s32 %s135, 1
    %p139 = scmp.eq.s32.totalorder %s17, 1
    %p140 = scmp.ne.s32.totalorder %s135, %s137
    %p141 = scmp.eq.s32.totalorder %s17, 0
    %p142 = por %p140, %p141
    %p143 = scmp.ne.s32.totalorder %s135, %s137
    %p144 = scmp.eq.s32.totalorder %s22, 1
    %p145 = por %p143, %p144
    %p146 = scmp.ne.s32.totalorder %s137, %s138
    %p147 = scmp.eq.s32.totalorder %s22, 0
    %p148 = por %p146, %p147
    %p149 = scmp.ne.s32.totalorder %s137, %s138
    %p150 = scmp.eq.s32.totalorder %s23, 1
    %p151 = por %p149, %p150
    %p153 = scmp.ne.s32.totalorder %s138, %s152
    %p154 = scmp.eq.s32.totalorder %s23, 0
    %p155 = por %p153, %p154
    %s157 = sadd.s32 %s156, 1
    %p160 = scmp.eq.s32.totalorder %s17, 1
    %p161 = scmp.ne.s32.totalorder %s156, %s158
    %p162 = scmp.eq.s32.totalorder %s17, 0
    %p163 = por %p161, %p162
    %p164 = scmp.ne.s32.totalorder %s156, %s158
    %p165 = scmp.eq.s32.totalorder %s22, 1
    %p166 = por %p164, %p165
    %p167 = scmp.ne.s32.totalorder %s158, %s159
    %p168 = scmp.eq.s32.totalorder %s22, 0
    %p169 = por %p167, %p168
    %p170 = scmp.ne.s32.totalorder %s158, %s159
    %p171 = scmp.eq.s32.totalorder %s23, 1
    %p172 = por %p170, %p171
    %p174 = scmp.ne.s32.totalorder %s159, %s173
    %p175 = scmp.eq.s32.totalorder %s23, 0
    %p176 = por %p174, %p175
    %s178 = sadd.s32 %s177, 1
    %p181 = scmp.eq.s32.totalorder %s17, 1
    %p182 = scmp.ne.s32.totalorder %s177, %s179
    %p183 = scmp.eq.s32.totalorder %s17, 0
    %p184 = por %p182, %p183
    %p185 = scmp.ne.s32.totalorder %s177, %s179
    %p186 = scmp.eq.s32.totalorder %s22, 1
    %p187 = por %p185, %p186
    %p188 = scmp.ne.s32.totalorder %s179, %s180
    %p189 = scmp.eq.s32.totalorder %s22, 0
    %p190 = por %p188, %p189
    %p191 = scmp.ne.s32.totalorder %s179, %s180
    %p192 = scmp.eq.s32.totalorder %s23, 1
    %p193 = por %p191, %p192
    %p195 = scmp.ne.s32.totalorder %s180, %s194
    %p196 = scmp.eq.s32.totalorder %s23, 0
    %p197 = por %p195, %p196
    %s199 = sadd.s32 %s198, 1
    %p202 = scmp.eq.s32.totalorder %s17, 1
    %p203 = scmp.ne.s32.totalorder %s198, %s200
    %p204 = scmp.eq.s32.totalorder %s17, 0
    %p205 = por %p203, %p204
    %p206 = scmp.ne.s32.totalorder %s198, %s200
    %p207 = scmp.eq.s32.totalorder %s22, 1
    %p208 = por %p206, %p207
    %p209 = scmp.ne.s32.totalorder %s200, %s201
    %p210 = scmp.eq.s32.totalorder %s22, 0
    %p211 = por %p209, %p210
    %p212 = scmp.ne.s32.totalorder %s200, %s201
    %p213 = scmp.eq.s32.totalorder %s23, 1
    %p214 = por %p212, %p213
    %p216 = scmp.ne.s32.totalorder %s201, %s215
    %p217 = scmp.eq.s32.totalorder %s23, 0
    %p218 = por %p216, %p217
    %s220 = sadd.s32 %s219, 1
    %p223 = scmp.eq.s32.totalorder %s17, 1
    %p224 = scmp.ne.s32.totalorder %s219, %s221
    %p225 = scmp.eq.s32.totalorder %s17, 0
    %p226 = por %p224, %p225
    %p227 = scmp.ne.s32.totalorder %s219, %s221
    %p228 = scmp.eq.s32.totalorder %s22, 1
    %p229 = por %p227, %p228
    %p230 = scmp.ne.s32.totalorder %s221, %s222
    %p231 = scmp.eq.s32.totalorder %s22, 0
    %p232 = por %p230, %p231
    %p233 = scmp.ne.s32.totalorder %s221, %s222
    %p234 = scmp.eq.s32.totalorder %s23, 1
    %p235 = por %p233, %p234
    %p237 = scmp.ne.s32.totalorder %s222, %s236
    %p238 = scmp.eq.s32.totalorder %s23, 0
    %p239 = por %p237, %p238
    %s241 = sadd.s32 %s240, 1
    %p244 = scmp.eq.s32.totalorder %s17, 1
    %p245 = scmp.ne.s32.totalorder %s240, %s242
    %p246 = scmp.eq.s32.totalorder %s17, 0
    %p247 = por %p245, %p246
    %p248 = scmp.ne.s32.totalorder %s240, %s242
    %p249 = scmp.eq.s32.totalorder %s22, 1
    %p250 = por %p248, %p249
    %p251 = scmp.ne.s32.totalorder %s242, %s243
    %p252 = scmp.eq.s32.totalorder %s22, 0
    %p253 = por %p251, %p252
    %p254 = scmp.ne.s32.totalorder %s242, %s243
    %p255 = scmp.eq.s32.totalorder %s23, 1
    %p256 = por %p254, %p255
    %p258 = scmp.ne.s32.totalorder %s243, %s257
    %p259 = scmp.eq.s32.totalorder %s23, 0
    %p260 = por %p258, %p259
    %s261 = ssub.s32 %s17, %s24
    %p262 = scmp.eq.s32.totalorder %s261, 0
    %s264 = sadd.s32 %s263, 1
    %s265 = scalar_select %p262, %s263, %s264
    %p268 = pneg %p262
    %p269 = scmp.eq.s32.totalorder %s17, 1
    %p270 = por %p268, %p269
    %p271 = scmp.ne.s32.totalorder %s263, %s266
    %p272 = scmp.eq.s32.totalorder %s17, 0
    %p273 = por %p271, %p272
    %p274 = scmp.ne.s32.totalorder %s263, %s266
    %p275 = scmp.eq.s32.totalorder %s22, 1
    %p276 = por %p274, %p275
    %p277 = scmp.ne.s32.totalorder %s266, %s267
    %p278 = scmp.eq.s32.totalorder %s22, 0
    %p279 = por %p277, %p278
    %p280 = scmp.ne.s32.totalorder %s266, %s267
    %p281 = scmp.eq.s32.totalorder %s23, 1
    %p282 = por %p280, %p281
    %p284 = scmp.ne.s32.totalorder %s267, %s283
    %p285 = scmp.eq.s32.totalorder %s23, 0
    %p286 = por %p284, %p285
    %p287 = scmp.le.s32.totalorder 1, %s17
    %p288 = scmp.lt.s32.totalorder %s17, 3
    %p289 = pnand %p287, %p288
    %p290 = pneg %p289
    // Predicated region
    $region9: #{tpu_custom_call.1} parent=5 // pred_check
      _
    $region10: #{tpu_custom_call.1} parent=5 // pred_check_branch
      %292 = sbr.rel (%p289) target = $region12
    $region11: #{tpu_custom_call.1} parent=5 // pred_region
      %s293 = ssub.s32 %s17, 1
      // Predicated region
      $region13: #{tpu_custom_call.1} parent=11 // pred_check
        %p294 = pneg %p64
      $region14: #{tpu_custom_call.1} parent=11 // pred_check_branch
        %296 = sbr.rel (%p294) target = $region16
      $region15: #{tpu_custom_call.1} parent=11 // pred_region
        _
      $region16: #{tpu_custom_call.1} parent=11 // pred_fallthru
        _
      // Predicated region
      $region17: #{tpu_custom_call.1} parent=11 // pred_check
        %p297 = pneg %p85
      $region18: #{tpu_custom_call.1} parent=11 // pred_check_branch
        %299 = sbr.rel (%p297) target = $region20
      $region19: #{tpu_custom_call.1} parent=11 // pred_region
        _
      $region20: #{tpu_custom_call.1} parent=11 // pred_fallthru
        _
      // Predicated region
      $region21: #{tpu_custom_call.1} parent=11 // pred_check
        %p300 = pneg %p106
      $region22: #{tpu_custom_call.1} parent=11 // pred_check_branch
        %302 = sbr.rel (%p300) target = $region24
      $region23: #{tpu_custom_call.1} parent=11 // pred_region
        _
      $region24: #{tpu_custom_call.1} parent=11 // pred_fallthru
        _
      // Predicated region
      $region25: #{tpu_custom_call.1} parent=11 // pred_check
        %p303 = pneg %p127
      $region26: #{tpu_custom_call.1} parent=11 // pred_check_branch
        %305 = sbr.rel (%p303) target = $region28
      $region27: #{tpu_custom_call.1} parent=11 // pred_region
        _
      $region28: #{tpu_custom_call.1} parent=11 // pred_fallthru
        _
      // Predicated region
      $region29: #{tpu_custom_call.1} parent=11 // pred_check
        %p306 = pneg %p148
      $region30: #{tpu_custom_call.1} parent=11 // pred_check_branch
        %308 = sbr.rel (%p306) target = $region32
      $region31: #{tpu_custom_call.1} parent=11 // pred_region
        _
      $region32: #{tpu_custom_call.1} parent=11 // pred_fallthru
        _
      // Predicated region
      $region33: #{tpu_custom_call.1} parent=11 // pred_check
        %p309 = pneg %p169
      $region34: #{tpu_custom_call.1} parent=11 // pred_check_branch
        %311 = sbr.rel (%p309) target = $region36
      $region35: #{tpu_custom_call.1} parent=11 // pred_region
        _
      $region36: #{tpu_custom_call.1} parent=11 // pred_fallthru
        _
      // Predicated region
      $region37: #{tpu_custom_call.1} parent=11 // pred_check
        %p312 = pneg %p190
      $region38: #{tpu_custom_call.1} parent=11 // pred_check_branch
        %314 = sbr.rel (%p312) target = $region40
      $region39: #{tpu_custom_call.1} parent=11 // pred_region
        _
      $region40: #{tpu_custom_call.1} parent=11 // pred_fallthru
        _
      // Predicated region
      $region41: #{tpu_custom_call.1} parent=11 // pred_check
        %p315 = pneg %p211
      $region42: #{tpu_custom_call.1} parent=11 // pred_check_branch
        %317 = sbr.rel (%p315) target = $region44
      $region43: #{tpu_custom_call.1} parent=11 // pred_region
        _
      $region44: #{tpu_custom_call.1} parent=11 // pred_fallthru
        _
      // Predicated region
      $region45: #{tpu_custom_call.1} parent=11 // pred_check
        %p318 = pneg %p232
      $region46: #{tpu_custom_call.1} parent=11 // pred_check_branch
        %320 = sbr.rel (%p318) target = $region48
      $region47: #{tpu_custom_call.1} parent=11 // pred_region
        _
      $region48: #{tpu_custom_call.1} parent=11 // pred_fallthru
        _
      // Predicated region
      $region49: #{tpu_custom_call.1} parent=11 // pred_check
        %p321 = pneg %p253
      $region50: #{tpu_custom_call.1} parent=11 // pred_check_branch
        %323 = sbr.rel (%p321) target = $region52
      $region51: #{tpu_custom_call.1} parent=11 // pred_region
        _
      $region52: #{tpu_custom_call.1} parent=11 // pred_fallthru
        _
    $region12: #{tpu_custom_call.1} parent=5 // pred_fallthru
      _
    %p324 = scmp.lt.s32.totalorder %s17, 2
    // Predicated region
    $region53: #{tpu_custom_call.1} parent=5 // pred_check
      %p325 = pneg %p324
    $region54: #{tpu_custom_call.1} parent=5 // pred_check_branch
      %327 = sbr.rel (%p325) target = $region56
    $region55: #{tpu_custom_call.1} parent=5 // pred_region
      // Predicated region
      $region57: #{tpu_custom_call.1} parent=55 // pred_check
        %p328 = pneg %p37
      $region58: #{tpu_custom_call.1} parent=55 // pred_check_branch
        %330 = sbr.rel (%p328) target = $region60
      $region59: #{tpu_custom_call.1} parent=55 // pred_region
        %p331 = scmp.lt.s32.totalorder %s17, 1
        %s332 = scalar_select %p331, %s17, 1
        %s333 = smul.addr %s332, 32
        %s334 = smul.addr %s333, 8
        %s335 = scalar_lea.vmem %s0, %s334
      $region60: #{tpu_custom_call.1} parent=55 // pred_fallthru
        _
    $region56: #{tpu_custom_call.1} parent=5 // pred_fallthru
      _
    %p336 = scmp.le.s32.totalorder 1, %s17
    %p337 = scmp.lt.s32.totalorder %s17, 3
    %p338 = pnand %p336, %p337
    %p339 = pneg %p338
    // Predicated region
    $region61: #{tpu_custom_call.1} parent=5 // pred_check
      _
    $region62: #{tpu_custom_call.1} parent=5 // pred_check_branch
      %341 = sbr.rel (%p338) target = $region64
    $region63: #{tpu_custom_call.1} parent=5 // pred_region
      %s342 = ssub.s32 %s17, 1
      %p343 = scmp.lt.s32.totalorder %s22, 1
      %s344 = scalar_select %p343, %s22, 1
      %s345 = smul.addr %s344, 32
      %s346 = smul.addr %s345, 8
      %s347 = scalar_lea.vmem %s0, %s346
      %p348 = pneg %p43
      %p349 = pneg %p40
      %p350 = pneg %p64
      %p351 = pneg %p61
      %p352 = pneg %p85
      %p353 = pneg %p82
      %p354 = pneg %p106
      %p355 = pneg %p103
      %p356 = pneg %p127
      %p357 = pneg %p124
      %p358 = pneg %p148
      %p359 = pneg %p145
      %p360 = pneg %p169
      %p361 = pneg %p166
      %p362 = pneg %p190
      %p363 = pneg %p187
      %p364 = pneg %p211
      %p365 = pneg %p208
      %p366 = pneg %p232
      %p367 = pneg %p229
      %p368 = pneg %p253
      %p369 = pneg %p250
      %p370 = pneg %p279
      %p371 = pneg %p276
      %p372 = scmp.lt.s32.totalorder %s22, 1
      %s373 = scalar_select %p372, %s22, 1
      %s374 = smul.addr %s373, 32
      %s375 = smul.addr %s374, 8
      %s376 = scalar_lea.vmem %s11, %s375
      %p377 = scmp.lt.s32.totalorder %s22, 1
      %s378 = scalar_select %p377, %s22, 1
      %s379 = smul.addr %s378, 32
      %s380 = smul.addr %s379, 8
      %s381 = scalar_lea.vmem %s0, %s380
      %p382 = scmp.lt.s32.totalorder %s22, 1
      %s383 = scalar_select %p382, %s22, 1
      %s384 = smul.addr %s383, 32
      %s385 = smul.addr %s384, 8
      %s386 = scalar_lea.vmem %s11, %s385
      %v388 = vld [vmem:[%s381] sm:$0xff]
      %v389 = vld [vmem:[%s381 + $0x8] sm:$0xff]
      %v390 = vld [vmem:[%s381 + $0x10] sm:$0xff]
      %v391 = vld [vmem:[%s381 + $0x18] sm:$0xff]
      %v392 = vld [vmem:[%s381 + $0x20] sm:$0xff]
      %v393 = vld [vmem:[%s381 + $0x28] sm:$0xff]
      %v394 = vld [vmem:[%s381 + $0x30] sm:$0xff]
      %v395 = vld [vmem:[%s381 + $0x38] sm:$0xff]
      %v396 = vld [vmem:[%s381 + $0x40] sm:$0xff]
      %v397 = vld [vmem:[%s381 + $0x48] sm:$0xff]
      %v398 = vld [vmem:[%s381 + $0x50] sm:$0xff]
      %v399 = vld [vmem:[%s381 + $0x58] sm:$0xff]
      %v400 = vld [vmem:[%s381 + $0x60] sm:$0xff]
      %v401 = vld [vmem:[%s381 + $0x68] sm:$0xff]
      %v402 = vld [vmem:[%s381 + $0x70] sm:$0xff]
      %v403 = vld [vmem:[%s381 + $0x78] sm:$0xff]
      %v404 = vld [vmem:[%s381 + $0x80] sm:$0xff]
      %v405 = vld [vmem:[%s381 + $0x88] sm:$0xff]
      %v406 = vld [vmem:[%s381 + $0x90] sm:$0xff]
      %v407 = vld [vmem:[%s381 + $0x98] sm:$0xff]
      %v408 = vld [vmem:[%s381 + $0xa0] sm:$0xff]
      %v409 = vld [vmem:[%s381 + $0xa8] sm:$0xff]
      %v410 = vld [vmem:[%s381 + $0xb0] sm:$0xff]
      %v411 = vld [vmem:[%s381 + $0xb8] sm:$0xff]
      %v412 = vld [vmem:[%s381 + $0xc0] sm:$0xff]
      %v413 = vld [vmem:[%s381 + $0xc8] sm:$0xff]
      %v414 = vld [vmem:[%s381 + $0xd0] sm:$0xff]
      %v415 = vld [vmem:[%s381 + $0xd8] sm:$0xff]
      %v416 = vld [vmem:[%s381 + $0xe0] sm:$0xff]
      %v417 = vld [vmem:[%s381 + $0xe8] sm:$0xff]
      %v418 = vld [vmem:[%s381 + $0xf0] sm:$0xff]
      %v419 = vld [vmem:[%s381 + $0xf8] sm:$0xff]
      %v420 = vpack.c.bf16 %v389, %v388
      %v421 = vpack.c.bf16 %v391, %v390
      %v422 = vpack.c.bf16 %v393, %v392
      %v423 = vpack.c.bf16 %v395, %v394
      %v424 = vpack.c.bf16 %v397, %v396
      %v425 = vpack.c.bf16 %v399, %v398
      %v426 = vpack.c.bf16 %v401, %v400
      %v427 = vpack.c.bf16 %v403, %v402
      %v428 = vpack.c.bf16 %v405, %v404
      %v429 = vpack.c.bf16 %v407, %v406
      %v430 = vpack.c.bf16 %v409, %v408
      %v431 = vpack.c.bf16 %v411, %v410
      %v432 = vpack.c.bf16 %v413, %v412
      %v433 = vpack.c.bf16 %v415, %v414
      %v434 = vpack.c.bf16 %v417, %v416
      %v435 = vpack.c.bf16 %v419, %v418
      %v436 = vld [vmem:[%s1] sm:$0xf]
      %v437 = vld [vmem:[%s2] sm:$0x1]
      %v439 = vlaneseq
      %v440 = vshrl.u32 %v439, 7
      %v441 = vsub.s32 0, %v440
      %v442 = vrot.slane %v437, %v441
      %vm444 = vcmask 64512
      %v446 = vsel %vm444, %v420, 0
      %v449 = vsel %vm444, %v421, 0
      %v452 = vsel %vm444, %v422, 0
      %v455 = vsel %vm444, %v423, 0
      %v458 = vsel %vm444, %v424, 0
      %v461 = vsel %vm444, %v425, 0
      %v464 = vsel %vm444, %v426, 0
      %v467 = vsel %vm444, %v427, 0
      %v470 = vsel %vm444, %v428, 0
      %v473 = vsel %vm444, %v429, 0
      %v476 = vsel %vm444, %v430, 0
      %v479 = vsel %vm444, %v431, 0
      %v482 = vsel %vm444, %v432, 0
      %v485 = vsel %vm444, %v433, 0
      %v488 = vsel %vm444, %v434, 0
      %v491 = vsel %vm444, %v435, 0
      %vm493 = vcmask 1043456
      %v495 = vsel %vm493, %v436, 0
      %497 = vmatprep.subr.bf16.mxu0 0
      %498 = vmatpush1.bf16.msra.mxu0 0
      %499 = vmatprep.subr.bf16.mxu0 0
      %500 = vmatpush1.bf16.msra.mxu0 0
      %501 = vmatprep.subr.bf16.mxu0 0
      %502 = vmatpush1.bf16.msra.mxu0 0
      %503 = vmatprep.subr.bf16.mxu0 0
      %504 = vmatpush1.bf16.msra.mxu0 0
      %505 = vmatprep.subr.bf16.mxu0 0
      %506 = vmatpush1.bf16.msra.mxu0 0
      %507 = vmatprep.subr.bf16.mxu0 0
      %508 = vmatpush1.bf16.msra.mxu0 0
      %509 = vmatprep.subr.bf16.mxu0 0
      %510 = vmatpush1.bf16.msra.mxu0 0
      %511 = vmatprep.subr.bf16.mxu0 0
      %512 = vmatpush1.bf16.msra.mxu0 %v495
      %513 = vmatprep.subr.bf16.mxu0 0
      %514 = vmatpush2.bf16.msra.mxu0 0
      %515 = vmatprep.subr.bf16.mxu0 0
      %516 = vmatpush2.bf16.msra.mxu0 0
      %517 = vmatprep.subr.bf16.mxu0 0
      %518 = vmatpush2.bf16.msra.mxu0 0
      %519 = vmatprep.subr.bf16.mxu0 0
      %520 = vmatpush2.bf16.msra.mxu0 0
      %521 = vmatprep.subr.bf16.mxu0 0
      %522 = vmatpush2.bf16.msra.mxu0 0
      %523 = vmatprep.subr.bf16.mxu0 0
      %524 = vmatpush2.bf16.msra.mxu0 0
      %525 = vmatprep.subr.bf16.mxu0 0
      %526 = vmatpush2.bf16.msra.mxu0 0
      %527 = vmatprep.subr.bf16.mxu0 0
      %528 = vmatpush2.bf16.msra.mxu0 0
      %529 = vmatprep.mubr.bf16.mxu0 0
      %530 = vmatmul.mubr.bf16.gmra.mxu0 %v446
      %v531 = vpop.f32.mrf.mxu0
      %v532 = vadd.f32 %v442, %v531
      %v533 = vpop.f32.mrf.mxu0
      %v534 = vpop.f32.mrf.mxu0
      %v535 = vadd.f32 %v442, %v534
      %v536 = vpop.f32.mrf.mxu0
      %537 = vmatprep.mubr.bf16.mxu0 0
      %538 = vmatmul.mubr.bf16.gmra.mxu0 %v449
      %v539 = vpop.f32.mrf.mxu0
      %v540 = vadd.f32 %v442, %v539
      %v541 = vpop.f32.mrf.mxu0
      %v542 = vpop.f32.mrf.mxu0
      %v543 = vadd.f32 %v442, %v542
      %v544 = vpop.f32.mrf.mxu0
      %545 = vmatprep.mubr.bf16.mxu0 0
      %546 = vmatmul.mubr.bf16.gmra.mxu0 %v452
      %v547 = vpop.f32.mrf.mxu0
      %v548 = vadd.f32 %v442, %v547
      %v549 = vpop.f32.mrf.mxu0
      %v550 = vpop.f32.mrf.mxu0
      %v551 = vadd.f32 %v442, %v550
      %v552 = vpop.f32.mrf.mxu0
      %553 = vmatprep.mubr.bf16.mxu0 0
      %554 = vmatmul.mubr.bf16.gmra.mxu0 %v455
      %v555 = vpop.f32.mrf.mxu0
      %v556 = vadd.f32 %v442, %v555
      %v557 = vpop.f32.mrf.mxu0
      %v558 = vpop.f32.mrf.mxu0
      %v559 = vadd.f32 %v442, %v558
      %v560 = vpop.f32.mrf.mxu0
      %561 = vmatprep.mubr.bf16.mxu0 0
      %562 = vmatmul.mubr.bf16.gmra.mxu0 %v458
      %v563 = vpop.f32.mrf.mxu0
      %v564 = vadd.f32 %v442, %v563
      %v565 = vpop.f32.mrf.mxu0
      %v566 = vpop.f32.mrf.mxu0
      %v567 = vadd.f32 %v442, %v566
      %v568 = vpop.f32.mrf.mxu0
      %569 = vmatprep.mubr.bf16.mxu0 0
      %570 = vmatmul.mubr.bf16.gmra.mxu0 %v461
      %v571 = vpop.f32.mrf.mxu0
      %v572 = vadd.f32 %v442, %v571
      %v573 = vpop.f32.mrf.mxu0
      %v574 = vpop.f32.mrf.mxu0
      %v575 = vadd.f32 %v442, %v574
      %v576 = vpop.f32.mrf.mxu0
      %577 = vmatprep.mubr.bf16.mxu0 0
      %578 = vmatmul.mubr.bf16.gmra.mxu0 %v464
      %v579 = vpop.f32.mrf.mxu0
      %v580 = vadd.f32 %v442, %v579
      %v581 = vpop.f32.mrf.mxu0
      %v582 = vpop.f32.mrf.mxu0
      %v583 = vadd.f32 %v442, %v582
      %v584 = vpop.f32.mrf.mxu0
      %585 = vmatprep.mubr.bf16.mxu0 0
      %586 = vmatmul.mubr.bf16.gmra.mxu0 %v467
      %v587 = vpop.f32.mrf.mxu0
      %v588 = vadd.f32 %v442, %v587
      %v589 = vpop.f32.mrf.mxu0
      %v590 = vpop.f32.mrf.mxu0
      %v591 = vadd.f32 %v442, %v590
      %v592 = vpop.f32.mrf.mxu0
      %593 = vmatprep.mubr.bf16.mxu0 0
      %594 = vmatmul.mubr.bf16.gmra.mxu0 %v470
      %v595 = vpop.f32.mrf.mxu0
      %v596 = vadd.f32 %v442, %v595
      %v597 = vpop.f32.mrf.mxu0
      %v598 = vpop.f32.mrf.mxu0
      %v599 = vadd.f32 %v442, %v598
      %v600 = vpop.f32.mrf.mxu0
      %601 = vmatprep.mubr.bf16.mxu0 0
      %602 = vmatmul.mubr.bf16.gmra.mxu0 %v473
      %v603 = vpop.f32.mrf.mxu0
      %v604 = vadd.f32 %v442, %v603
      %v605 = vpop.f32.mrf.mxu0
      %v606 = vpop.f32.mrf.mxu0
      %v607 = vadd.f32 %v442, %v606
      %v608 = vpop.f32.mrf.mxu0
      %609 = vmatprep.mubr.bf16.mxu0 0
      %610 = vmatmul.mubr.bf16.gmra.mxu0 %v476
      %v611 = vpop.f32.mrf.mxu0
      %v612 = vadd.f32 %v442, %v611
      %v613 = vpop.f32.mrf.mxu0
      %v614 = vpop.f32.mrf.mxu0
      %v615 = vadd.f32 %v442, %v614
      %v616 = vpop.f32.mrf.mxu0
      %617 = vmatprep.mubr.bf16.mxu0 0
      %618 = vmatmul.mubr.bf16.gmra.mxu0 %v479
      %v619 = vpop.f32.mrf.mxu0
      %v620 = vadd.f32 %v442, %v619
      %v621 = vpop.f32.mrf.mxu0
      %v622 = vpop.f32.mrf.mxu0
      %v623 = vadd.f32 %v442, %v622
      %v624 = vpop.f32.mrf.mxu0
      %625 = vmatprep.mubr.bf16.mxu0 0
      %626 = vmatmul.mubr.bf16.gmra.mxu0 %v482
      %v627 = vpop.f32.mrf.mxu0
      %v628 = vadd.f32 %v442, %v627
      %v629 = vpop.f32.mrf.mxu0
      %v630 = vpop.f32.mrf.mxu0
      %v631 = vadd.f32 %v442, %v630
      %v632 = vpop.f32.mrf.mxu0
      %633 = vmatprep.mubr.bf16.mxu0 0
      %634 = vmatmul.mubr.bf16.gmra.mxu0 %v485
      %v635 = vpop.f32.mrf.mxu0
      %v636 = vadd.f32 %v442, %v635
      %v637 = vpop.f32.mrf.mxu0
      %v638 = vpop.f32.mrf.mxu0
      %v639 = vadd.f32 %v442, %v638
      %v640 = vpop.f32.mrf.mxu0
      %641 = vmatprep.mubr.bf16.mxu0 0
      %642 = vmatmul.mubr.bf16.gmra.mxu0 %v488
      %v643 = vpop.f32.mrf.mxu0
      %v644 = vadd.f32 %v442, %v643
      %v645 = vpop.f32.mrf.mxu0
      %v646 = vpop.f32.mrf.mxu0
      %v647 = vadd.f32 %v442, %v646
      %v648 = vpop.f32.mrf.mxu0
      %649 = vmatprep.mubr.bf16.mxu0 0
      %650 = vmatmul.mubr.bf16.gmra.mxu0 %v491
      %v651 = vpop.f32.mrf.mxu0
      %v652 = vadd.f32 %v442, %v651
      %v653 = vpop.f32.mrf.mxu0
      %v654 = vpop.f32.mrf.mxu0
      %v655 = vadd.f32 %v442, %v654
      %v656 = vpop.f32.mrf.mxu0
      %657 = vdwg.mxu0
      %v658 = vmul.f32 %v532, 0.5
      %v659 = vmul.f32 %v535, 0.5
      %v660 = vmul.f32 %v540, 0.5
      %v661 = vmul.f32 %v543, 0.5
      %v662 = vmul.f32 %v548, 0.5
      %v663 = vmul.f32 %v551, 0.5
      %v664 = vmul.f32 %v556, 0.5
      %v665 = vmul.f32 %v559, 0.5
      %v666 = vmul.f32 %v564, 0.5
      %v667 = vmul.f32 %v567, 0.5
      %v668 = vmul.f32 %v572, 0.5
      %v669 = vmul.f32 %v575, 0.5
      %v670 = vmul.f32 %v580, 0.5
      %v671 = vmul.f32 %v583, 0.5
      %v672 = vmul.f32 %v588, 0.5
      %v673 = vmul.f32 %v591, 0.5
      %v674 = vmul.f32 %v596, 0.5
      %v675 = vmul.f32 %v599, 0.5
      %v676 = vmul.f32 %v604, 0.5
      %v677 = vmul.f32 %v607, 0.5
      %v678 = vmul.f32 %v612, 0.5
      %v679 = vmul.f32 %v615, 0.5
      %v680 = vmul.f32 %v620, 0.5
      %v681 = vmul.f32 %v623, 0.5
      %v682 = vmul.f32 %v628, 0.5
      %v683 = vmul.f32 %v631, 0.5
      %v684 = vmul.f32 %v636, 0.5
      %v685 = vmul.f32 %v639, 0.5
      %v686 = vmul.f32 %v644, 0.5
      %v687 = vmul.f32 %v647, 0.5
      %v688 = vmul.f32 %v652, 0.5
      %v689 = vmul.f32 %v655, 0.5
      %v690 = vtanh.pop %v658
      %v691 = vtanh.pop %v659
      %v692 = vtanh.pop %v660
      %v693 = vtanh.pop %v661
      %v694 = vtanh.pop %v662
      %v695 = vtanh.pop %v663
      %v696 = vtanh.pop %v664
      %v697 = vtanh.pop %v665
      %v698 = vtanh.pop %v666
      %v699 = vtanh.pop %v667
      %v700 = vtanh.pop %v668
      %v701 = vtanh.pop %v669
      %v702 = vtanh.pop %v670
      %v703 = vtanh.pop %v671
      %v704 = vtanh.pop %v672
      %v705 = vtanh.pop %v673
      %v706 = vtanh.pop %v674
      %v707 = vtanh.pop %v675
      %v708 = vtanh.pop %v676
      %v709 = vtanh.pop %v677
      %v710 = vtanh.pop %v678
      %v711 = vtanh.pop %v679
      %v712 = vtanh.pop %v680
      %v713 = vtanh.pop %v681
      %v714 = vtanh.pop %v682
      %v715 = vtanh.pop %v683
      %v716 = vtanh.pop %v684
      %v717 = vtanh.pop %v685
      %v718 = vtanh.pop %v686
      %v719 = vtanh.pop %v687
      %v720 = vtanh.pop %v688
      %v721 = vtanh.pop %v689
      %v722 = vadd.f32 %v690, 1.0
      %v723 = vadd.f32 %v691, 1.0
      %v724 = vadd.f32 %v692, 1.0
      %v725 = vadd.f32 %v693, 1.0
      %v726 = vadd.f32 %v694, 1.0
      %v727 = vadd.f32 %v695, 1.0
      %v728 = vadd.f32 %v696, 1.0
      %v729 = vadd.f32 %v697, 1.0
      %v730 = vadd.f32 %v698, 1.0
      %v731 = vadd.f32 %v699, 1.0
      %v732 = vadd.f32 %v700, 1.0
      %v733 = vadd.f32 %v701, 1.0
      %v734 = vadd.f32 %v702, 1.0
      %v735 = vadd.f32 %v703, 1.0
      %v736 = vadd.f32 %v704, 1.0
      %v737 = vadd.f32 %v705, 1.0
      %v738 = vadd.f32 %v706, 1.0
      %v739 = vadd.f32 %v707, 1.0
      %v740 = vadd.f32 %v708, 1.0
      %v741 = vadd.f32 %v709, 1.0
      %v742 = vadd.f32 %v710, 1.0
      %v743 = vadd.f32 %v711, 1.0
      %v744 = vadd.f32 %v712, 1.0
      %v745 = vadd.f32 %v713, 1.0
      %v746 = vadd.f32 %v714, 1.0
      %v747 = vadd.f32 %v715, 1.0
      %v748 = vadd.f32 %v716, 1.0
      %v749 = vadd.f32 %v717, 1.0
      %v750 = vadd.f32 %v718, 1.0
      %v751 = vadd.f32 %v719, 1.0
      %v752 = vadd.f32 %v720, 1.0
      %v753 = vadd.f32 %v721, 1.0
      %v754 = vmul.f32 %v722, 0.5
      %v755 = vmul.f32 %v723, 0.5
      %v756 = vmul.f32 %v724, 0.5
      %v757 = vmul.f32 %v725, 0.5
      %v758 = vmul.f32 %v726, 0.5
      %v759 = vmul.f32 %v727, 0.5
      %v760 = vmul.f32 %v728, 0.5
      %v761 = vmul.f32 %v729, 0.5
      %v762 = vmul.f32 %v730, 0.5
      %v763 = vmul.f32 %v731, 0.5
      %v764 = vmul.f32 %v732, 0.5
      %v765 = vmul.f32 %v733, 0.5
      %v766 = vmul.f32 %v734, 0.5
      %v767 = vmul.f32 %v735, 0.5
      %v768 = vmul.f32 %v736, 0.5
      %v769 = vmul.f32 %v737, 0.5
      %v770 = vmul.f32 %v738, 0.5
      %v771 = vmul.f32 %v739, 0.5
      %v772 = vmul.f32 %v740, 0.5
      %v773 = vmul.f32 %v741, 0.5
      %v774 = vmul.f32 %v742, 0.5
      %v775 = vmul.f32 %v743, 0.5
      %v776 = vmul.f32 %v744, 0.5
      %v777 = vmul.f32 %v745, 0.5
      %v778 = vmul.f32 %v746, 0.5
      %v779 = vmul.f32 %v747, 0.5
      %v780 = vmul.f32 %v748, 0.5
      %v781 = vmul.f32 %v749, 0.5
      %v782 = vmul.f32 %v750, 0.5
      %v783 = vmul.f32 %v751, 0.5
      %v784 = vmul.f32 %v752, 0.5
      %v785 = vmul.f32 %v753, 0.5
      %v786 = vmul.f32 %v532, %v754
      %v787 = vmul.f32 %v535, %v755
      %v788 = vmul.f32 %v540, %v756
      %v789 = vmul.f32 %v543, %v757
      %v790 = vmul.f32 %v548, %v758
      %v791 = vmul.f32 %v551, %v759
      %v792 = vmul.f32 %v556, %v760
      %v793 = vmul.f32 %v559, %v761
      %v794 = vmul.f32 %v564, %v762
      %v795 = vmul.f32 %v567, %v763
      %v796 = vmul.f32 %v572, %v764
      %v797 = vmul.f32 %v575, %v765
      %v798 = vmul.f32 %v580, %v766
      %v799 = vmul.f32 %v583, %v767
      %v800 = vmul.f32 %v588, %v768
      %v801 = vmul.f32 %v591, %v769
      %v802 = vmul.f32 %v596, %v770
      %v803 = vmul.f32 %v599, %v771
      %v804 = vmul.f32 %v604, %v772
      %v805 = vmul.f32 %v607, %v773
      %v806 = vmul.f32 %v612, %v774
      %v807 = vmul.f32 %v615, %v775
      %v808 = vmul.f32 %v620, %v776
      %v809 = vmul.f32 %v623, %v777
      %v810 = vmul.f32 %v628, %v778
      %v811 = vmul.f32 %v631, %v779
      %v812 = vmul.f32 %v636, %v780
      %v813 = vmul.f32 %v639, %v781
      %v814 = vmul.f32 %v644, %v782
      %v815 = vmul.f32 %v647, %v783
      %v816 = vmul.f32 %v652, %v784
      %v817 = vmul.f32 %v655, %v785
      %vm818 = vcmask 261120
      %819 = vst.msk [vmem:[#allocation2] sm:$0xff] %vm818, 0.0
      %820 = vst.msk [vmem:[#allocation2 + $0x8] sm:$0xff] %vm818, 0.0
      %vm821 = vcmask 254976
      %822 = vst.msk [vmem:[#allocation2 + $0x10] sm:$0x3] %vm821, 0.0
      %823 = vst.msk [vmem:[#allocation2 + $0x18] sm:$0xff] %vm818, 0.0
      %824 = vst.msk [vmem:[#allocation2 + $0x20] sm:$0xff] %vm818, 0.0
      %825 = vst.msk [vmem:[#allocation2 + $0x28] sm:$0x3] %vm821, 0.0
      %826 = vst.msk [vmem:[#allocation2 + $0x30] sm:$0xff] %vm818, 0.0
      %827 = vst.msk [vmem:[#allocation2 + $0x38] sm:$0xff] %vm818, 0.0
      %828 = vst.msk [vmem:[#allocation2 + $0x40] sm:$0x3] %vm821, 0.0
      %829 = vst.msk [vmem:[#allocation2 + $0x48] sm:$0xff] %vm818, 0.0
      %830 = vst.msk [vmem:[#allocation2 + $0x50] sm:$0xff] %vm818, 0.0
      %831 = vst.msk [vmem:[#allocation2 + $0x58] sm:$0x3] %vm821, 0.0
      %832 = vst.msk [vmem:[#allocation2 + $0x60] sm:$0xff] %vm818, 0.0
      %833 = vst.msk [vmem:[#allocation2 + $0x68] sm:$0xff] %vm818, 0.0
      %834 = vst.msk [vmem:[#allocation2 + $0x70] sm:$0x3] %vm821, 0.0
      %835 = vst.msk [vmem:[#allocation2 + $0x78] sm:$0xff] %vm818, 0.0
      %836 = vst.msk [vmem:[#allocation2 + $0x80] sm:$0xff] %vm818, 0.0
      %837 = vst.msk [vmem:[#allocation2 + $0x88] sm:$0x3] %vm821, 0.0
      %838 = vst.msk [vmem:[#allocation2 + $0x90] sm:$0xff] %vm818, 0.0
      %839 = vst.msk [vmem:[#allocation2 + $0x98] sm:$0xff] %vm818, 0.0
      %840 = vst.msk [vmem:[#allocation2 + $0xa0] sm:$0x3] %vm821, 0.0
      %841 = vst.msk [vmem:[#allocation2 + $0xa8] sm:$0xff] %vm818, 0.0
      %842 = vst.msk [vmem:[#allocation2 + $0xb0] sm:$0xff] %vm818, 0.0
      %843 = vst.msk [vmem:[#allocation2 + $0xb8] sm:$0x3] %vm821, 0.0
      %844 = vst.msk [vmem:[#allocation2 + $0xc0] sm:$0xff] %vm818, 0.0
      %845 = vst.msk [vmem:[#allocation2 + $0xc8] sm:$0xff] %vm818, 0.0
      %846 = vst.msk [vmem:[#allocation2 + $0xd0] sm:$0x3] %vm821, 0.0
      %847 = vst.msk [vmem:[#allocation2 + $0xd8] sm:$0xff] %vm818, 0.0
      %848 = vst.msk [vmem:[#allocation2 + $0xe0] sm:$0xff] %vm818, 0.0
      %849 = vst.msk [vmem:[#allocation2 + $0xe8] sm:$0x3] %vm821, 0.0
      %850 = vst.msk [vmem:[#allocation2 + $0xf0] sm:$0xff] %vm818, 0.0
      %851 = vst.msk [vmem:[#allocation2 + $0xf8] sm:$0xff] %vm818, 0.0
      %852 = vst.msk [vmem:[#allocation2 + $0x100] sm:$0x3] %vm821, 0.0
      %853 = vst.msk [vmem:[#allocation2 + $0x108] sm:$0xff] %vm818, 0.0
      %854 = vst.msk [vmem:[#allocation2 + $0x110] sm:$0xff] %vm818, 0.0
      %855 = vst.msk [vmem:[#allocation2 + $0x118] sm:$0x3] %vm821, 0.0
      %856 = vst.msk [vmem:[#allocation2 + $0x120] sm:$0xff] %vm818, 0.0
      %857 = vst.msk [vmem:[#allocation2 + $0x128] sm:$0xff] %vm818, 0.0
      %858 = vst.msk [vmem:[#allocation2 + $0x130] sm:$0x3] %vm821, 0.0
      %859 = vst.msk [vmem:[#allocation2 + $0x138] sm:$0xff] %vm818, 0.0
      %860 = vst.msk [vmem:[#allocation2 + $0x140] sm:$0xff] %vm818, 0.0
      %861 = vst.msk [vmem:[#allocation2 + $0x148] sm:$0x3] %vm821, 0.0
      %862 = vst.msk [vmem:[#allocation2 + $0x150] sm:$0xff] %vm818, 0.0
      %863 = vst.msk [vmem:[#allocation2 + $0x158] sm:$0xff] %vm818, 0.0
      %864 = vst.msk [vmem:[#allocation2 + $0x160] sm:$0x3] %vm821, 0.0
      %865 = vst.msk [vmem:[#allocation2 + $0x168] sm:$0xff] %vm818, 0.0
      %866 = vst.msk [vmem:[#allocation2 + $0x170] sm:$0xff] %vm818, 0.0
      %867 = vst.msk [vmem:[#allocation2 + $0x178] sm:$0x3] %vm821, 0.0
      %868 = vst.msk [vmem:[#allocation2 + $0x180] sm:$0xff] %vm818, 0.0
      %869 = vst.msk [vmem:[#allocation2 + $0x188] sm:$0xff] %vm818, 0.0
      %870 = vst.msk [vmem:[#allocation2 + $0x190] sm:$0x3] %vm821, 0.0
      %871 = vst.msk [vmem:[#allocation2 + $0x198] sm:$0xff] %vm818, 0.0
      %872 = vst.msk [vmem:[#allocation2 + $0x1a0] sm:$0xff] %vm818, 0.0
      %873 = vst.msk [vmem:[#allocation2 + $0x1a8] sm:$0x3] %vm821, 0.0
      %s874 = scalar_lea.vmem [#allocation2], 24
      %875 = vst.msk [vmem:[%s874 + $0x1] sm:$0xff] %vm818, %v786
      %876 = vst.msk [vmem:[%s874 + $0x9] sm:$0xff] %vm818, %v787
      %877 = vst.msk [vmem:[%s874 + $0x19] sm:$0xff] %vm818, %v788
      %878 = vst.msk [vmem:[%s874 + $0x21] sm:$0xff] %vm818, %v789
      %879 = vst.msk [vmem:[%s874 + $0x31] sm:$0xff] %vm818, %v790
      %880 = vst.msk [vmem:[%s874 + $0x39] sm:$0xff] %vm818, %v791
      %881 = vst.msk [vmem:[%s874 + $0x49] sm:$0xff] %vm818, %v792
      %882 = vst.msk [vmem:[%s874 + $0x51] sm:$0xff] %vm818, %v793
      %883 = vst.msk [vmem:[%s874 + $0x61] sm:$0xff] %vm818, %v794
      %884 = vst.msk [vmem:[%s874 + $0x69] sm:$0xff] %vm818, %v795
      %885 = vst.msk [vmem:[%s874 + $0x79] sm:$0xff] %vm818, %v796
      %886 = vst.msk [vmem:[%s874 + $0x81] sm:$0xff] %vm818, %v797
      %887 = vst.msk [vmem:[%s874 + $0x91] sm:$0xff] %vm818, %v798
      %888 = vst.msk [vmem:[%s874 + $0x99] sm:$0xff] %vm818, %v799
      %889 = vst.msk [vmem:[%s874 + $0xa9] sm:$0xff] %vm818, %v800
      %890 = vst.msk [vmem:[%s874 + $0xb1] sm:$0xff] %vm818, %v801
      %891 = vst.msk [vmem:[%s874 + $0xc1] sm:$0xff] %vm818, %v802
      %892 = vst.msk [vmem:[%s874 + $0xc9] sm:$0xff] %vm818, %v803
      %893 = vst.msk [vmem:[%s874 + $0xd9] sm:$0xff] %vm818, %v804
      %894 = vst.msk [vmem:[%s874 + $0xe1] sm:$0xff] %vm818, %v805
      %895 = vst.msk [vmem:[%s874 + $0xf1] sm:$0xff] %vm818, %v806
      %896 = vst.msk [vmem:[%s874 + $0xf9] sm:$0xff] %vm818, %v807
      %897 = vst.msk [vmem:[%s874 + $0x109] sm:$0xff] %vm818, %v808
      %898 = vst.msk [vmem:[%s874 + $0x111] sm:$0xff] %vm818, %v809
      %899 = vst.msk [vmem:[%s874 + $0x121] sm:$0xff] %vm818, %v810
      %900 = vst.msk [vmem:[%s874 + $0x129] sm:$0xff] %vm818, %v811
      %901 = vst.msk [vmem:[%s874 + $0x139] sm:$0xff] %vm818, %v812
      %902 = vst.msk [vmem:[%s874 + $0x141] sm:$0xff] %vm818, %v813
      %903 = vst.msk [vmem:[%s874 + $0x151] sm:$0xff] %vm818, %v814
      %904 = vst.msk [vmem:[%s874 + $0x159] sm:$0xff] %vm818, %v815
      %905 = vst.msk [vmem:[%s874 + $0x169] sm:$0xff] %vm818, %v816
      %906 = vst.msk [vmem:[%s874 + $0x171] sm:$0xff] %vm818, %v817
      %v907 = vld [vmem:[#allocation2] sm:$0xff]
      %v908 = vld [vmem:[#allocation2 + $0x8] sm:$0xff]
      %v909 = vld [vmem:[#allocation2 + $0x10] sm:$0x3]
      %v910 = vld [vmem:[#allocation2 + $0x18] sm:$0xff]
      %v911 = vld [vmem:[#allocation2 + $0x20] sm:$0xff]
      %v912 = vld [vmem:[#allocation2 + $0x28] sm:$0x3]
      %v913 = vld [vmem:[#allocation2 + $0x30] sm:$0xff]
      %v914 = vld [vmem:[#allocation2 + $0x38] sm:$0xff]
      %v915 = vld [vmem:[#allocation2 + $0x40] sm:$0x3]
      %v916 = vld [vmem:[#allocation2 + $0x48] sm:$0xff]
      %v917 = vld [vmem:[#allocation2 + $0x50] sm:$0xff]
      %v918 = vld [vmem:[#allocation2 + $0x58] sm:$0x3]
      %v919 = vld [vmem:[#allocation2 + $0x60] sm:$0xff]
      %v920 = vld [vmem:[#allocation2 + $0x68] sm:$0xff]
      %v921 = vld [vmem:[#allocation2 + $0x70] sm:$0x3]
      %v922 = vld [vmem:[#allocation2 + $0x78] sm:$0xff]
      %v923 = vld [vmem:[#allocation2 + $0x80] sm:$0xff]
      %v924 = vld [vmem:[#allocation2 + $0x88] sm:$0x3]
      %v925 = vld [vmem:[#allocation2 + $0x90] sm:$0xff]
      %v926 = vld [vmem:[#allocation2 + $0x98] sm:$0xff]
      %v927 = vld [vmem:[#allocation2 + $0xa0] sm:$0x3]
      %v928 = vld [vmem:[#allocation2 + $0xa8] sm:$0xff]
      %v929 = vld [vmem:[#allocation2 + $0xb0] sm:$0xff]
      %v930 = vld [vmem:[#allocation2 + $0xb8] sm:$0x3]
      %v931 = vld [vmem:[#allocation2 + $0xc0] sm:$0xff]
      %v932 = vld [vmem:[#allocation2 + $0xc8] sm:$0xff]
      %v933 = vld [vmem:[#allocation2 + $0xd0] sm:$0x3]
      %v934 = vld [vmem:[#allocation2 + $0xd8] sm:$0xff]
      %v935 = vld [vmem:[#allocation2 + $0xe0] sm:$0xff]
      %v936 = vld [vmem:[#allocation2 + $0xe8] sm:$0x3]
      %v937 = vld [vmem:[#allocation2 + $0xf0] sm:$0xff]
      %v938 = vld [vmem:[#allocation2 + $0xf8] sm:$0xff]
      %v939 = vld [vmem:[#allocation2 + $0x100] sm:$0x3]
      %v940 = vld [vmem:[#allocation2 + $0x108] sm:$0xff]
      %v941 = vld [vmem:[#allocation2 + $0x110] sm:$0xff]
      %v942 = vld [vmem:[#allocation2 + $0x118] sm:$0x3]
      %v943 = vld [vmem:[#allocation2 + $0x120] sm:$0xff]
      %v944 = vld [vmem:[#allocation2 + $0x128] sm:$0xff]
      %v945 = vld [vmem:[#allocation2 + $0x130] sm:$0x3]
      %v946 = vld [vmem:[#allocation2 + $0x138] sm:$0xff]
      %v947 = vld [vmem:[#allocation2 + $0x140] sm:$0xff]
      %v948 = vld [vmem:[#allocation2 + $0x148] sm:$0x3]
      %v949 = vld [vmem:[#allocation2 + $0x150] sm:$0xff]
      %v950 = vld [vmem:[#allocation2 + $0x158] sm:$0xff]
      %v951 = vld [vmem:[#allocation2 + $0x160] sm:$0x3]
      %v952 = vld [vmem:[#allocation2 + $0x168] sm:$0xff]
      %v953 = vld [vmem:[#allocation2 + $0x170] sm:$0xff]
      %v954 = vld [vmem:[#allocation2 + $0x178] sm:$0x3]
      %v955 = vld [vmem:[#allocation2 + $0x180] sm:$0xff]
      %v956 = vld [vmem:[#allocation2 + $0x188] sm:$0xff]
      %v957 = vld [vmem:[#allocation2 + $0x190] sm:$0x3]
      %v958 = vld [vmem:[#allocation2 + $0x198] sm:$0xff]
      %v959 = vld [vmem:[#allocation2 + $0x1a0] sm:$0xff]
      %v960 = vld [vmem:[#allocation2 + $0x1a8] sm:$0x3]
      %v961 = vld [vmem:[%s3] sm:$0x7]
      %v962 = vld [vmem:[%s3 + $0x4] sm:$0x7]
      %v963 = vld [vmem:[%s3 + $0x8] sm:$0x7]
      %v964 = vlaneseq
      %v965 = vshrl.u32 %v964, 7
      %v966 = vsub.s32 0, %v965
      %v967 = vrot.slane %v961, %v966
      %v968 = vmul.f32 %v907, %v967
      %v969 = vmul.f32 %v908, %v967
      %v970 = vmul.f32 %v910, %v967
      %v971 = vmul.f32 %v911, %v967
      %v972 = vmul.f32 %v913, %v967
      %v973 = vmul.f32 %v914, %v967
      %v974 = vmul.f32 %v916, %v967
      %v975 = vmul.f32 %v917, %v967
      %v976 = vmul.f32 %v919, %v967
      %v977 = vmul.f32 %v920, %v967
      %v978 = vmul.f32 %v922, %v967
      %v979 = vmul.f32 %v923, %v967
      %v980 = vmul.f32 %v925, %v967
      %v981 = vmul.f32 %v926, %v967
      %v982 = vmul.f32 %v928, %v967
      %v983 = vmul.f32 %v929, %v967
      %v984 = vmul.f32 %v931, %v967
      %v985 = vmul.f32 %v932, %v967
      %v986 = vmul.f32 %v934, %v967
      %v987 = vmul.f32 %v935, %v967
      %v988 = vmul.f32 %v937, %v967
      %v989 = vmul.f32 %v938, %v967
      %v990 = vmul.f32 %v940, %v967
      %v991 = vmul.f32 %v941, %v967
      %v992 = vmul.f32 %v943, %v967
      %v993 = vmul.f32 %v944, %v967
      %v994 = vmul.f32 %v946, %v967
      %v995 = vmul.f32 %v947, %v967
      %v996 = vmul.f32 %v949, %v967
      %v997 = vmul.f32 %v950, %v967
      %v998 = vmul.f32 %v952, %v967
      %v999 = vmul.f32 %v953, %v967
      %v1000 = vadd.f32 %v968, 0.0
      %v1001 = vadd.f32 %v969, 0.0
      %v1002 = vadd.f32 %v970, 0.0
      %v1003 = vadd.f32 %v971, 0.0
      %v1004 = vadd.f32 %v972, 0.0
      %v1005 = vadd.f32 %v973, 0.0
      %v1006 = vadd.f32 %v974, 0.0
      %v1007 = vadd.f32 %v975, 0.0
      %v1008 = vadd.f32 %v976, 0.0
      %v1009 = vadd.f32 %v977, 0.0
      %v1010 = vadd.f32 %v978, 0.0
      %v1011 = vadd.f32 %v979, 0.0
      %v1012 = vadd.f32 %v980, 0.0
      %v1013 = vadd.f32 %v981, 0.0
      %v1014 = vadd.f32 %v982, 0.0
      %v1015 = vadd.f32 %v983, 0.0
      %v1016 = vadd.f32 %v984, 0.0
      %v1017 = vadd.f32 %v985, 0.0
      %v1018 = vadd.f32 %v986, 0.0
      %v1019 = vadd.f32 %v987, 0.0
      %v1020 = vadd.f32 %v988, 0.0
      %v1021 = vadd.f32 %v989, 0.0
      %v1022 = vadd.f32 %v990, 0.0
      %v1023 = vadd.f32 %v991, 0.0
      %v1024 = vadd.f32 %v992, 0.0
      %v1025 = vadd.f32 %v993, 0.0
      %v1026 = vadd.f32 %v994, 0.0
      %v1027 = vadd.f32 %v995, 0.0
      %v1028 = vadd.f32 %v996, 0.0
      %v1029 = vadd.f32 %v997, 0.0
      %v1030 = vadd.f32 %v998, 0.0
      %v1031 = vadd.f32 %v999, 0.0
      %v1032 = vlaneseq
      %v1033 = vshrl.u32 %v1032, 7
      %v1034 = vsub.s32 1, %v1033
      %v1035 = vrot.slane %v961, %v1034
      %v1036 = vmul.f32 %v907, %v1035
      %v1037 = vmul.f32 %v908, %v1035
      %v1038 = vmul.f32 %v909, %v1035
      %v1039 = vmul.f32 %v910, %v1035
      %v1040 = vmul.f32 %v911, %v1035
      %v1041 = vmul.f32 %v912, %v1035
      %v1042 = vmul.f32 %v913, %v1035
      %v1043 = vmul.f32 %v914, %v1035
      %v1044 = vmul.f32 %v915, %v1035
      %v1045 = vmul.f32 %v916, %v1035
      %v1046 = vmul.f32 %v917, %v1035
      %v1047 = vmul.f32 %v918, %v1035
      %v1048 = vmul.f32 %v919, %v1035
      %v1049 = vmul.f32 %v920, %v1035
      %v1050 = vmul.f32 %v921, %v1035
      %v1051 = vmul.f32 %v922, %v1035
      %v1052 = vmul.f32 %v923, %v1035
      %v1053 = vmul.f32 %v924, %v1035
      %v1054 = vmul.f32 %v925, %v1035
      %v1055 = vmul.f32 %v926, %v1035
      %v1056 = vmul.f32 %v927, %v1035
      %v1057 = vmul.f32 %v928, %v1035
      %v1058 = vmul.f32 %v929, %v1035
      %v1059 = vmul.f32 %v930, %v1035
      %v1060 = vmul.f32 %v931, %v1035
      %v1061 = vmul.f32 %v932, %v1035
      %v1062 = vmul.f32 %v933, %v1035
      %v1063 = vmul.f32 %v934, %v1035
      %v1064 = vmul.f32 %v935, %v1035
      %v1065 = vmul.f32 %v936, %v1035
      %v1066 = vmul.f32 %v937, %v1035
      %v1067 = vmul.f32 %v938, %v1035
      %v1068 = vmul.f32 %v939, %v1035
      %v1069 = vmul.f32 %v940, %v1035
      %v1070 = vmul.f32 %v941, %v1035
      %v1071 = vmul.f32 %v942, %v1035
      %v1072 = vmul.f32 %v943, %v1035
      %v1073 = vmul.f32 %v944, %v1035
      %v1074 = vmul.f32 %v945, %v1035
      %v1075 = vmul.f32 %v946, %v1035
      %v1076 = vmul.f32 %v947, %v1035
      %v1077 = vmul.f32 %v948, %v1035
      %v1078 = vmul.f32 %v949, %v1035
      %v1079 = vmul.f32 %v950, %v1035
      %v1080 = vmul.f32 %v951, %v1035
      %v1081 = vmul.f32 %v952, %v1035
      %v1082 = vmul.f32 %v953, %v1035
      %v1083 = vmul.f32 %v954, %v1035
      %vm1132 = vcmask 1046528
      %v1133 = vrot.slane %v1036, 1
      %v1134 = vrot.slane %v1037, 1
      %v1135 = vsel %vm1132, %v1133, %v1134
      %v1136 = vrot.slane %v1038, 1
      %v1137 = vsel %vm1132, %v1134, %v1136
      %v1138 = vrot.slane %v1039, 1
      %v1139 = vrot.slane %v1040, 1
      %v1140 = vsel %vm1132, %v1138, %v1139
      %v1141 = vrot.slane %v1041, 1
      %v1142 = vsel %vm1132, %v1139, %v1141
      %v1143 = vrot.slane %v1042, 1
      %v1144 = vrot.slane %v1043, 1
      %v1145 = vsel %vm1132, %v1143, %v1144
      %v1146 = vrot.slane %v1044, 1
      %v1147 = vsel %vm1132, %v1144, %v1146
      %v1148 = vrot.slane %v1045, 1
      %v1149 = vrot.slane %v1046, 1
      %v1150 = vsel %vm1132, %v1148, %v1149
      %v1151 = vrot.slane %v1047, 1
      %v1152 = vsel %vm1132, %v1149, %v1151
      %v1153 = vrot.slane %v1048, 1
      %v1154 = vrot.slane %v1049, 1
      %v1155 = vsel %vm1132, %v1153, %v1154
      %v1156 = vrot.slane %v1050, 1
      %v1157 = vsel %vm1132, %v1154, %v1156
      %v1158 = vrot.slane %v1051, 1
      %v1159 = vrot.slane %v1052, 1
      %v1160 = vsel %vm1132, %v1158, %v1159
      %v1161 = vrot.slane %v1053, 1
      %v1162 = vsel %vm1132, %v1159, %v1161
      %v1163 = vrot.slane %v1054, 1
      %v1164 = vrot.slane %v1055, 1
      %v1165 = vsel %vm1132, %v1163, %v1164
      %v1166 = vrot.slane %v1056, 1
      %v1167 = vsel %vm1132, %v1164, %v1166
      %v1168 = vrot.slane %v1057, 1
      %v1169 = vrot.slane %v1058, 1
      %v1170 = vsel %vm1132, %v1168, %v1169
      %v1171 = vrot.slane %v1059, 1
      %v1172 = vsel %vm1132, %v1169, %v1171
      %v1173 = vrot.slane %v1060, 1
      %v1174 = vrot.slane %v1061, 1
      %v1175 = vsel %vm1132, %v1173, %v1174
      %v1176 = vrot.slane %v1062, 1
      %v1177 = vsel %vm1132, %v1174, %v1176
      %v1178 = vrot.slane %v1063, 1
      %v1179 = vrot.slane %v1064, 1
      %v1180 = vsel %vm1132, %v1178, %v1179
      %v1181 = vrot.slane %v1065, 1
      %v1182 = vsel %vm1132, %v1179, %v1181
      %v1183 = vrot.slane %v1066, 1
      %v1184 = vrot.slane %v1067, 1
      %v1185 = vsel %vm1132, %v1183, %v1184
      %v1186 = vrot.slane %v1068, 1
      %v1187 = vsel %vm1132, %v1184, %v1186
      %v1188 = vrot.slane %v1069, 1
      %v1189 = vrot.slane %v1070, 1
      %v1190 = vsel %vm1132, %v1188, %v1189
      %v1191 = vrot.slane %v1071, 1
      %v1192 = vsel %vm1132, %v1189, %v1191
      %v1193 = vrot.slane %v1072, 1
      %v1194 = vrot.slane %v1073, 1
      %v1195 = vsel %vm1132, %v1193, %v1194
      %v1196 = vrot.slane %v1074, 1
      %v1197 = vsel %vm1132, %v1194, %v1196
      %v1198 = vrot.slane %v1075, 1
      %v1199 = vrot.slane %v1076, 1
      %v1200 = vsel %vm1132, %v1198, %v1199
      %v1201 = vrot.slane %v1077, 1
      %v1202 = vsel %vm1132, %v1199, %v1201
      %v1203 = vrot.slane %v1078, 1
      %v1204 = vrot.slane %v1079, 1
      %v1205 = vsel %vm1132, %v1203, %v1204
      %v1206 = vrot.slane %v1080, 1
      %v1207 = vsel %vm1132, %v1204, %v1206
      %v1208 = vrot.slane %v1081, 1
      %v1209 = vrot.slane %v1082, 1
      %v1210 = vsel %vm1132, %v1208, %v1209
      %v1211 = vrot.slane %v1083, 1
      %v1212 = vsel %vm1132, %v1209, %v1211
      %v1245 = vadd.f32 %v1000, %v1135
      %v1246 = vadd.f32 %v1001, %v1137
      %v1247 = vadd.f32 %v1002, %v1140
      %v1248 = vadd.f32 %v1003, %v1142
      %v1249 = vadd.f32 %v1004, %v1145
      %v1250 = vadd.f32 %v1005, %v1147
      %v1251 = vadd.f32 %v1006, %v1150
      %v1252 = vadd.f32 %v1007, %v1152
      %v1253 = vadd.f32 %v1008, %v1155
      %v1254 = vadd.f32 %v1009, %v1157
      %v1255 = vadd.f32 %v1010, %v1160
      %v1256 = vadd.f32 %v1011, %v1162
      %v1257 = vadd.f32 %v1012, %v1165
      %v1258 = vadd.f32 %v1013, %v1167
      %v1259 = vadd.f32 %v1014, %v1170
      %v1260 = vadd.f32 %v1015, %v1172
      %v1261 = vadd.f32 %v1016, %v1175
      %v1262 = vadd.f32 %v1017, %v1177
      %v1263 = vadd.f32 %v1018, %v1180
      %v1264 = vadd.f32 %v1019, %v1182
      %v1265 = vadd.f32 %v1020, %v1185
      %v1266 = vadd.f32 %v1021, %v1187
      %v1267 = vadd.f32 %v1022, %v1190
      %v1268 = vadd.f32 %v1023, %v1192
      %v1269 = vadd.f32 %v1024, %v1195
      %v1270 = vadd.f32 %v1025, %v1197
      %v1271 = vadd.f32 %v1026, %v1200
      %v1272 = vadd.f32 %v1027, %v1202
      %v1273 = vadd.f32 %v1028, %v1205
      %v1274 = vadd.f32 %v1029, %v1207
      %v1275 = vadd.f32 %v1030, %v1210
      %v1276 = vadd.f32 %v1031, %v1212
      %v1277 = vlaneseq
      %v1278 = vshrl.u32 %v1277, 7
      %v1279 = vsub.s32 2, %v1278
      %v1280 = vrot.slane %v961, %v1279
      %v1281 = vmul.f32 %v907, %v1280
      %v1282 = vmul.f32 %v908, %v1280
      %v1283 = vmul.f32 %v909, %v1280
      %v1284 = vmul.f32 %v910, %v1280
      %v1285 = vmul.f32 %v911, %v1280
      %v1286 = vmul.f32 %v912, %v1280
      %v1287 = vmul.f32 %v913, %v1280
      %v1288 = vmul.f32 %v914, %v1280
      %v1289 = vmul.f32 %v915, %v1280
      %v1290 = vmul.f32 %v916, %v1280
      %v1291 = vmul.f32 %v917, %v1280
      %v1292 = vmul.f32 %v918, %v1280
      %v1293 = vmul.f32 %v919, %v1280
      %v1294 = vmul.f32 %v920, %v1280
      %v1295 = vmul.f32 %v921, %v1280
      %v1296 = vmul.f32 %v922, %v1280
      %v1297 = vmul.f32 %v923, %v1280
      %v1298 = vmul.f32 %v924, %v1280
      %v1299 = vmul.f32 %v925, %v1280
      %v1300 = vmul.f32 %v926, %v1280
      %v1301 = vmul.f32 %v927, %v1280
      %v1302 = vmul.f32 %v928, %v1280
      %v1303 = vmul.f32 %v929, %v1280
      %v1304 = vmul.f32 %v930, %v1280
      %v1305 = vmul.f32 %v931, %v1280
      %v1306 = vmul.f32 %v932, %v1280
      %v1307 = vmul.f32 %v933, %v1280
      %v1308 = vmul.f32 %v934, %v1280
      %v1309 = vmul.f32 %v935, %v1280
      %v1310 = vmul.f32 %v936, %v1280
      %v1311 = vmul.f32 %v937, %v1280
      %v1312 = vmul.f32 %v938, %v1280
      %v1313 = vmul.f32 %v939, %v1280
      %v1314 = vmul.f32 %v940, %v1280
      %v1315 = vmul.f32 %v941, %v1280
      %v1316 = vmul.f32 %v942, %v1280
      %v1317 = vmul.f32 %v943, %v1280
      %v1318 = vmul.f32 %v944, %v1280
      %v1319 = vmul.f32 %v945, %v1280
      %v1320 = vmul.f32 %v946, %v1280
      %v1321 = vmul.f32 %v947, %v1280
      %v1322 = vmul.f32 %v948, %v1280
      %v1323 = vmul.f32 %v949, %v1280
      %v1324 = vmul.f32 %v950, %v1280
      %v1325 = vmul.f32 %v951, %v1280
      %v1326 = vmul.f32 %v952, %v1280
      %v1327 = vmul.f32 %v953, %v1280
      %v1328 = vmul.f32 %v954, %v1280
      %vm1377 = vcmask 1045504
      %v1378 = vrot.slane %v1281, 2
      %v1379 = vrot.slane %v1282, 2
      %v1380 = vsel %vm1377, %v1378, %v1379
      %v1381 = vrot.slane %v1283, 2
      %v1382 = vsel %vm1377, %v1379, %v1381
      %v1383 = vrot.slane %v1284, 2
      %v1384 = vrot.slane %v1285, 2
      %v1385 = vsel %vm1377, %v1383, %v1384
      %v1386 = vrot.slane %v1286, 2
      %v1387 = vsel %vm1377, %v1384, %v1386
      %v1388 = vrot.slane %v1287, 2
      %v1389 = vrot.slane %v1288, 2
      %v1390 = vsel %vm1377, %v1388, %v1389
      %v1391 = vrot.slane %v1289, 2
      %v1392 = vsel %vm1377, %v1389, %v1391
      %v1393 = vrot.slane %v1290, 2
      %v1394 = vrot.slane %v1291, 2
      %v1395 = vsel %vm1377, %v1393, %v1394
      %v1396 = vrot.slane %v1292, 2
      %v1397 = vsel %vm1377, %v1394, %v1396
      %v1398 = vrot.slane %v1293, 2
      %v1399 = vrot.slane %v1294, 2
      %v1400 = vsel %vm1377, %v1398, %v1399
      %v1401 = vrot.slane %v1295, 2
      %v1402 = vsel %vm1377, %v1399, %v1401
      %v1403 = vrot.slane %v1296, 2
      %v1404 = vrot.slane %v1297, 2
      %v1405 = vsel %vm1377, %v1403, %v1404
      %v1406 = vrot.slane %v1298, 2
      %v1407 = vsel %vm1377, %v1404, %v1406
      %v1408 = vrot.slane %v1299, 2
      %v1409 = vrot.slane %v1300, 2
      %v1410 = vsel %vm1377, %v1408, %v1409
      %v1411 = vrot.slane %v1301, 2
      %v1412 = vsel %vm1377, %v1409, %v1411
      %v1413 = vrot.slane %v1302, 2
      %v1414 = vrot.slane %v1303, 2
      %v1415 = vsel %vm1377, %v1413, %v1414
      %v1416 = vrot.slane %v1304, 2
      %v1417 = vsel %vm1377, %v1414, %v1416
      %v1418 = vrot.slane %v1305, 2
      %v1419 = vrot.slane %v1306, 2
      %v1420 = vsel %vm1377, %v1418, %v1419
      %v1421 = vrot.slane %v1307, 2
      %v1422 = vsel %vm1377, %v1419, %v1421
      %v1423 = vrot.slane %v1308, 2
      %v1424 = vrot.slane %v1309, 2
      %v1425 = vsel %vm1377, %v1423, %v1424
      %v1426 = vrot.slane %v1310, 2
      %v1427 = vsel %vm1377, %v1424, %v1426
      %v1428 = vrot.slane %v1311, 2
      %v1429 = vrot.slane %v1312, 2
      %v1430 = vsel %vm1377, %v1428, %v1429
      %v1431 = vrot.slane %v1313, 2
      %v1432 = vsel %vm1377, %v1429, %v1431
      %v1433 = vrot.slane %v1314, 2
      %v1434 = vrot.slane %v1315, 2
      %v1435 = vsel %vm1377, %v1433, %v1434
      %v1436 = vrot.slane %v1316, 2
      %v1437 = vsel %vm1377, %v1434, %v1436
      %v1438 = vrot.slane %v1317, 2
      %v1439 = vrot.slane %v1318, 2
      %v1440 = vsel %vm1377, %v1438, %v1439
      %v1441 = vrot.slane %v1319, 2
      %v1442 = vsel %vm1377, %v1439, %v1441
      %v1443 = vrot.slane %v1320, 2
      %v1444 = vrot.slane %v1321, 2
      %v1445 = vsel %vm1377, %v1443, %v1444
      %v1446 = vrot.slane %v1322, 2
      %v1447 = vsel %vm1377, %v1444, %v1446
      %v1448 = vrot.slane %v1323, 2
      %v1449 = vrot.slane %v1324, 2
      %v1450 = vsel %vm1377, %v1448, %v1449
      %v1451 = vrot.slane %v1325, 2
      %v1452 = vsel %vm1377, %v1449, %v1451
      %v1453 = vrot.slane %v1326, 2
      %v1454 = vrot.slane %v1327, 2
      %v1455 = vsel %vm1377, %v1453, %v1454
      %v1456 = vrot.slane %v1328, 2
      %v1457 = vsel %vm1377, %v1454, %v1456
      %v1490 = vadd.f32 %v1245, %v1380
      %v1491 = vadd.f32 %v1246, %v1382
      %v1492 = vadd.f32 %v1247, %v1385
      %v1493 = vadd.f32 %v1248, %v1387
      %v1494 = vadd.f32 %v1249, %v1390
      %v1495 = vadd.f32 %v1250, %v1392
      %v1496 = vadd.f32 %v1251, %v1395
      %v1497 = vadd.f32 %v1252, %v1397
      %v1498 = vadd.f32 %v1253, %v1400
      %v1499 = vadd.f32 %v1254, %v1402
      %v1500 = vadd.f32 %v1255, %v1405
      %v1501 = vadd.f32 %v1256, %v1407
      %v1502 = vadd.f32 %v1257, %v1410
      %v1503 = vadd.f32 %v1258, %v1412
      %v1504 = vadd.f32 %v1259, %v1415
      %v1505 = vadd.f32 %v1260, %v1417
      %v1506 = vadd.f32 %v1261, %v1420
      %v1507 = vadd.f32 %v1262, %v1422
      %v1508 = vadd.f32 %v1263, %v1425
      %v1509 = vadd.f32 %v1264, %v1427
      %v1510 = vadd.f32 %v1265, %v1430
      %v1511 = vadd.f32 %v1266, %v1432
      %v1512 = vadd.f32 %v1267, %v1435
      %v1513 = vadd.f32 %v1268, %v1437
      %v1514 = vadd.f32 %v1269, %v1440
      %v1515 = vadd.f32 %v1270, %v1442
      %v1516 = vadd.f32 %v1271, %v1445
      %v1517 = vadd.f32 %v1272, %v1447
      %v1518 = vadd.f32 %v1273, %v1450
      %v1519 = vadd.f32 %v1274, %v1452
      %v1520 = vadd.f32 %v1275, %v1455
      %v1521 = vadd.f32 %v1276, %v1457
      %v1522 = vlaneseq
      %v1523 = vshrl.u32 %v1522, 7
      %v1524 = vsub.s32 0, %v1523
      %v1525 = vrot.slane %v962, %v1524
      %v1526 = vmul.f32 %v910, %v1525
      %v1527 = vmul.f32 %v911, %v1525
      %v1528 = vmul.f32 %v913, %v1525
      %v1529 = vmul.f32 %v914, %v1525
      %v1530 = vmul.f32 %v916, %v1525
      %v1531 = vmul.f32 %v917, %v1525
      %v1532 = vmul.f32 %v919, %v1525
      %v1533 = vmul.f32 %v920, %v1525
      %v1534 = vmul.f32 %v922, %v1525
      %v1535 = vmul.f32 %v923, %v1525
      %v1536 = vmul.f32 %v925, %v1525
      %v1537 = vmul.f32 %v926, %v1525
      %v1538 = vmul.f32 %v928, %v1525
      %v1539 = vmul.f32 %v929, %v1525
      %v1540 = vmul.f32 %v931, %v1525
      %v1541 = vmul.f32 %v932, %v1525
      %v1542 = vmul.f32 %v934, %v1525
      %v1543 = vmul.f32 %v935, %v1525
      %v1544 = vmul.f32 %v937, %v1525
      %v1545 = vmul.f32 %v938, %v1525
      %v1546 = vmul.f32 %v940, %v1525
      %v1547 = vmul.f32 %v941, %v1525
      %v1548 = vmul.f32 %v943, %v1525
      %v1549 = vmul.f32 %v944, %v1525
      %v1550 = vmul.f32 %v946, %v1525
      %v1551 = vmul.f32 %v947, %v1525
      %v1552 = vmul.f32 %v949, %v1525
      %v1553 = vmul.f32 %v950, %v1525
      %v1554 = vmul.f32 %v952, %v1525
      %v1555 = vmul.f32 %v953, %v1525
      %v1556 = vmul.f32 %v955, %v1525
      %v1557 = vmul.f32 %v956, %v1525
      %v1558 = vadd.f32 %v1490, %v1526
      %v1559 = vadd.f32 %v1491, %v1527
      %v1560 = vadd.f32 %v1492, %v1528
      %v1561 = vadd.f32 %v1493, %v1529
      %v1562 = vadd.f32 %v1494, %v1530
      %v1563 = vadd.f32 %v1495, %v1531
      %v1564 = vadd.f32 %v1496, %v1532
      %v1565 = vadd.f32 %v1497, %v1533
      %v1566 = vadd.f32 %v1498, %v1534
      %v1567 = vadd.f32 %v1499, %v1535
      %v1568 = vadd.f32 %v1500, %v1536
      %v1569 = vadd.f32 %v1501, %v1537
      %v1570 = vadd.f32 %v1502, %v1538
      %v1571 = vadd.f32 %v1503, %v1539
      %v1572 = vadd.f32 %v1504, %v1540
      %v1573 = vadd.f32 %v1505, %v1541
      %v1574 = vadd.f32 %v1506, %v1542
      %v1575 = vadd.f32 %v1507, %v1543
      %v1576 = vadd.f32 %v1508, %v1544
      %v1577 = vadd.f32 %v1509, %v1545
      %v1578 = vadd.f32 %v1510, %v1546
      %v1579 = vadd.f32 %v1511, %v1547
      %v1580 = vadd.f32 %v1512, %v1548
      %v1581 = vadd.f32 %v1513, %v1549
      %v1582 = vadd.f32 %v1514, %v1550
      %v1583 = vadd.f32 %v1515, %v1551
      %v1584 = vadd.f32 %v1516, %v1552
      %v1585 = vadd.f32 %v1517, %v1553
      %v1586 = vadd.f32 %v1518, %v1554
      %v1587 = vadd.f32 %v1519, %v1555
      %v1588 = vadd.f32 %v1520, %v1556
      %v1589 = vadd.f32 %v1521, %v1557
      %v1590 = vlaneseq
      %v1591 = vshrl.u32 %v1590, 7
      %v1592 = vsub.s32 1, %v1591
      %v1593 = vrot.slane %v962, %v1592
      %v1594 = vmul.f32 %v910, %v1593
      %v1595 = vmul.f32 %v911, %v1593
      %v1596 = vmul.f32 %v912, %v1593
      %v1597 = vmul.f32 %v913, %v1593
      %v1598 = vmul.f32 %v914, %v1593
      %v1599 = vmul.f32 %v915, %v1593
      %v1600 = vmul.f32 %v916, %v1593
      %v1601 = vmul.f32 %v917, %v1593
      %v1602 = vmul.f32 %v918, %v1593
      %v1603 = vmul.f32 %v919, %v1593
      %v1604 = vmul.f32 %v920, %v1593
      %v1605 = vmul.f32 %v921, %v1593
      %v1606 = vmul.f32 %v922, %v1593
      %v1607 = vmul.f32 %v923, %v1593
      %v1608 = vmul.f32 %v924, %v1593
      %v1609 = vmul.f32 %v925, %v1593
      %v1610 = vmul.f32 %v926, %v1593
      %v1611 = vmul.f32 %v927, %v1593
      %v1612 = vmul.f32 %v928, %v1593
      %v1613 = vmul.f32 %v929, %v1593
      %v1614 = vmul.f32 %v930, %v1593
      %v1615 = vmul.f32 %v931, %v1593
      %v1616 = vmul.f32 %v932, %v1593
      %v1617 = vmul.f32 %v933, %v1593
      %v1618 = vmul.f32 %v934, %v1593
      %v1619 = vmul.f32 %v935, %v1593
      %v1620 = vmul.f32 %v936, %v1593
      %v1621 = vmul.f32 %v937, %v1593
      %v1622 = vmul.f32 %v938, %v1593
      %v1623 = vmul.f32 %v939, %v1593
      %v1624 = vmul.f32 %v940, %v1593
      %v1625 = vmul.f32 %v941, %v1593
      %v1626 = vmul.f32 %v942, %v1593
      %v1627 = vmul.f32 %v943, %v1593
      %v1628 = vmul.f32 %v944, %v1593
      %v1629 = vmul.f32 %v945, %v1593
      %v1630 = vmul.f32 %v946, %v1593
      %v1631 = vmul.f32 %v947, %v1593
      %v1632 = vmul.f32 %v948, %v1593
      %v1633 = vmul.f32 %v949, %v1593
      %v1634 = vmul.f32 %v950, %v1593
      %v1635 = vmul.f32 %v951, %v1593
      %v1636 = vmul.f32 %v952, %v1593
      %v1637 = vmul.f32 %v953, %v1593
      %v1638 = vmul.f32 %v954, %v1593
      %v1639 = vmul.f32 %v955, %v1593
      %v1640 = vmul.f32 %v956, %v1593
      %v1641 = vmul.f32 %v957, %v1593
      %v1690 = vrot.slane %v1594, 1
      %v1691 = vrot.slane %v1595, 1
      %v1692 = vsel %vm1132, %v1690, %v1691
      %v1693 = vrot.slane %v1596, 1
      %v1694 = vsel %vm1132, %v1691, %v1693
      %v1695 = vrot.slane %v1597, 1
      %v1696 = vrot.slane %v1598, 1
      %v1697 = vsel %vm1132, %v1695, %v1696
      %v1698 = vrot.slane %v1599, 1
      %v1699 = vsel %vm1132, %v1696, %v1698
      %v1700 = vrot.slane %v1600, 1
      %v1701 = vrot.slane %v1601, 1
      %v1702 = vsel %vm1132, %v1700, %v1701
      %v1703 = vrot.slane %v1602, 1
      %v1704 = vsel %vm1132, %v1701, %v1703
      %v1705 = vrot.slane %v1603, 1
      %v1706 = vrot.slane %v1604, 1
      %v1707 = vsel %vm1132, %v1705, %v1706
      %v1708 = vrot.slane %v1605, 1
      %v1709 = vsel %vm1132, %v1706, %v1708
      %v1710 = vrot.slane %v1606, 1
      %v1711 = vrot.slane %v1607, 1
      %v1712 = vsel %vm1132, %v1710, %v1711
      %v1713 = vrot.slane %v1608, 1
      %v1714 = vsel %vm1132, %v1711, %v1713
      %v1715 = vrot.slane %v1609, 1
      %v1716 = vrot.slane %v1610, 1
      %v1717 = vsel %vm1132, %v1715, %v1716
      %v1718 = vrot.slane %v1611, 1
      %v1719 = vsel %vm1132, %v1716, %v1718
      %v1720 = vrot.slane %v1612, 1
      %v1721 = vrot.slane %v1613, 1
      %v1722 = vsel %vm1132, %v1720, %v1721
      %v1723 = vrot.slane %v1614, 1
      %v1724 = vsel %vm1132, %v1721, %v1723
      %v1725 = vrot.slane %v1615, 1
      %v1726 = vrot.slane %v1616, 1
      %v1727 = vsel %vm1132, %v1725, %v1726
      %v1728 = vrot.slane %v1617, 1
      %v1729 = vsel %vm1132, %v1726, %v1728
      %v1730 = vrot.slane %v1618, 1
      %v1731 = vrot.slane %v1619, 1
      %v1732 = vsel %vm1132, %v1730, %v1731
      %v1733 = vrot.slane %v1620, 1
      %v1734 = vsel %vm1132, %v1731, %v1733
      %v1735 = vrot.slane %v1621, 1
      %v1736 = vrot.slane %v1622, 1
      %v1737 = vsel %vm1132, %v1735, %v1736
      %v1738 = vrot.slane %v1623, 1
      %v1739 = vsel %vm1132, %v1736, %v1738
      %v1740 = vrot.slane %v1624, 1
      %v1741 = vrot.slane %v1625, 1
      %v1742 = vsel %vm1132, %v1740, %v1741
      %v1743 = vrot.slane %v1626, 1
      %v1744 = vsel %vm1132, %v1741, %v1743
      %v1745 = vrot.slane %v1627, 1
      %v1746 = vrot.slane %v1628, 1
      %v1747 = vsel %vm1132, %v1745, %v1746
      %v1748 = vrot.slane %v1629, 1
      %v1749 = vsel %vm1132, %v1746, %v1748
      %v1750 = vrot.slane %v1630, 1
      %v1751 = vrot.slane %v1631, 1
      %v1752 = vsel %vm1132, %v1750, %v1751
      %v1753 = vrot.slane %v1632, 1
      %v1754 = vsel %vm1132, %v1751, %v1753
      %v1755 = vrot.slane %v1633, 1
      %v1756 = vrot.slane %v1634, 1
      %v1757 = vsel %vm1132, %v1755, %v1756
      %v1758 = vrot.slane %v1635, 1
      %v1759 = vsel %vm1132, %v1756, %v1758
      %v1760 = vrot.slane %v1636, 1
      %v1761 = vrot.slane %v1637, 1
      %v1762 = vsel %vm1132, %v1760, %v1761
      %v1763 = vrot.slane %v1638, 1
      %v1764 = vsel %vm1132, %v1761, %v1763
      %v1765 = vrot.slane %v1639, 1
      %v1766 = vrot.slane %v1640, 1
      %v1767 = vsel %vm1132, %v1765, %v1766
      %v1768 = vrot.slane %v1641, 1
      %v1769 = vsel %vm1132, %v1766, %v1768
      %v1802 = vadd.f32 %v1558, %v1692
      %v1803 = vadd.f32 %v1559, %v1694
      %v1804 = vadd.f32 %v1560, %v1697
      %v1805 = vadd.f32 %v1561, %v1699
      %v1806 = vadd.f32 %v1562, %v1702
      %v1807 = vadd.f32 %v1563, %v1704
      %v1808 = vadd.f32 %v1564, %v1707
      %v1809 = vadd.f32 %v1565, %v1709
      %v1810 = vadd.f32 %v1566, %v1712
      %v1811 = vadd.f32 %v1567, %v1714
      %v1812 = vadd.f32 %v1568, %v1717
      %v1813 = vadd.f32 %v1569, %v1719
      %v1814 = vadd.f32 %v1570, %v1722
      %v1815 = vadd.f32 %v1571, %v1724
      %v1816 = vadd.f32 %v1572, %v1727
      %v1817 = vadd.f32 %v1573, %v1729
      %v1818 = vadd.f32 %v1574, %v1732
      %v1819 = vadd.f32 %v1575, %v1734
      %v1820 = vadd.f32 %v1576, %v1737
      %v1821 = vadd.f32 %v1577, %v1739
      %v1822 = vadd.f32 %v1578, %v1742
      %v1823 = vadd.f32 %v1579, %v1744
      %v1824 = vadd.f32 %v1580, %v1747
      %v1825 = vadd.f32 %v1581, %v1749
      %v1826 = vadd.f32 %v1582, %v1752
      %v1827 = vadd.f32 %v1583, %v1754
      %v1828 = vadd.f32 %v1584, %v1757
      %v1829 = vadd.f32 %v1585, %v1759
      %v1830 = vadd.f32 %v1586, %v1762
      %v1831 = vadd.f32 %v1587, %v1764
      %v1832 = vadd.f32 %v1588, %v1767
      %v1833 = vadd.f32 %v1589, %v1769
      %v1834 = vlaneseq
      %v1835 = vshrl.u32 %v1834, 7
      %v1836 = vsub.s32 2, %v1835
      %v1837 = vrot.slane %v962, %v1836
      %v1838 = vmul.f32 %v910, %v1837
      %v1839 = vmul.f32 %v911, %v1837
      %v1840 = vmul.f32 %v912, %v1837
      %v1841 = vmul.f32 %v913, %v1837
      %v1842 = vmul.f32 %v914, %v1837
      %v1843 = vmul.f32 %v915, %v1837
      %v1844 = vmul.f32 %v916, %v1837
      %v1845 = vmul.f32 %v917, %v1837
      %v1846 = vmul.f32 %v918, %v1837
      %v1847 = vmul.f32 %v919, %v1837
      %v1848 = vmul.f32 %v920, %v1837
      %v1849 = vmul.f32 %v921, %v1837
      %v1850 = vmul.f32 %v922, %v1837
      %v1851 = vmul.f32 %v923, %v1837
      %v1852 = vmul.f32 %v924, %v1837
      %v1853 = vmul.f32 %v925, %v1837
      %v1854 = vmul.f32 %v926, %v1837
      %v1855 = vmul.f32 %v927, %v1837
      %v1856 = vmul.f32 %v928, %v1837
      %v1857 = vmul.f32 %v929, %v1837
      %v1858 = vmul.f32 %v930, %v1837
      %v1859 = vmul.f32 %v931, %v1837
      %v1860 = vmul.f32 %v932, %v1837
      %v1861 = vmul.f32 %v933, %v1837
      %v1862 = vmul.f32 %v934, %v1837
      %v1863 = vmul.f32 %v935, %v1837
      %v1864 = vmul.f32 %v936, %v1837
      %v1865 = vmul.f32 %v937, %v1837
      %v1866 = vmul.f32 %v938, %v1837
      %v1867 = vmul.f32 %v939, %v1837
      %v1868 = vmul.f32 %v940, %v1837
      %v1869 = vmul.f32 %v941, %v1837
      %v1870 = vmul.f32 %v942, %v1837
      %v1871 = vmul.f32 %v943, %v1837
      %v1872 = vmul.f32 %v944, %v1837
      %v1873 = vmul.f32 %v945, %v1837
      %v1874 = vmul.f32 %v946, %v1837
      %v1875 = vmul.f32 %v947, %v1837
      %v1876 = vmul.f32 %v948, %v1837
      %v1877 = vmul.f32 %v949, %v1837
      %v1878 = vmul.f32 %v950, %v1837
      %v1879 = vmul.f32 %v951, %v1837
      %v1880 = vmul.f32 %v952, %v1837
      %v1881 = vmul.f32 %v953, %v1837
      %v1882 = vmul.f32 %v954, %v1837
      %v1883 = vmul.f32 %v955, %v1837
      %v1884 = vmul.f32 %v956, %v1837
      %v1885 = vmul.f32 %v957, %v1837
      %v1934 = vrot.slane %v1838, 2
      %v1935 = vrot.slane %v1839, 2
      %v1936 = vsel %vm1377, %v1934, %v1935
      %v1937 = vrot.slane %v1840, 2
      %v1938 = vsel %vm1377, %v1935, %v1937
      %v1939 = vrot.slane %v1841, 2
      %v1940 = vrot.slane %v1842, 2
      %v1941 = vsel %vm1377, %v1939, %v1940
      %v1942 = vrot.slane %v1843, 2
      %v1943 = vsel %vm1377, %v1940, %v1942
      %v1944 = vrot.slane %v1844, 2
      %v1945 = vrot.slane %v1845, 2
      %v1946 = vsel %vm1377, %v1944, %v1945
      %v1947 = vrot.slane %v1846, 2
      %v1948 = vsel %vm1377, %v1945, %v1947
      %v1949 = vrot.slane %v1847, 2
      %v1950 = vrot.slane %v1848, 2
      %v1951 = vsel %vm1377, %v1949, %v1950
      %v1952 = vrot.slane %v1849, 2
      %v1953 = vsel %vm1377, %v1950, %v1952
      %v1954 = vrot.slane %v1850, 2
      %v1955 = vrot.slane %v1851, 2
      %v1956 = vsel %vm1377, %v1954, %v1955
      %v1957 = vrot.slane %v1852, 2
      %v1958 = vsel %vm1377, %v1955, %v1957
      %v1959 = vrot.slane %v1853, 2
      %v1960 = vrot.slane %v1854, 2
      %v1961 = vsel %vm1377, %v1959, %v1960
      %v1962 = vrot.slane %v1855, 2
      %v1963 = vsel %vm1377, %v1960, %v1962
      %v1964 = vrot.slane %v1856, 2
      %v1965 = vrot.slane %v1857, 2
      %v1966 = vsel %vm1377, %v1964, %v1965
      %v1967 = vrot.slane %v1858, 2
      %v1968 = vsel %vm1377, %v1965, %v1967
      %v1969 = vrot.slane %v1859, 2
      %v1970 = vrot.slane %v1860, 2
      %v1971 = vsel %vm1377, %v1969, %v1970
      %v1972 = vrot.slane %v1861, 2
      %v1973 = vsel %vm1377, %v1970, %v1972
      %v1974 = vrot.slane %v1862, 2
      %v1975 = vrot.slane %v1863, 2
      %v1976 = vsel %vm1377, %v1974, %v1975
      %v1977 = vrot.slane %v1864, 2
      %v1978 = vsel %vm1377, %v1975, %v1977
      %v1979 = vrot.slane %v1865, 2
      %v1980 = vrot.slane %v1866, 2
      %v1981 = vsel %vm1377, %v1979, %v1980
      %v1982 = vrot.slane %v1867, 2
      %v1983 = vsel %vm1377, %v1980, %v1982
      %v1984 = vrot.slane %v1868, 2
      %v1985 = vrot.slane %v1869, 2
      %v1986 = vsel %vm1377, %v1984, %v1985
      %v1987 = vrot.slane %v1870, 2
      %v1988 = vsel %vm1377, %v1985, %v1987
      %v1989 = vrot.slane %v1871, 2
      %v1990 = vrot.slane %v1872, 2
      %v1991 = vsel %vm1377, %v1989, %v1990
      %v1992 = vrot.slane %v1873, 2
      %v1993 = vsel %vm1377, %v1990, %v1992
      %v1994 = vrot.slane %v1874, 2
      %v1995 = vrot.slane %v1875, 2
      %v1996 = vsel %vm1377, %v1994, %v1995
      %v1997 = vrot.slane %v1876, 2
      %v1998 = vsel %vm1377, %v1995, %v1997
      %v1999 = vrot.slane %v1877, 2
      %v2000 = vrot.slane %v1878, 2
      %v2001 = vsel %vm1377, %v1999, %v2000
      %v2002 = vrot.slane %v1879, 2
      %v2003 = vsel %vm1377, %v2000, %v2002
      %v2004 = vrot.slane %v1880, 2
      %v2005 = vrot.slane %v1881, 2
      %v2006 = vsel %vm1377, %v2004, %v2005
      %v2007 = vrot.slane %v1882, 2
      %v2008 = vsel %vm1377, %v2005, %v2007
      %v2009 = vrot.slane %v1883, 2
      %v2010 = vrot.slane %v1884, 2
      %v2011 = vsel %vm1377, %v2009, %v2010
      %v2012 = vrot.slane %v1885, 2
      %v2013 = vsel %vm1377, %v2010, %v2012
      %v2046 = vadd.f32 %v1802, %v1936
      %v2047 = vadd.f32 %v1803, %v1938
      %v2048 = vadd.f32 %v1804, %v1941
      %v2049 = vadd.f32 %v1805, %v1943
      %v2050 = vadd.f32 %v1806, %v1946
      %v2051 = vadd.f32 %v1807, %v1948
      %v2052 = vadd.f32 %v1808, %v1951
      %v2053 = vadd.f32 %v1809, %v1953
      %v2054 = vadd.f32 %v1810, %v1956
      %v2055 = vadd.f32 %v1811, %v1958
      %v2056 = vadd.f32 %v1812, %v1961
      %v2057 = vadd.f32 %v1813, %v1963
      %v2058 = vadd.f32 %v1814, %v1966
      %v2059 = vadd.f32 %v1815, %v1968
      %v2060 = vadd.f32 %v1816, %v1971
      %v2061 = vadd.f32 %v1817, %v1973
      %v2062 = vadd.f32 %v1818, %v1976
      %v2063 = vadd.f32 %v1819, %v1978
      %v2064 = vadd.f32 %v1820, %v1981
      %v2065 = vadd.f32 %v1821, %v1983
      %v2066 = vadd.f32 %v1822, %v1986
      %v2067 = vadd.f32 %v1823, %v1988
      %v2068 = vadd.f32 %v1824, %v1991
      %v2069 = vadd.f32 %v1825, %v1993
      %v2070 = vadd.f32 %v1826, %v1996
      %v2071 = vadd.f32 %v1827, %v1998
      %v2072 = vadd.f32 %v1828, %v2001
      %v2073 = vadd.f32 %v1829, %v2003
      %v2074 = vadd.f32 %v1830, %v2006
      %v2075 = vadd.f32 %v1831, %v2008
      %v2076 = vadd.f32 %v1832, %v2011
      %v2077 = vadd.f32 %v1833, %v2013
      %v2078 = vlaneseq
      %v2079 = vshrl.u32 %v2078, 7
      %v2080 = vsub.s32 0, %v2079
      %v2081 = vrot.slane %v963, %v2080
      %v2082 = vmul.f32 %v913, %v2081
      %v2083 = vmul.f32 %v914, %v2081
      %v2084 = vmul.f32 %v916, %v2081
      %v2085 = vmul.f32 %v917, %v2081
      %v2086 = vmul.f32 %v919, %v2081
      %v2087 = vmul.f32 %v920, %v2081
      %v2088 = vmul.f32 %v922, %v2081
      %v2089 = vmul.f32 %v923, %v2081
      %v2090 = vmul.f32 %v925, %v2081
      %v2091 = vmul.f32 %v926, %v2081
      %v2092 = vmul.f32 %v928, %v2081
      %v2093 = vmul.f32 %v929, %v2081
      %v2094 = vmul.f32 %v931, %v2081
      %v2095 = vmul.f32 %v932, %v2081
      %v2096 = vmul.f32 %v934, %v2081
      %v2097 = vmul.f32 %v935, %v2081
      %v2098 = vmul.f32 %v937, %v2081
      %v2099 = vmul.f32 %v938, %v2081
      %v2100 = vmul.f32 %v940, %v2081
      %v2101 = vmul.f32 %v941, %v2081
      %v2102 = vmul.f32 %v943, %v2081
      %v2103 = vmul.f32 %v944, %v2081
      %v2104 = vmul.f32 %v946, %v2081
      %v2105 = vmul.f32 %v947, %v2081
      %v2106 = vmul.f32 %v949, %v2081
      %v2107 = vmul.f32 %v950, %v2081
      %v2108 = vmul.f32 %v952, %v2081
      %v2109 = vmul.f32 %v953, %v2081
      %v2110 = vmul.f32 %v955, %v2081
      %v2111 = vmul.f32 %v956, %v2081
      %v2112 = vmul.f32 %v958, %v2081
      %v2113 = vmul.f32 %v959, %v2081
      %v2114 = vadd.f32 %v2046, %v2082
      %v2115 = vadd.f32 %v2047, %v2083
      %v2116 = vadd.f32 %v2048, %v2084
      %v2117 = vadd.f32 %v2049, %v2085
      %v2118 = vadd.f32 %v2050, %v2086
      %v2119 = vadd.f32 %v2051, %v2087
      %v2120 = vadd.f32 %v2052, %v2088
      %v2121 = vadd.f32 %v2053, %v2089
      %v2122 = vadd.f32 %v2054, %v2090
      %v2123 = vadd.f32 %v2055, %v2091
      %v2124 = vadd.f32 %v2056, %v2092
      %v2125 = vadd.f32 %v2057, %v2093
      %v2126 = vadd.f32 %v2058, %v2094
      %v2127 = vadd.f32 %v2059, %v2095
      %v2128 = vadd.f32 %v2060, %v2096
      %v2129 = vadd.f32 %v2061, %v2097
      %v2130 = vadd.f32 %v2062, %v2098
      %v2131 = vadd.f32 %v2063, %v2099
      %v2132 = vadd.f32 %v2064, %v2100
      %v2133 = vadd.f32 %v2065, %v2101
      %v2134 = vadd.f32 %v2066, %v2102
      %v2135 = vadd.f32 %v2067, %v2103
      %v2136 = vadd.f32 %v2068, %v2104
      %v2137 = vadd.f32 %v2069, %v2105
      %v2138 = vadd.f32 %v2070, %v2106
      %v2139 = vadd.f32 %v2071, %v2107
      %v2140 = vadd.f32 %v2072, %v2108
      %v2141 = vadd.f32 %v2073, %v2109
      %v2142 = vadd.f32 %v2074, %v2110
      %v2143 = vadd.f32 %v2075, %v2111
      %v2144 = vadd.f32 %v2076, %v2112
      %v2145 = vadd.f32 %v2077, %v2113
      %v2146 = vlaneseq
      %v2147 = vshrl.u32 %v2146, 7
      %v2148 = vsub.s32 1, %v2147
      %v2149 = vrot.slane %v963, %v2148
      %v2150 = vmul.f32 %v913, %v2149
      %v2151 = vmul.f32 %v914, %v2149
      %v2152 = vmul.f32 %v915, %v2149
      %v2153 = vmul.f32 %v916, %v2149
      %v2154 = vmul.f32 %v917, %v2149
      %v2155 = vmul.f32 %v918, %v2149
      %v2156 = vmul.f32 %v919, %v2149
      %v2157 = vmul.f32 %v920, %v2149
      %v2158 = vmul.f32 %v921, %v2149
      %v2159 = vmul.f32 %v922, %v2149
      %v2160 = vmul.f32 %v923, %v2149
      %v2161 = vmul.f32 %v924, %v2149
      %v2162 = vmul.f32 %v925, %v2149
      %v2163 = vmul.f32 %v926, %v2149
      %v2164 = vmul.f32 %v927, %v2149
      %v2165 = vmul.f32 %v928, %v2149
      %v2166 = vmul.f32 %v929, %v2149
      %v2167 = vmul.f32 %v930, %v2149
      %v2168 = vmul.f32 %v931, %v2149
      %v2169 = vmul.f32 %v932, %v2149
      %v2170 = vmul.f32 %v933, %v2149
      %v2171 = vmul.f32 %v934, %v2149
      %v2172 = vmul.f32 %v935, %v2149
      %v2173 = vmul.f32 %v936, %v2149
      %v2174 = vmul.f32 %v937, %v2149
      %v2175 = vmul.f32 %v938, %v2149
      %v2176 = vmul.f32 %v939, %v2149
      %v2177 = vmul.f32 %v940, %v2149
      %v2178 = vmul.f32 %v941, %v2149
      %v2179 = vmul.f32 %v942, %v2149
      %v2180 = vmul.f32 %v943, %v2149
      %v2181 = vmul.f32 %v944, %v2149
      %v2182 = vmul.f32 %v945, %v2149
      %v2183 = vmul.f32 %v946, %v2149
      %v2184 = vmul.f32 %v947, %v2149
      %v2185 = vmul.f32 %v948, %v2149
      %v2186 = vmul.f32 %v949, %v2149
      %v2187 = vmul.f32 %v950, %v2149
      %v2188 = vmul.f32 %v951, %v2149
      %v2189 = vmul.f32 %v952, %v2149
      %v2190 = vmul.f32 %v953, %v2149
      %v2191 = vmul.f32 %v954, %v2149
      %v2192 = vmul.f32 %v955, %v2149
      %v2193 = vmul.f32 %v956, %v2149
      %v2194 = vmul.f32 %v957, %v2149
      %v2195 = vmul.f32 %v958, %v2149
      %v2196 = vmul.f32 %v959, %v2149
      %v2197 = vmul.f32 %v960, %v2149
      %v2246 = vrot.slane %v2150, 1
      %v2247 = vrot.slane %v2151, 1
      %v2248 = vsel %vm1132, %v2246, %v2247
      %v2249 = vrot.slane %v2152, 1
      %v2250 = vsel %vm1132, %v2247, %v2249
      %v2251 = vrot.slane %v2153, 1
      %v2252 = vrot.slane %v2154, 1
      %v2253 = vsel %vm1132, %v2251, %v2252
      %v2254 = vrot.slane %v2155, 1
      %v2255 = vsel %vm1132, %v2252, %v2254
      %v2256 = vrot.slane %v2156, 1
      %v2257 = vrot.slane %v2157, 1
      %v2258 = vsel %vm1132, %v2256, %v2257
      %v2259 = vrot.slane %v2158, 1
      %v2260 = vsel %vm1132, %v2257, %v2259
      %v2261 = vrot.slane %v2159, 1
      %v2262 = vrot.slane %v2160, 1
      %v2263 = vsel %vm1132, %v2261, %v2262
      %v2264 = vrot.slane %v2161, 1
      %v2265 = vsel %vm1132, %v2262, %v2264
      %v2266 = vrot.slane %v2162, 1
      %v2267 = vrot.slane %v2163, 1
      %v2268 = vsel %vm1132, %v2266, %v2267
      %v2269 = vrot.slane %v2164, 1
      %v2270 = vsel %vm1132, %v2267, %v2269
      %v2271 = vrot.slane %v2165, 1
      %v2272 = vrot.slane %v2166, 1
      %v2273 = vsel %vm1132, %v2271, %v2272
      %v2274 = vrot.slane %v2167, 1
      %v2275 = vsel %vm1132, %v2272, %v2274
      %v2276 = vrot.slane %v2168, 1
      %v2277 = vrot.slane %v2169, 1
      %v2278 = vsel %vm1132, %v2276, %v2277
      %v2279 = vrot.slane %v2170, 1
      %v2280 = vsel %vm1132, %v2277, %v2279
      %v2281 = vrot.slane %v2171, 1
      %v2282 = vrot.slane %v2172, 1
      %v2283 = vsel %vm1132, %v2281, %v2282
      %v2284 = vrot.slane %v2173, 1
      %v2285 = vsel %vm1132, %v2282, %v2284
      %v2286 = vrot.slane %v2174, 1
      %v2287 = vrot.slane %v2175, 1
      %v2288 = vsel %vm1132, %v2286, %v2287
      %v2289 = vrot.slane %v2176, 1
      %v2290 = vsel %vm1132, %v2287, %v2289
      %v2291 = vrot.slane %v2177, 1
      %v2292 = vrot.slane %v2178, 1
      %v2293 = vsel %vm1132, %v2291, %v2292
      %v2294 = vrot.slane %v2179, 1
      %v2295 = vsel %vm1132, %v2292, %v2294
      %v2296 = vrot.slane %v2180, 1
      %v2297 = vrot.slane %v2181, 1
      %v2298 = vsel %vm1132, %v2296, %v2297
      %v2299 = vrot.slane %v2182, 1
      %v2300 = vsel %vm1132, %v2297, %v2299
      %v2301 = vrot.slane %v2183, 1
      %v2302 = vrot.slane %v2184, 1
      %v2303 = vsel %vm1132, %v2301, %v2302
      %v2304 = vrot.slane %v2185, 1
      %v2305 = vsel %vm1132, %v2302, %v2304
      %v2306 = vrot.slane %v2186, 1
      %v2307 = vrot.slane %v2187, 1
      %v2308 = vsel %vm1132, %v2306, %v2307
      %v2309 = vrot.slane %v2188, 1
      %v2310 = vsel %vm1132, %v2307, %v2309
      %v2311 = vrot.slane %v2189, 1
      %v2312 = vrot.slane %v2190, 1
      %v2313 = vsel %vm1132, %v2311, %v2312
      %v2314 = vrot.slane %v2191, 1
      %v2315 = vsel %vm1132, %v2312, %v2314
      %v2316 = vrot.slane %v2192, 1
      %v2317 = vrot.slane %v2193, 1
      %v2318 = vsel %vm1132, %v2316, %v2317
      %v2319 = vrot.slane %v2194, 1
      %v2320 = vsel %vm1132, %v2317, %v2319
      %v2321 = vrot.slane %v2195, 1
      %v2322 = vrot.slane %v2196, 1
      %v2323 = vsel %vm1132, %v2321, %v2322
      %v2324 = vrot.slane %v2197, 1
      %v2325 = vsel %vm1132, %v2322, %v2324
      %v2358 = vadd.f32 %v2114, %v2248
      %v2359 = vadd.f32 %v2115, %v2250
      %v2360 = vadd.f32 %v2116, %v2253
      %v2361 = vadd.f32 %v2117, %v2255
      %v2362 = vadd.f32 %v2118, %v2258
      %v2363 = vadd.f32 %v2119, %v2260
      %v2364 = vadd.f32 %v2120, %v2263
      %v2365 = vadd.f32 %v2121, %v2265
      %v2366 = vadd.f32 %v2122, %v2268
      %v2367 = vadd.f32 %v2123, %v2270
      %v2368 = vadd.f32 %v2124, %v2273
      %v2369 = vadd.f32 %v2125, %v2275
      %v2370 = vadd.f32 %v2126, %v2278
      %v2371 = vadd.f32 %v2127, %v2280
      %v2372 = vadd.f32 %v2128, %v2283
      %v2373 = vadd.f32 %v2129, %v2285
      %v2374 = vadd.f32 %v2130, %v2288
      %v2375 = vadd.f32 %v2131, %v2290
      %v2376 = vadd.f32 %v2132, %v2293
      %v2377 = vadd.f32 %v2133, %v2295
      %v2378 = vadd.f32 %v2134, %v2298
      %v2379 = vadd.f32 %v2135, %v2300
      %v2380 = vadd.f32 %v2136, %v2303
      %v2381 = vadd.f32 %v2137, %v2305
      %v2382 = vadd.f32 %v2138, %v2308
      %v2383 = vadd.f32 %v2139, %v2310
      %v2384 = vadd.f32 %v2140, %v2313
      %v2385 = vadd.f32 %v2141, %v2315
      %v2386 = vadd.f32 %v2142, %v2318
      %v2387 = vadd.f32 %v2143, %v2320
      %v2388 = vadd.f32 %v2144, %v2323
      %v2389 = vadd.f32 %v2145, %v2325
      %v2390 = vlaneseq
      %v2391 = vshrl.u32 %v2390, 7
      %v2392 = vsub.s32 2, %v2391
      %v2393 = vrot.slane %v963, %v2392
      %v2394 = vmul.f32 %v913, %v2393
      %v2395 = vmul.f32 %v914, %v2393
      %v2396 = vmul.f32 %v915, %v2393
      %v2397 = vmul.f32 %v916, %v2393
      %v2398 = vmul.f32 %v917, %v2393
      %v2399 = vmul.f32 %v918, %v2393
      %v2400 = vmul.f32 %v919, %v2393
      %v2401 = vmul.f32 %v920, %v2393
      %v2402 = vmul.f32 %v921, %v2393
      %v2403 = vmul.f32 %v922, %v2393
      %v2404 = vmul.f32 %v923, %v2393
      %v2405 = vmul.f32 %v924, %v2393
      %v2406 = vmul.f32 %v925, %v2393
      %v2407 = vmul.f32 %v926, %v2393
      %v2408 = vmul.f32 %v927, %v2393
      %v2409 = vmul.f32 %v928, %v2393
      %v2410 = vmul.f32 %v929, %v2393
      %v2411 = vmul.f32 %v930, %v2393
      %v2412 = vmul.f32 %v931, %v2393
      %v2413 = vmul.f32 %v932, %v2393
      %v2414 = vmul.f32 %v933, %v2393
      %v2415 = vmul.f32 %v934, %v2393
      %v2416 = vmul.f32 %v935, %v2393
      %v2417 = vmul.f32 %v936, %v2393
      %v2418 = vmul.f32 %v937, %v2393
      %v2419 = vmul.f32 %v938, %v2393
      %v2420 = vmul.f32 %v939, %v2393
      %v2421 = vmul.f32 %v940, %v2393
      %v2422 = vmul.f32 %v941, %v2393
      %v2423 = vmul.f32 %v942, %v2393
      %v2424 = vmul.f32 %v943, %v2393
      %v2425 = vmul.f32 %v944, %v2393
      %v2426 = vmul.f32 %v945, %v2393
      %v2427 = vmul.f32 %v946, %v2393
      %v2428 = vmul.f32 %v947, %v2393
      %v2429 = vmul.f32 %v948, %v2393
      %v2430 = vmul.f32 %v949, %v2393
      %v2431 = vmul.f32 %v950, %v2393
      %v2432 = vmul.f32 %v951, %v2393
      %v2433 = vmul.f32 %v952, %v2393
      %v2434 = vmul.f32 %v953, %v2393
      %v2435 = vmul.f32 %v954, %v2393
      %v2436 = vmul.f32 %v955, %v2393
      %v2437 = vmul.f32 %v956, %v2393
      %v2438 = vmul.f32 %v957, %v2393
      %v2439 = vmul.f32 %v958, %v2393
      %v2440 = vmul.f32 %v959, %v2393
      %v2441 = vmul.f32 %v960, %v2393
      %v2490 = vrot.slane %v2394, 2
      %v2491 = vrot.slane %v2395, 2
      %v2492 = vsel %vm1377, %v2490, %v2491
      %v2493 = vrot.slane %v2396, 2
      %v2494 = vsel %vm1377, %v2491, %v2493
      %v2495 = vrot.slane %v2397, 2
      %v2496 = vrot.slane %v2398, 2
      %v2497 = vsel %vm1377, %v2495, %v2496
      %v2498 = vrot.slane %v2399, 2
      %v2499 = vsel %vm1377, %v2496, %v2498
      %v2500 = vrot.slane %v2400, 2
      %v2501 = vrot.slane %v2401, 2
      %v2502 = vsel %vm1377, %v2500, %v2501
      %v2503 = vrot.slane %v2402, 2
      %v2504 = vsel %vm1377, %v2501, %v2503
      %v2505 = vrot.slane %v2403, 2
      %v2506 = vrot.slane %v2404, 2
      %v2507 = vsel %vm1377, %v2505, %v2506
      %v2508 = vrot.slane %v2405, 2
      %v2509 = vsel %vm1377, %v2506, %v2508
      %v2510 = vrot.slane %v2406, 2
      %v2511 = vrot.slane %v2407, 2
      %v2512 = vsel %vm1377, %v2510, %v2511
      %v2513 = vrot.slane %v2408, 2
      %v2514 = vsel %vm1377, %v2511, %v2513
      %v2515 = vrot.slane %v2409, 2
      %v2516 = vrot.slane %v2410, 2
      %v2517 = vsel %vm1377, %v2515, %v2516
      %v2518 = vrot.slane %v2411, 2
      %v2519 = vsel %vm1377, %v2516, %v2518
      %v2520 = vrot.slane %v2412, 2
      %v2521 = vrot.slane %v2413, 2
      %v2522 = vsel %vm1377, %v2520, %v2521
      %v2523 = vrot.slane %v2414, 2
      %v2524 = vsel %vm1377, %v2521, %v2523
      %v2525 = vrot.slane %v2415, 2
      %v2526 = vrot.slane %v2416, 2
      %v2527 = vsel %vm1377, %v2525, %v2526
      %v2528 = vrot.slane %v2417, 2
      %v2529 = vsel %vm1377, %v2526, %v2528
      %v2530 = vrot.slane %v2418, 2
      %v2531 = vrot.slane %v2419, 2
      %v2532 = vsel %vm1377, %v2530, %v2531
      %v2533 = vrot.slane %v2420, 2
      %v2534 = vsel %vm1377, %v2531, %v2533
      %v2535 = vrot.slane %v2421, 2
      %v2536 = vrot.slane %v2422, 2
      %v2537 = vsel %vm1377, %v2535, %v2536
      %v2538 = vrot.slane %v2423, 2
      %v2539 = vsel %vm1377, %v2536, %v2538
      %v2540 = vrot.slane %v2424, 2
      %v2541 = vrot.slane %v2425, 2
      %v2542 = vsel %vm1377, %v2540, %v2541
      %v2543 = vrot.slane %v2426, 2
      %v2544 = vsel %vm1377, %v2541, %v2543
      %v2545 = vrot.slane %v2427, 2
      %v2546 = vrot.slane %v2428, 2
      %v2547 = vsel %vm1377, %v2545, %v2546
      %v2548 = vrot.slane %v2429, 2
      %v2549 = vsel %vm1377, %v2546, %v2548
      %v2550 = vrot.slane %v2430, 2
      %v2551 = vrot.slane %v2431, 2
      %v2552 = vsel %vm1377, %v2550, %v2551
      %v2553 = vrot.slane %v2432, 2
      %v2554 = vsel %vm1377, %v2551, %v2553
      %v2555 = vrot.slane %v2433, 2
      %v2556 = vrot.slane %v2434, 2
      %v2557 = vsel %vm1377, %v2555, %v2556
      %v2558 = vrot.slane %v2435, 2
      %v2559 = vsel %vm1377, %v2556, %v2558
      %v2560 = vrot.slane %v2436, 2
      %v2561 = vrot.slane %v2437, 2
      %v2562 = vsel %vm1377, %v2560, %v2561
      %v2563 = vrot.slane %v2438, 2
      %v2564 = vsel %vm1377, %v2561, %v2563
      %v2565 = vrot.slane %v2439, 2
      %v2566 = vrot.slane %v2440, 2
      %v2567 = vsel %vm1377, %v2565, %v2566
      %v2568 = vrot.slane %v2441, 2
      %v2569 = vsel %vm1377, %v2566, %v2568
      %v2602 = vadd.f32 %v2358, %v2492
      %v2603 = vadd.f32 %v2359, %v2494
      %v2604 = vadd.f32 %v2360, %v2497
      %v2605 = vadd.f32 %v2361, %v2499
      %v2606 = vadd.f32 %v2362, %v2502
      %v2607 = vadd.f32 %v2363, %v2504
      %v2608 = vadd.f32 %v2364, %v2507
      %v2609 = vadd.f32 %v2365, %v2509
      %v2610 = vadd.f32 %v2366, %v2512
      %v2611 = vadd.f32 %v2367, %v2514
      %v2612 = vadd.f32 %v2368, %v2517
      %v2613 = vadd.f32 %v2369, %v2519
      %v2614 = vadd.f32 %v2370, %v2522
      %v2615 = vadd.f32 %v2371, %v2524
      %v2616 = vadd.f32 %v2372, %v2527
      %v2617 = vadd.f32 %v2373, %v2529
      %v2618 = vadd.f32 %v2374, %v2532
      %v2619 = vadd.f32 %v2375, %v2534
      %v2620 = vadd.f32 %v2376, %v2537
      %v2621 = vadd.f32 %v2377, %v2539
      %v2622 = vadd.f32 %v2378, %v2542
      %v2623 = vadd.f32 %v2379, %v2544
      %v2624 = vadd.f32 %v2380, %v2547
      %v2625 = vadd.f32 %v2381, %v2549
      %v2626 = vadd.f32 %v2382, %v2552
      %v2627 = vadd.f32 %v2383, %v2554
      %v2628 = vadd.f32 %v2384, %v2557
      %v2629 = vadd.f32 %v2385, %v2559
      %v2630 = vadd.f32 %v2386, %v2562
      %v2631 = vadd.f32 %v2387, %v2564
      %v2632 = vadd.f32 %v2388, %v2567
      %v2633 = vadd.f32 %v2389, %v2569
      %v2634 = vld [vmem:[%s4] sm:$0x1]
      %v2636 = vlaneseq
      %v2637 = vshrl.u32 %v2636, 7
      %v2638 = vsub.s32 0, %v2637
      %v2639 = vrot.slane %v2634, %v2638
      %v2641 = vadd.f32 %v2602, %v2639
      %v2642 = vadd.f32 %v2603, %v2639
      %v2643 = vadd.f32 %v2604, %v2639
      %v2644 = vadd.f32 %v2605, %v2639
      %v2645 = vadd.f32 %v2606, %v2639
      %v2646 = vadd.f32 %v2607, %v2639
      %v2647 = vadd.f32 %v2608, %v2639
      %v2648 = vadd.f32 %v2609, %v2639
      %v2649 = vadd.f32 %v2610, %v2639
      %v2650 = vadd.f32 %v2611, %v2639
      %v2651 = vadd.f32 %v2612, %v2639
      %v2652 = vadd.f32 %v2613, %v2639
      %v2653 = vadd.f32 %v2614, %v2639
      %v2654 = vadd.f32 %v2615, %v2639
      %v2655 = vadd.f32 %v2616, %v2639
      %v2656 = vadd.f32 %v2617, %v2639
      %v2657 = vadd.f32 %v2618, %v2639
      %v2658 = vadd.f32 %v2619, %v2639
      %v2659 = vadd.f32 %v2620, %v2639
      %v2660 = vadd.f32 %v2621, %v2639
      %v2661 = vadd.f32 %v2622, %v2639
      %v2662 = vadd.f32 %v2623, %v2639
      %v2663 = vadd.f32 %v2624, %v2639
      %v2664 = vadd.f32 %v2625, %v2639
      %v2665 = vadd.f32 %v2626, %v2639
      %v2666 = vadd.f32 %v2627, %v2639
      %v2667 = vadd.f32 %v2628, %v2639
      %v2668 = vadd.f32 %v2629, %v2639
      %v2669 = vadd.f32 %v2630, %v2639
      %v2670 = vadd.f32 %v2631, %v2639
      %v2671 = vadd.f32 %v2632, %v2639
      %v2672 = vadd.f32 %v2633, %v2639
      %v2673 = vmul.f32 %v2641, 0.5
      %v2674 = vmul.f32 %v2642, 0.5
      %v2675 = vmul.f32 %v2643, 0.5
      %v2676 = vmul.f32 %v2644, 0.5
      %v2677 = vmul.f32 %v2645, 0.5
      %v2678 = vmul.f32 %v2646, 0.5
      %v2679 = vmul.f32 %v2647, 0.5
      %v2680 = vmul.f32 %v2648, 0.5
      %v2681 = vmul.f32 %v2649, 0.5
      %v2682 = vmul.f32 %v2650, 0.5
      %v2683 = vmul.f32 %v2651, 0.5
      %v2684 = vmul.f32 %v2652, 0.5
      %v2685 = vmul.f32 %v2653, 0.5
      %v2686 = vmul.f32 %v2654, 0.5
      %v2687 = vmul.f32 %v2655, 0.5
      %v2688 = vmul.f32 %v2656, 0.5
      %v2689 = vmul.f32 %v2657, 0.5
      %v2690 = vmul.f32 %v2658, 0.5
      %v2691 = vmul.f32 %v2659, 0.5
      %v2692 = vmul.f32 %v2660, 0.5
      %v2693 = vmul.f32 %v2661, 0.5
      %v2694 = vmul.f32 %v2662, 0.5
      %v2695 = vmul.f32 %v2663, 0.5
      %v2696 = vmul.f32 %v2664, 0.5
      %v2697 = vmul.f32 %v2665, 0.5
      %v2698 = vmul.f32 %v2666, 0.5
      %v2699 = vmul.f32 %v2667, 0.5
      %v2700 = vmul.f32 %v2668, 0.5
      %v2701 = vmul.f32 %v2669, 0.5
      %v2702 = vmul.f32 %v2670, 0.5
      %v2703 = vmul.f32 %v2671, 0.5
      %v2704 = vmul.f32 %v2672, 0.5
      %v2705 = vtanh.pop %v2673
      %v2706 = vtanh.pop %v2674
      %v2707 = vtanh.pop %v2675
      %v2708 = vtanh.pop %v2676
      %v2709 = vtanh.pop %v2677
      %v2710 = vtanh.pop %v2678
      %v2711 = vtanh.pop %v2679
      %v2712 = vtanh.pop %v2680
      %v2713 = vtanh.pop %v2681
      %v2714 = vtanh.pop %v2682
      %v2715 = vtanh.pop %v2683
      %v2716 = vtanh.pop %v2684
      %v2717 = vtanh.pop %v2685
      %v2718 = vtanh.pop %v2686
      %v2719 = vtanh.pop %v2687
      %v2720 = vtanh.pop %v2688
      %v2721 = vtanh.pop %v2689
      %v2722 = vtanh.pop %v2690
      %v2723 = vtanh.pop %v2691
      %v2724 = vtanh.pop %v2692
      %v2725 = vtanh.pop %v2693
      %v2726 = vtanh.pop %v2694
      %v2727 = vtanh.pop %v2695
      %v2728 = vtanh.pop %v2696
      %v2729 = vtanh.pop %v2697
      %v2730 = vtanh.pop %v2698
      %v2731 = vtanh.pop %v2699
      %v2732 = vtanh.pop %v2700
      %v2733 = vtanh.pop %v2701
      %v2734 = vtanh.pop %v2702
      %v2735 = vtanh.pop %v2703
      %v2736 = vtanh.pop %v2704
      %v2737 = vadd.f32 %v2705, 1.0
      %v2738 = vadd.f32 %v2706, 1.0
      %v2739 = vadd.f32 %v2707, 1.0
      %v2740 = vadd.f32 %v2708, 1.0
      %v2741 = vadd.f32 %v2709, 1.0
      %v2742 = vadd.f32 %v2710, 1.0
      %v2743 = vadd.f32 %v2711, 1.0
      %v2744 = vadd.f32 %v2712, 1.0
      %v2745 = vadd.f32 %v2713, 1.0
      %v2746 = vadd.f32 %v2714, 1.0
      %v2747 = vadd.f32 %v2715, 1.0
      %v2748 = vadd.f32 %v2716, 1.0
      %v2749 = vadd.f32 %v2717, 1.0
      %v2750 = vadd.f32 %v2718, 1.0
      %v2751 = vadd.f32 %v2719, 1.0
      %v2752 = vadd.f32 %v2720, 1.0
      %v2753 = vadd.f32 %v2721, 1.0
      %v2754 = vadd.f32 %v2722, 1.0
      %v2755 = vadd.f32 %v2723, 1.0
      %v2756 = vadd.f32 %v2724, 1.0
      %v2757 = vadd.f32 %v2725, 1.0
      %v2758 = vadd.f32 %v2726, 1.0
      %v2759 = vadd.f32 %v2727, 1.0
      %v2760 = vadd.f32 %v2728, 1.0
      %v2761 = vadd.f32 %v2729, 1.0
      %v2762 = vadd.f32 %v2730, 1.0
      %v2763 = vadd.f32 %v2731, 1.0
      %v2764 = vadd.f32 %v2732, 1.0
      %v2765 = vadd.f32 %v2733, 1.0
      %v2766 = vadd.f32 %v2734, 1.0
      %v2767 = vadd.f32 %v2735, 1.0
      %v2768 = vadd.f32 %v2736, 1.0
      %v2769 = vmul.f32 %v2737, 0.5
      %v2770 = vmul.f32 %v2738, 0.5
      %v2771 = vmul.f32 %v2739, 0.5
      %v2772 = vmul.f32 %v2740, 0.5
      %v2773 = vmul.f32 %v2741, 0.5
      %v2774 = vmul.f32 %v2742, 0.5
      %v2775 = vmul.f32 %v2743, 0.5
      %v2776 = vmul.f32 %v2744, 0.5
      %v2777 = vmul.f32 %v2745, 0.5
      %v2778 = vmul.f32 %v2746, 0.5
      %v2779 = vmul.f32 %v2747, 0.5
      %v2780 = vmul.f32 %v2748, 0.5
      %v2781 = vmul.f32 %v2749, 0.5
      %v2782 = vmul.f32 %v2750, 0.5
      %v2783 = vmul.f32 %v2751, 0.5
      %v2784 = vmul.f32 %v2752, 0.5
      %v2785 = vmul.f32 %v2753, 0.5
      %v2786 = vmul.f32 %v2754, 0.5
      %v2787 = vmul.f32 %v2755, 0.5
      %v2788 = vmul.f32 %v2756, 0.5
      %v2789 = vmul.f32 %v2757, 0.5
      %v2790 = vmul.f32 %v2758, 0.5
      %v2791 = vmul.f32 %v2759, 0.5
      %v2792 = vmul.f32 %v2760, 0.5
      %v2793 = vmul.f32 %v2761, 0.5
      %v2794 = vmul.f32 %v2762, 0.5
      %v2795 = vmul.f32 %v2763, 0.5
      %v2796 = vmul.f32 %v2764, 0.5
      %v2797 = vmul.f32 %v2765, 0.5
      %v2798 = vmul.f32 %v2766, 0.5
      %v2799 = vmul.f32 %v2767, 0.5
      %v2800 = vmul.f32 %v2768, 0.5
      %v2801 = vmul.f32 %v2641, %v2769
      %v2802 = vmul.f32 %v2642, %v2770
      %v2803 = vmul.f32 %v2643, %v2771
      %v2804 = vmul.f32 %v2644, %v2772
      %v2805 = vmul.f32 %v2645, %v2773
      %v2806 = vmul.f32 %v2646, %v2774
      %v2807 = vmul.f32 %v2647, %v2775
      %v2808 = vmul.f32 %v2648, %v2776
      %v2809 = vmul.f32 %v2649, %v2777
      %v2810 = vmul.f32 %v2650, %v2778
      %v2811 = vmul.f32 %v2651, %v2779
      %v2812 = vmul.f32 %v2652, %v2780
      %v2813 = vmul.f32 %v2653, %v2781
      %v2814 = vmul.f32 %v2654, %v2782
      %v2815 = vmul.f32 %v2655, %v2783
      %v2816 = vmul.f32 %v2656, %v2784
      %v2817 = vmul.f32 %v2657, %v2785
      %v2818 = vmul.f32 %v2658, %v2786
      %v2819 = vmul.f32 %v2659, %v2787
      %v2820 = vmul.f32 %v2660, %v2788
      %v2821 = vmul.f32 %v2661, %v2789
      %v2822 = vmul.f32 %v2662, %v2790
      %v2823 = vmul.f32 %v2663, %v2791
      %v2824 = vmul.f32 %v2664, %v2792
      %v2825 = vmul.f32 %v2665, %v2793
      %v2826 = vmul.f32 %v2666, %v2794
      %v2827 = vmul.f32 %v2667, %v2795
      %v2828 = vmul.f32 %v2668, %v2796
      %v2829 = vmul.f32 %v2669, %v2797
      %v2830 = vmul.f32 %v2670, %v2798
      %v2831 = vmul.f32 %v2671, %v2799
      %v2832 = vmul.f32 %v2672, %v2800
      %v2833 = vsel %vm818, %v2801, 0.0
      %v2834 = vsel %vm818, %v2802, 0.0
      %v2835 = vadd.f32 %v2833, %v2834
      %v2836 = vsel %vm818, %v2803, 0.0
      %v2837 = vadd.f32 %v2835, %v2836
      %v2838 = vsel %vm818, %v2804, 0.0
      %v2839 = vadd.f32 %v2837, %v2838
      %v2840 = vsel %vm818, %v2805, 0.0
      %v2841 = vadd.f32 %v2839, %v2840
      %v2842 = vsel %vm818, %v2806, 0.0
      %v2843 = vadd.f32 %v2841, %v2842
      %v2844 = vsel %vm818, %v2807, 0.0
      %v2845 = vadd.f32 %v2843, %v2844
      %v2846 = vsel %vm818, %v2808, 0.0
      %v2847 = vadd.f32 %v2845, %v2846
      %v2848 = vsel %vm818, %v2809, 0.0
      %v2849 = vadd.f32 %v2847, %v2848
      %v2850 = vsel %vm818, %v2810, 0.0
      %v2851 = vadd.f32 %v2849, %v2850
      %v2852 = vsel %vm818, %v2811, 0.0
      %v2853 = vadd.f32 %v2851, %v2852
      %v2854 = vsel %vm818, %v2812, 0.0
      %v2855 = vadd.f32 %v2853, %v2854
      %v2856 = vsel %vm818, %v2813, 0.0
      %v2857 = vadd.f32 %v2855, %v2856
      %v2858 = vsel %vm818, %v2814, 0.0
      %v2859 = vadd.f32 %v2857, %v2858
      %v2860 = vsel %vm818, %v2815, 0.0
      %v2861 = vadd.f32 %v2859, %v2860
      %v2862 = vsel %vm818, %v2816, 0.0
      %v2863 = vadd.f32 %v2861, %v2862
      %v2864 = vsel %vm818, %v2817, 0.0
      %v2865 = vadd.f32 %v2863, %v2864
      %v2866 = vsel %vm818, %v2818, 0.0
      %v2867 = vadd.f32 %v2865, %v2866
      %v2868 = vsel %vm818, %v2819, 0.0
      %v2869 = vadd.f32 %v2867, %v2868
      %v2870 = vsel %vm818, %v2820, 0.0
      %v2871 = vadd.f32 %v2869, %v2870
      %v2872 = vsel %vm818, %v2821, 0.0
      %v2873 = vadd.f32 %v2871, %v2872
      %v2874 = vsel %vm818, %v2822, 0.0
      %v2875 = vadd.f32 %v2873, %v2874
      %v2876 = vsel %vm818, %v2823, 0.0
      %v2877 = vadd.f32 %v2875, %v2876
      %v2878 = vsel %vm818, %v2824, 0.0
      %v2879 = vadd.f32 %v2877, %v2878
      %v2880 = vsel %vm818, %v2825, 0.0
      %v2881 = vadd.f32 %v2879, %v2880
      %v2882 = vsel %vm818, %v2826, 0.0
      %v2883 = vadd.f32 %v2881, %v2882
      %v2884 = vsel %vm818, %v2827, 0.0
      %v2885 = vadd.f32 %v2883, %v2884
      %v2886 = vsel %vm818, %v2828, 0.0
      %v2887 = vadd.f32 %v2885, %v2886
      %v2888 = vsel %vm818, %v2829, 0.0
      %v2889 = vadd.f32 %v2887, %v2888
      %v2890 = vsel %vm818, %v2830, 0.0
      %v2891 = vadd.f32 %v2889, %v2890
      %v2892 = vsel %vm818, %v2831, 0.0
      %v2893 = vadd.f32 %v2891, %v2892
      %v2894 = vsel %vm818, %v2832, 0.0
      %v2895 = vadd.f32 %v2893, %v2894
      %v2896 = vrot.slane %v2895, 4
      %v2897 = vadd.f32 %v2895, %v2896
      %v2898 = vrot.slane %v2897, 2
      %v2899 = vadd.f32 %v2897, %v2898
      %v2900 = vrot.slane %v2899, 1
      %v2901 = vadd.f32 %v2899, %v2900
      %v2902 = vrcp.pop 256.0
      %v2903 = vmul.f32 %v2901, %v2902
      %v2904 = vld [vmem:[%s5] sm:$0xff]
      %v2905 = vld [vmem:[%s5 + $0x8] sm:$0xff]
      %v2906 = vld [vmem:[%s5 + $0x10] sm:$0xff]
      %v2907 = vld [vmem:[%s5 + $0x18] sm:$0xff]
      %v2908 = vld [vmem:[%s6] sm:$0x1]
      %v2910 = vsel %vm818, %v2903, 0
      %2912 = vmatprep.subr.mxu0 0.0
      %2913 = vmatpush1.msra.mxu0 0.0
      %2914 = vmatprep.subr.mxu0 0.0
      %2915 = vmatpush1.msra.mxu0 0.0
      %2916 = vmatprep.subr.mxu0 0.0
      %2917 = vmatpush1.msra.mxu0 0.0
      %2918 = vmatprep.subr.mxu0 0.0
      %2919 = vmatpush1.msra.mxu0 0.0
      %2920 = vmatprep.subr.mxu0 0.0
      %2921 = vmatpush1.msra.mxu0 0.0
      %2922 = vmatprep.subr.mxu0 0.0
      %2923 = vmatpush1.msra.mxu0 0.0
      %2924 = vmatprep.subr.mxu0 0.0
      %2925 = vmatpush1.msra.mxu0 0.0
      %2926 = vmatprep.subr.mxu0 0.0
      %2927 = vmatpush1.msra.mxu0 0.0
      %2928 = vmatprep.subr.mxu0 0.0
      %2929 = vmatpush1.msra.mxu0 0.0
      %2930 = vmatprep.subr.mxu0 0.0
      %2931 = vmatpush1.msra.mxu0 0.0
      %2932 = vmatprep.subr.mxu0 0.0
      %2933 = vmatpush1.msra.mxu0 0.0
      %2934 = vmatprep.subr.mxu0 0.0
      %2935 = vmatpush1.msra.mxu0 0.0
      %2936 = vmatprep.subr.mxu0 0.0
      %2937 = vmatpush1.msra.mxu0 %v2907
      %2938 = vmatprep.subr.mxu0 0.0
      %2939 = vmatpush1.msra.mxu0 %v2906
      %2940 = vmatprep.subr.mxu0 0.0
      %2941 = vmatpush1.msra.mxu0 %v2905
      %2942 = vmatprep.subr.mxu0 0.0
      %2943 = vmatpush1.msra.mxu0 %v2904
      %2944 = vmatprep.subr.mxu0 0.0
      %2945 = vmatpush2.msra.mxu0 0.0
      %2946 = vmatprep.subr.mxu0 0.0
      %2947 = vmatpush2.msra.mxu0 0.0
      %2948 = vmatprep.subr.mxu0 0.0
      %2949 = vmatpush2.msra.mxu0 0.0
      %2950 = vmatprep.subr.mxu0 0.0
      %2951 = vmatpush2.msra.mxu0 0.0
      %2952 = vmatprep.subr.mxu0 0.0
      %2953 = vmatpush2.msra.mxu0 0.0
      %2954 = vmatprep.subr.mxu0 0.0
      %2955 = vmatpush2.msra.mxu0 0.0
      %2956 = vmatprep.subr.mxu0 0.0
      %2957 = vmatpush2.msra.mxu0 0.0
      %2958 = vmatprep.subr.mxu0 0.0
      %2959 = vmatpush2.msra.mxu0 0.0
      %2960 = vmatprep.subr.mxu0 0.0
      %2961 = vmatpush2.msra.mxu0 0.0
      %2962 = vmatprep.subr.mxu0 0.0
      %2963 = vmatpush2.msra.mxu0 0.0
      %2964 = vmatprep.subr.mxu0 0.0
      %2965 = vmatpush2.msra.mxu0 0.0
      %2966 = vmatprep.subr.mxu0 0.0
      %2967 = vmatpush2.msra.mxu0 0.0
      %2968 = vmatprep.subr.mxu0 0.0
      %2969 = vmatpush2.msra.mxu0 0.0
      %2970 = vmatprep.subr.mxu0 0.0
      %2971 = vmatpush2.msra.mxu0 0.0
      %2972 = vmatprep.subr.mxu0 0.0
      %2973 = vmatpush2.msra.mxu0 0.0
      %2974 = vmatprep.subr.mxu0 0.0
      %2975 = vmatpush2.msra.mxu0 0.0
      %2976 = vmatprep.mubr.f32.mxu0 0.0
      %2977 = vmatmul.mubr.f32.gmra.mxu0 %v2910
      %v2978 = vpop.f32.mrf.mxu0
      %v2979 = vadd.f32 %v2908, %v2978
      %v2980 = vpop.f32.mrf.mxu0
      %2981 = vdwg.mxu0
      %v2982 = vmul.f32 %v2979, 0.5
      %v2983 = vtanh.pop %v2982
      %v2984 = vadd.f32 %v2983, 1.0
      %v2985 = vmul.f32 %v2984, 0.5
      %v2986 = vmul.f32 %v2979, %v2985
      %v2987 = vld [vmem:[%s7] sm:$0x3]
      %v2988 = vld [vmem:[%s8] sm:$0x1]
      %vm2989 = vcmask 15360
      %v2991 = vsel %vm2989, %v2986, 0
      %vm2993 = vcmask 1041408
      %v2995 = vsel %vm2993, %v2987, 0
      %2997 = vmatprep.subr.mxu0 0.0
      %2998 = vmatpush1.msra.mxu0 0.0
      %2999 = vmatprep.subr.mxu0 0.0
      %3000 = vmatpush1.msra.mxu0 0.0
      %3001 = vmatprep.subr.mxu0 0.0
      %3002 = vmatpush1.msra.mxu0 0.0
      %3003 = vmatprep.subr.mxu0 0.0
      %3004 = vmatpush1.msra.mxu0 0.0
      %3005 = vmatprep.subr.mxu0 0.0
      %3006 = vmatpush1.msra.mxu0 0.0
      %3007 = vmatprep.subr.mxu0 0.0
      %3008 = vmatpush1.msra.mxu0 0.0
      %3009 = vmatprep.subr.mxu0 0.0
      %3010 = vmatpush1.msra.mxu0 0.0
      %3011 = vmatprep.subr.mxu0 0.0
      %3012 = vmatpush1.msra.mxu0 0.0
      %3013 = vmatprep.subr.mxu0 0.0
      %3014 = vmatpush1.msra.mxu0 0.0
      %3015 = vmatprep.subr.mxu0 0.0
      %3016 = vmatpush1.msra.mxu0 0.0
      %3017 = vmatprep.subr.mxu0 0.0
      %3018 = vmatpush1.msra.mxu0 0.0
      %3019 = vmatprep.subr.mxu0 0.0
      %3020 = vmatpush1.msra.mxu0 0.0
      %3021 = vmatprep.subr.mxu0 0.0
      %3022 = vmatpush1.msra.mxu0 0.0
      %3023 = vmatprep.subr.mxu0 0.0
      %3024 = vmatpush1.msra.mxu0 0.0
      %3025 = vmatprep.subr.mxu0 0.0
      %3026 = vmatpush1.msra.mxu0 0.0
      %3027 = vmatprep.subr.mxu0 0.0
      %3028 = vmatpush1.msra.mxu0 %v2995
      %3029 = vmatprep.subr.mxu0 0.0
      %3030 = vmatpush2.msra.mxu0 0.0
      %3031 = vmatprep.subr.mxu0 0.0
      %3032 = vmatpush2.msra.mxu0 0.0
      %3033 = vmatprep.subr.mxu0 0.0
      %3034 = vmatpush2.msra.mxu0 0.0
      %3035 = vmatprep.subr.mxu0 0.0
      %3036 = vmatpush2.msra.mxu0 0.0
      %3037 = vmatprep.subr.mxu0 0.0
      %3038 = vmatpush2.msra.mxu0 0.0
      %3039 = vmatprep.subr.mxu0 0.0
      %3040 = vmatpush2.msra.mxu0 0.0
      %3041 = vmatprep.subr.mxu0 0.0
      %3042 = vmatpush2.msra.mxu0 0.0
      %3043 = vmatprep.subr.mxu0 0.0
      %3044 = vmatpush2.msra.mxu0 0.0
      %3045 = vmatprep.subr.mxu0 0.0
      %3046 = vmatpush2.msra.mxu0 0.0
      %3047 = vmatprep.subr.mxu0 0.0
      %3048 = vmatpush2.msra.mxu0 0.0
      %3049 = vmatprep.subr.mxu0 0.0
      %3050 = vmatpush2.msra.mxu0 0.0
      %3051 = vmatprep.subr.mxu0 0.0
      %3052 = vmatpush2.msra.mxu0 0.0
      %3053 = vmatprep.subr.mxu0 0.0
      %3054 = vmatpush2.msra.mxu0 0.0
      %3055 = vmatprep.subr.mxu0 0.0
      %3056 = vmatpush2.msra.mxu0 0.0
      %3057 = vmatprep.subr.mxu0 0.0
      %3058 = vmatpush2.msra.mxu0 0.0
      %3059 = vmatprep.subr.mxu0 0.0
      %3060 = vmatpush2.msra.mxu0 0.0
      %3061 = vmatprep.mubr.f32.mxu0 0.0
      %3062 = vmatmul.mubr.f32.gmra.mxu0 %v2991
      %v3063 = vpop.f32.mrf.mxu0
      %v3064 = vadd.f32 %v2988, %v3063
      %v3065 = vpop.f32.mrf.mxu0
      %3066 = vdwg.mxu0
      %v3067 = vmul.f32 %v3064, 0.5
      %v3068 = vtanh.pop %v3067
      %v3069 = vadd.f32 %v3068, 1.0
      %v3070 = vmul.f32 %v3069, 0.5
      %v3071 = vlaneseq
      %v3072 = vshrl.u32 %v3071, 7
      %v3073 = vsub.s32 0, %v3072
      %v3074 = vrot.slane %v3070, %v3073
      %v3075 = vmul.f32 %v2801, %v3074
      %v3076 = vmul.f32 %v2802, %v3074
      %v3077 = vmul.f32 %v2803, %v3074
      %v3078 = vmul.f32 %v2804, %v3074
      %v3079 = vmul.f32 %v2805, %v3074
      %v3080 = vmul.f32 %v2806, %v3074
      %v3081 = vmul.f32 %v2807, %v3074
      %v3082 = vmul.f32 %v2808, %v3074
      %v3083 = vmul.f32 %v2809, %v3074
      %v3084 = vmul.f32 %v2810, %v3074
      %v3085 = vmul.f32 %v2811, %v3074
      %v3086 = vmul.f32 %v2812, %v3074
      %v3087 = vmul.f32 %v2813, %v3074
      %v3088 = vmul.f32 %v2814, %v3074
      %v3089 = vmul.f32 %v2815, %v3074
      %v3090 = vmul.f32 %v2816, %v3074
      %v3091 = vmul.f32 %v2817, %v3074
      %v3092 = vmul.f32 %v2818, %v3074
      %v3093 = vmul.f32 %v2819, %v3074
      %v3094 = vmul.f32 %v2820, %v3074
      %v3095 = vmul.f32 %v2821, %v3074
      %v3096 = vmul.f32 %v2822, %v3074
      %v3097 = vmul.f32 %v2823, %v3074
      %v3098 = vmul.f32 %v2824, %v3074
      %v3099 = vmul.f32 %v2825, %v3074
      %v3100 = vmul.f32 %v2826, %v3074
      %v3101 = vmul.f32 %v2827, %v3074
      %v3102 = vmul.f32 %v2828, %v3074
      %v3103 = vmul.f32 %v2829, %v3074
      %v3104 = vmul.f32 %v2830, %v3074
      %v3105 = vmul.f32 %v2831, %v3074
      %v3106 = vmul.f32 %v2832, %v3074
      %v3107 = vpack.c.bf16 %v3076, %v3075
      %v3108 = vpack.c.bf16 %v3078, %v3077
      %v3109 = vpack.c.bf16 %v3080, %v3079
      %v3110 = vpack.c.bf16 %v3082, %v3081
      %v3111 = vpack.c.bf16 %v3084, %v3083
      %v3112 = vpack.c.bf16 %v3086, %v3085
      %v3113 = vpack.c.bf16 %v3088, %v3087
      %v3114 = vpack.c.bf16 %v3090, %v3089
      %v3115 = vpack.c.bf16 %v3092, %v3091
      %v3116 = vpack.c.bf16 %v3094, %v3093
      %v3117 = vpack.c.bf16 %v3096, %v3095
      %v3118 = vpack.c.bf16 %v3098, %v3097
      %v3119 = vpack.c.bf16 %v3100, %v3099
      %v3120 = vpack.c.bf16 %v3102, %v3101
      %v3121 = vpack.c.bf16 %v3104, %v3103
      %v3122 = vpack.c.bf16 %v3106, %v3105
      %v3123 = vld [vmem:[%s9] sm:$0xf]
      %v3124 = vld [vmem:[%s9 + $0x4] sm:$0xf]
      %v3125 = vld [vmem:[%s9 + $0x8] sm:$0xf]
      %v3126 = vld [vmem:[%s9 + $0xc] sm:$0xf]
      %v3127 = vld [vmem:[%s10] sm:$0x1]
      %v3129 = vlaneseq
      %v3130 = vshrl.u32 %v3129, 7
      %v3131 = vsub.s32 0, %v3130
      %v3132 = vrot.slane %v3127, %v3131
      %v3138 = vunpack.c.l.b16 %v3123
      %v3139 = vunpack.c.l.b16 %v3124
      %v3140 = vunpack.c.l.b16 %v3125
      %v3141 = vunpack.c.l.b16 %v3126
      %v3142 = vpack.c.b16 %v3139, %v3138
      %v3143 = vpack.c.b16 %v3141, %v3140
      %v3147 = vsel %vm818, %v3107, 0
      %v3150 = vsel %vm818, %v3108, 0
      %v3153 = vsel %vm818, %v3109, 0
      %v3156 = vsel %vm818, %v3110, 0
      %v3159 = vsel %vm818, %v3111, 0
      %v3162 = vsel %vm818, %v3112, 0
      %v3165 = vsel %vm818, %v3113, 0
      %v3168 = vsel %vm818, %v3114, 0
      %v3171 = vsel %vm818, %v3115, 0
      %v3174 = vsel %vm818, %v3116, 0
      %v3177 = vsel %vm818, %v3117, 0
      %v3180 = vsel %vm818, %v3118, 0
      %v3183 = vsel %vm818, %v3119, 0
      %v3186 = vsel %vm818, %v3120, 0
      %v3189 = vsel %vm818, %v3121, 0
      %v3192 = vsel %vm818, %v3122, 0
      %3194 = vmatprep.subr.bf16.mxu0 0
      %3195 = vmatpush1.bf16.msra.mxu0 0
      %3196 = vmatprep.subr.bf16.mxu0 0
      %3197 = vmatpush1.bf16.msra.mxu0 0
      %3198 = vmatprep.subr.bf16.mxu0 0
      %3199 = vmatpush1.bf16.msra.mxu0 0
      %3200 = vmatprep.subr.bf16.mxu0 0
      %3201 = vmatpush1.bf16.msra.mxu0 0
      %3202 = vmatprep.subr.bf16.mxu0 0
      %3203 = vmatpush1.bf16.msra.mxu0 0
      %3204 = vmatprep.subr.bf16.mxu0 0
      %3205 = vmatpush1.bf16.msra.mxu0 0
      %3206 = vmatprep.subr.bf16.mxu0 0
      %3207 = vmatpush1.bf16.msra.mxu0 %v3143
      %3208 = vmatprep.subr.bf16.mxu0 0
      %3209 = vmatpush1.bf16.msra.mxu0 %v3142
      %3210 = vmatprep.subr.bf16.mxu0 0
      %3211 = vmatpush2.bf16.msra.mxu0 0
      %3212 = vmatprep.subr.bf16.mxu0 0
      %3213 = vmatpush2.bf16.msra.mxu0 0
      %3214 = vmatprep.subr.bf16.mxu0 0
      %3215 = vmatpush2.bf16.msra.mxu0 0
      %3216 = vmatprep.subr.bf16.mxu0 0
      %3217 = vmatpush2.bf16.msra.mxu0 0
      %3218 = vmatprep.subr.bf16.mxu0 0
      %3219 = vmatpush2.bf16.msra.mxu0 0
      %3220 = vmatprep.subr.bf16.mxu0 0
      %3221 = vmatpush2.bf16.msra.mxu0 0
      %3222 = vmatprep.subr.bf16.mxu0 0
      %3223 = vmatpush2.bf16.msra.mxu0 0
      %3224 = vmatprep.subr.bf16.mxu0 0
      %3225 = vmatpush2.bf16.msra.mxu0 0
      %3226 = vmatprep.mubr.bf16.mxu0 0
      %3227 = vmatmul.mubr.bf16.gmra.mxu0 %v3147
      %v3228 = vpop.f32.mrf.mxu0
      %v3229 = vadd.f32 %v3132, %v3228
      %v3230 = vpop.f32.mrf.mxu0
      %v3231 = vpop.f32.mrf.mxu0
      %v3232 = vadd.f32 %v3132, %v3231
      %v3233 = vpop.f32.mrf.mxu0
      %3234 = vmatprep.mubr.bf16.mxu0 0
      %3235 = vmatmul.mubr.bf16.gmra.mxu0 %v3150
      %v3236 = vpop.f32.mrf.mxu0
      %v3237 = vadd.f32 %v3132, %v3236
      %v3238 = vpop.f32.mrf.mxu0
      %v3239 = vpop.f32.mrf.mxu0
      %v3240 = vadd.f32 %v3132, %v3239
      %v3241 = vpop.f32.mrf.mxu0
      %3242 = vmatprep.mubr.bf16.mxu0 0
      %3243 = vmatmul.mubr.bf16.gmra.mxu0 %v3153
      %v3244 = vpop.f32.mrf.mxu0
      %v3245 = vadd.f32 %v3132, %v3244
      %v3246 = vpop.f32.mrf.mxu0
      %v3247 = vpop.f32.mrf.mxu0
      %v3248 = vadd.f32 %v3132, %v3247
      %v3249 = vpop.f32.mrf.mxu0
      %3250 = vmatprep.mubr.bf16.mxu0 0
      %3251 = vmatmul.mubr.bf16.gmra.mxu0 %v3156
      %v3252 = vpop.f32.mrf.mxu0
      %v3253 = vadd.f32 %v3132, %v3252
      %v3254 = vpop.f32.mrf.mxu0
      %v3255 = vpop.f32.mrf.mxu0
      %v3256 = vadd.f32 %v3132, %v3255
      %v3257 = vpop.f32.mrf.mxu0
      %3258 = vmatprep.mubr.bf16.mxu0 0
      %3259 = vmatmul.mubr.bf16.gmra.mxu0 %v3159
      %v3260 = vpop.f32.mrf.mxu0
      %v3261 = vadd.f32 %v3132, %v3260
      %v3262 = vpop.f32.mrf.mxu0
      %v3263 = vpop.f32.mrf.mxu0
      %v3264 = vadd.f32 %v3132, %v3263
      %v3265 = vpop.f32.mrf.mxu0
      %3266 = vmatprep.mubr.bf16.mxu0 0
      %3267 = vmatmul.mubr.bf16.gmra.mxu0 %v3162
      %v3268 = vpop.f32.mrf.mxu0
      %v3269 = vadd.f32 %v3132, %v3268
      %v3270 = vpop.f32.mrf.mxu0
      %v3271 = vpop.f32.mrf.mxu0
      %v3272 = vadd.f32 %v3132, %v3271
      %v3273 = vpop.f32.mrf.mxu0
      %3274 = vmatprep.mubr.bf16.mxu0 0
      %3275 = vmatmul.mubr.bf16.gmra.mxu0 %v3165
      %v3276 = vpop.f32.mrf.mxu0
      %v3277 = vadd.f32 %v3132, %v3276
      %v3278 = vpop.f32.mrf.mxu0
      %v3279 = vpop.f32.mrf.mxu0
      %v3280 = vadd.f32 %v3132, %v3279
      %v3281 = vpop.f32.mrf.mxu0
      %3282 = vmatprep.mubr.bf16.mxu0 0
      %3283 = vmatmul.mubr.bf16.gmra.mxu0 %v3168
      %v3284 = vpop.f32.mrf.mxu0
      %v3285 = vadd.f32 %v3132, %v3284
      %v3286 = vpop.f32.mrf.mxu0
      %v3287 = vpop.f32.mrf.mxu0
      %v3288 = vadd.f32 %v3132, %v3287
      %v3289 = vpop.f32.mrf.mxu0
      %3290 = vmatprep.mubr.bf16.mxu0 0
      %3291 = vmatmul.mubr.bf16.gmra.mxu0 %v3171
      %v3292 = vpop.f32.mrf.mxu0
      %v3293 = vadd.f32 %v3132, %v3292
      %v3294 = vpop.f32.mrf.mxu0
      %v3295 = vpop.f32.mrf.mxu0
      %v3296 = vadd.f32 %v3132, %v3295
      %v3297 = vpop.f32.mrf.mxu0
      %3298 = vmatprep.mubr.bf16.mxu0 0
      %3299 = vmatmul.mubr.bf16.gmra.mxu0 %v3174
      %v3300 = vpop.f32.mrf.mxu0
      %v3301 = vadd.f32 %v3132, %v3300
      %v3302 = vpop.f32.mrf.mxu0
      %v3303 = vpop.f32.mrf.mxu0
      %v3304 = vadd.f32 %v3132, %v3303
      %v3305 = vpop.f32.mrf.mxu0
      %3306 = vmatprep.mubr.bf16.mxu0 0
      %3307 = vmatmul.mubr.bf16.gmra.mxu0 %v3177
      %v3308 = vpop.f32.mrf.mxu0
      %v3309 = vadd.f32 %v3132, %v3308
      %v3310 = vpop.f32.mrf.mxu0
      %v3311 = vpop.f32.mrf.mxu0
      %v3312 = vadd.f32 %v3132, %v3311
      %v3313 = vpop.f32.mrf.mxu0
      %3314 = vmatprep.mubr.bf16.mxu0 0
      %3315 = vmatmul.mubr.bf16.gmra.mxu0 %v3180
      %v3316 = vpop.f32.mrf.mxu0
      %v3317 = vadd.f32 %v3132, %v3316
      %v3318 = vpop.f32.mrf.mxu0
      %v3319 = vpop.f32.mrf.mxu0
      %v3320 = vadd.f32 %v3132, %v3319
      %v3321 = vpop.f32.mrf.mxu0
      %3322 = vmatprep.mubr.bf16.mxu0 0
      %3323 = vmatmul.mubr.bf16.gmra.mxu0 %v3183
      %v3324 = vpop.f32.mrf.mxu0
      %v3325 = vadd.f32 %v3132, %v3324
      %v3326 = vpop.f32.mrf.mxu0
      %v3327 = vpop.f32.mrf.mxu0
      %v3328 = vadd.f32 %v3132, %v3327
      %v3329 = vpop.f32.mrf.mxu0
      %3330 = vmatprep.mubr.bf16.mxu0 0
      %3331 = vmatmul.mubr.bf16.gmra.mxu0 %v3186
      %v3332 = vpop.f32.mrf.mxu0
      %v3333 = vadd.f32 %v3132, %v3332
      %v3334 = vpop.f32.mrf.mxu0
      %v3335 = vpop.f32.mrf.mxu0
      %v3336 = vadd.f32 %v3132, %v3335
      %v3337 = vpop.f32.mrf.mxu0
      %3338 = vmatprep.mubr.bf16.mxu0 0
      %3339 = vmatmul.mubr.bf16.gmra.mxu0 %v3189
      %v3340 = vpop.f32.mrf.mxu0
      %v3341 = vadd.f32 %v3132, %v3340
      %v3342 = vpop.f32.mrf.mxu0
      %v3343 = vpop.f32.mrf.mxu0
      %v3344 = vadd.f32 %v3132, %v3343
      %v3345 = vpop.f32.mrf.mxu0
      %3346 = vmatprep.mubr.bf16.mxu0 0
      %3347 = vmatmul.mubr.bf16.gmra.mxu0 %v3192
      %v3348 = vpop.f32.mrf.mxu0
      %v3349 = vadd.f32 %v3132, %v3348
      %v3350 = vpop.f32.mrf.mxu0
      %v3351 = vpop.f32.mrf.mxu0
      %v3352 = vadd.f32 %v3132, %v3351
      %v3353 = vpop.f32.mrf.mxu0
      %3354 = vdwg.mxu0
      %v3355 = vadd.f32 %v3229, %v388
      %v3356 = vadd.f32 %v3232, %v389
      %v3357 = vadd.f32 %v3237, %v390
      %v3358 = vadd.f32 %v3240, %v391
      %v3359 = vadd.f32 %v3245, %v392
      %v3360 = vadd.f32 %v3248, %v393
      %v3361 = vadd.f32 %v3253, %v394
      %v3362 = vadd.f32 %v3256, %v395
      %v3363 = vadd.f32 %v3261, %v396
      %v3364 = vadd.f32 %v3264, %v397
      %v3365 = vadd.f32 %v3269, %v398
      %v3366 = vadd.f32 %v3272, %v399
      %v3367 = vadd.f32 %v3277, %v400
      %v3368 = vadd.f32 %v3280, %v401
      %v3369 = vadd.f32 %v3285, %v402
      %v3370 = vadd.f32 %v3288, %v403
      %v3371 = vadd.f32 %v3293, %v404
      %v3372 = vadd.f32 %v3296, %v405
      %v3373 = vadd.f32 %v3301, %v406
      %v3374 = vadd.f32 %v3304, %v407
      %v3375 = vadd.f32 %v3309, %v408
      %v3376 = vadd.f32 %v3312, %v409
      %v3377 = vadd.f32 %v3317, %v410
      %v3378 = vadd.f32 %v3320, %v411
      %v3379 = vadd.f32 %v3325, %v412
      %v3380 = vadd.f32 %v3328, %v413
      %v3381 = vadd.f32 %v3333, %v414
      %v3382 = vadd.f32 %v3336, %v415
      %v3383 = vadd.f32 %v3341, %v416
      %v3384 = vadd.f32 %v3344, %v417
      %v3385 = vadd.f32 %v3349, %v418
      %v3386 = vadd.f32 %v3352, %v419
      %3387 = vst.msk [vmem:[%s386] sm:$0xff] %vm444, %v3355
      %3388 = vst.msk [vmem:[%s386 + $0x8] sm:$0xff] %vm444, %v3356
      %3389 = vst.msk [vmem:[%s386 + $0x10] sm:$0xff] %vm444, %v3357
      %3390 = vst.msk [vmem:[%s386 + $0x18] sm:$0xff] %vm444, %v3358
      %3391 = vst.msk [vmem:[%s386 + $0x20] sm:$0xff] %vm444, %v3359
      %3392 = vst.msk [vmem:[%s386 + $0x28] sm:$0xff] %vm444, %v3360
      %3393 = vst.msk [vmem:[%s386 + $0x30] sm:$0xff] %vm444, %v3361
      %3394 = vst.msk [vmem:[%s386 + $0x38] sm:$0xff] %vm444, %v3362
      %3395 = vst.msk [vmem:[%s386 + $0x40] sm:$0xff] %vm444, %v3363
      %3396 = vst.msk [vmem:[%s386 + $0x48] sm:$0xff] %vm444, %v3364
      %3397 = vst.msk [vmem:[%s386 + $0x50] sm:$0xff] %vm444, %v3365
      %3398 = vst.msk [vmem:[%s386 + $0x58] sm:$0xff] %vm444, %v3366
      %3399 = vst.msk [vmem:[%s386 + $0x60] sm:$0xff] %vm444, %v3367
      %3400 = vst.msk [vmem:[%s386 + $0x68] sm:$0xff] %vm444, %v3368
      %3401 = vst.msk [vmem:[%s386 + $0x70] sm:$0xff] %vm444, %v3369
      %3402 = vst.msk [vmem:[%s386 + $0x78] sm:$0xff] %vm444, %v3370
      %3403 = vst.msk [vmem:[%s386 + $0x80] sm:$0xff] %vm444, %v3371
      %3404 = vst.msk [vmem:[%s386 + $0x88] sm:$0xff] %vm444, %v3372
      %3405 = vst.msk [vmem:[%s386 + $0x90] sm:$0xff] %vm444, %v3373
      %3406 = vst.msk [vmem:[%s386 + $0x98] sm:$0xff] %vm444, %v3374
      %3407 = vst.msk [vmem:[%s386 + $0xa0] sm:$0xff] %vm444, %v3375
      %3408 = vst.msk [vmem:[%s386 + $0xa8] sm:$0xff] %vm444, %v3376
      %3409 = vst.msk [vmem:[%s386 + $0xb0] sm:$0xff] %vm444, %v3377
      %3410 = vst.msk [vmem:[%s386 + $0xb8] sm:$0xff] %vm444, %v3378
      %3411 = vst.msk [vmem:[%s386 + $0xc0] sm:$0xff] %vm444, %v3379
      %3412 = vst.msk [vmem:[%s386 + $0xc8] sm:$0xff] %vm444, %v3380
      %3413 = vst.msk [vmem:[%s386 + $0xd0] sm:$0xff] %vm444, %v3381
      %3414 = vst.msk [vmem:[%s386 + $0xd8] sm:$0xff] %vm444, %v3382
      %3415 = vst.msk [vmem:[%s386 + $0xe0] sm:$0xff] %vm444, %v3383
      %3416 = vst.msk [vmem:[%s386 + $0xe8] sm:$0xff] %vm444, %v3384
      %3417 = vst.msk [vmem:[%s386 + $0xf0] sm:$0xff] %vm444, %v3385
      %3418 = vst.msk [vmem:[%s386 + $0xf8] sm:$0xff] %vm444, %v3386
      %p3419 = scmp.lt.s32.totalorder %s22, 1
      %s3420 = scalar_select %p3419, %s22, 1
      %s3421 = smul.addr %s3420, 32
      %s3422 = smul.addr %s3421, 8
      %s3423 = scalar_lea.vmem %s11, %s3422
      // Predicated region
      $region65: #{tpu_custom_call.1} parent=63 // pred_check
        %p3424 = pneg %p276
      $region66: #{tpu_custom_call.1} parent=63 // pred_check_branch
        %3426 = sbr.rel (%p3424) target = $region68
      $region67: #{tpu_custom_call.1} parent=63 // pred_region
        _
      $region68: #{tpu_custom_call.1} parent=63 // pred_fallthru
        _
    $region64: #{tpu_custom_call.1} parent=5 // pred_fallthru
      _
    %p3427 = scmp.le.s32.totalorder 2, %s17
    // Predicated region
    $region69: #{tpu_custom_call.1} parent=5 // pred_check
      %p3428 = pneg %p3427
    $region70: #{tpu_custom_call.1} parent=5 // pred_check_branch
      %3430 = sbr.rel (%p3428) target = $region72
    $region71: #{tpu_custom_call.1} parent=5 // pred_region
      %s3431 = ssub.s32 %s17, 2
      // Predicated region
      $region73: #{tpu_custom_call.1} parent=71 // pred_check
        %p3432 = pneg %p282
      $region74: #{tpu_custom_call.1} parent=71 // pred_check_branch
        %3434 = sbr.rel (%p3432) target = $region76
      $region75: #{tpu_custom_call.1} parent=71 // pred_region
        %p3435 = scmp.lt.s32.totalorder %s23, 1
        %s3436 = scalar_select %p3435, %s23, 1
        %s3437 = smul.addr %s3436, 32
        %s3438 = smul.addr %s3437, 8
        %s3439 = scalar_lea.vmem %s11, %s3438
      $region76: #{tpu_custom_call.1} parent=71 // pred_fallthru
        _
    $region72: #{tpu_custom_call.1} parent=5 // pred_fallthru
      _
  $region6: #{tpu_custom_call.1} parent=0 // loop_footer
    %s21 = sadd.s32 1, %s17
  $region7: #{tpu_custom_call.1} parent=0 // loop_footer_branch
    %16 = sbr.rel target = $region3
  $region8: #{tpu_custom_call.1} parent=0 // loop_exit
    _

</llo_original>
